<compile_context>
chip_gen: v6e
topology: v6e:2x2x1
jax: 0.10.0
libtpu: 0.0.40
codegen_flags: <defaults>
</compile_context>

<pallas_src>
import numpy as np

import jax
import jax.numpy as jnp
from jax import lax
from jax.experimental import pallas as pl
from jax.experimental.pallas import tpu as pltpu


IMG = 32 * 32          # flat pixels per (single-channel) 32x32 image
M1 = IMG - 66          # conv1 output length (flat, incl. never-used lanes)  = 958
L1 = M1 - 33           # pool1 output length                                  = 925
M2 = L1 - 132          # conv2 output length                                  = 793
L2 = M2 - 66           # pool2 output length                                  = 727


# ---------------------------------------------------------------------------
# The fused kernel (one image per grid step)
# ---------------------------------------------------------------------------
def _net_kernel(x_ref, w1_ref, b1_ref, w2_ref, b2_ref, sel_ref,
                wfc1_ref, bfc1_ref, wfc2_ref, bfc2_ref, wfc3_ref, bfc3_ref,
                out_ref,
                y1_ref, z1_ref, p2_ref, y2_ref, flat_ref):
    # ---- conv1 (1 -> 6, 3x3, valid): 9 VPU broadcast multiply-adds ----------
    # flat pixel m = r*32 + c; tap (di,dj) reads x[m + 32*di + dj]
    acc1 = jnp.zeros((6, M1), jnp.float32)
    for di in range(3):
        for dj in range(3):
            k = di * 3 + dj
            acc1 = acc1 + w1_ref[:, k:k + 1] * x_ref[:, pl.ds(di * 32 + dj, M1)]
    y1_ref[...] = jnp.maximum(acc1 + b1_ref[...], 0.0)           # (6, M1)

    # ---- maxpool 2x2 / stride 2: window = flat offsets {0, 1, 32, 33} -------
    z1 = jnp.maximum(
        jnp.maximum(y1_ref[:, pl.ds(0, L1)], y1_ref[:, pl.ds(1, L1)]),
        jnp.maximum(y1_ref[:, pl.ds(32, L1)], y1_ref[:, pl.ds(33, L1)]))
    z1_ref[0:6, :] = z1                                           # (6, L1)
    z1_ref[6:8, :] = jnp.zeros((2, L1), jnp.float32)              # zero pad rows

    # ---- conv2 (6 -> 16, 3x3) as ONE K=72 GEMM over an im2col scratch -------
    # pooled-grid neighbor steps: +1 in j -> +2 flat, +1 in i -> +64 flat.
    # Tap k=(di*3+dj) occupies the 8-aligned sublane block [k*8, k*8+8) of p2
    # (rows 6..7 of each block are the zero pad rows of z1, matching zero
    # columns in w2), so every copy below is an unmasked 8-row block store.
    for di in range(3):
        for dj in range(3):
            k = di * 3 + dj
            p2_ref[k * 8:(k + 1) * 8, :] = z1_ref[:, pl.ds(di * 64 + dj * 2, M2)]
    y2 = jnp.dot(w2_ref[...], p2_ref[...], preferred_element_type=jnp.float32)
    y2_ref[...] = jnp.maximum(y2 + b2_ref[...], 0.0)              # (16, M2)

    # ---- maxpool 2x2 / stride 2 on the conv2 grid: offsets {0, 2, 64, 66} ---
    z2 = jnp.maximum(
        jnp.maximum(y2_ref[:, pl.ds(0, L2)], y2_ref[:, pl.ds(2, L2)]),
        jnp.maximum(y2_ref[:, pl.ds(64, L2)], y2_ref[:, pl.ds(66, L2)]))  # (16, L2)

    # ---- gather the 36 valid 6x6 pooled pixels: one constant 0/1 GEMM -------
    # pooled pixel (i3, j3) sits at flat index 128*i3 + 4*j3 -> slot 6*i3 + j3
    feats = jnp.dot(z2, sel_ref[...], preferred_element_type=jnp.float32)  # (16, 36)

    # ---- flatten in torch (c, i3, j3) order into a lane-dense (1, 576) row --
    for c in range(16):
        flat_ref[0, pl.ds(c * 36, 36)] = feats[c, :]

    # ---- fully-connected head (weights pre-transposed, lane-padded to 128) --
    flat = flat_ref[...]                                          # (1, 576)
    h = jnp.maximum(jnp.dot(flat, wfc1_ref[...],
                            preferred_element_type=jnp.float32) + bfc1_ref[...], 0.0)
    h = jnp.maximum(jnp.dot(h, wfc2_ref[...],
                            preferred_element_type=jnp.float32) + bfc2_ref[...], 0.0)
    out_ref[...] = jnp.dot(h, wfc3_ref[...],
                           preferred_element_type=jnp.float32) + bfc3_ref[...]


# ---------------------------------------------------------------------------
# Wrapper
# ---------------------------------------------------------------------------
def net_forward(x_nchw, p):
    """x_nchw: (B, 1, 32, 32) float32; p: prepared params (see prepare_params)."""
    B = x_nchw.shape[0]
    x_flat = x_nchw.reshape(1, B * IMG)   # flat index = b*1024 + r*32 + c (lanes)

    out = pl.pallas_call(
        _net_kernel,
        out_shape=jax.ShapeDtypeStruct((1, B * 128), jnp.float32),
        grid=(B,),
        in_specs=[
            pl.BlockSpec((1, IMG), lambda b: (0, b)),         # x (one image's lanes)
            pl.BlockSpec((6, 9), lambda b: (0, 0)),           # conv1 weight (GEMM form)
            pl.BlockSpec((6, 1), lambda b: (0, 0)),           # conv1 bias
            pl.BlockSpec((16, 72), lambda b: (0, 0)),         # conv2 weight (K=72, padded)
            pl.BlockSpec((16, 1), lambda b: (0, 0)),          # conv2 bias
            pl.BlockSpec((L2, 36), lambda b: (0, 0)),         # pooled-pixel selection
            pl.BlockSpec((576, 128), lambda b: (0, 0)),       # fc1 weight (padded)
            pl.BlockSpec((1, 128), lambda b: (0, 0)),         # fc1 bias
            pl.BlockSpec((128, 128), lambda b: (0, 0)),       # fc2 weight (padded)
            pl.BlockSpec((1, 128), lambda b: (0, 0)),         # fc2 bias
            pl.BlockSpec((128, 128), lambda b: (0, 0)),       # fc3 weight (padded)
            pl.BlockSpec((1, 128), lambda b: (0, 0)),         # fc3 bias
        ],
        out_specs=pl.BlockSpec((1, 128), lambda b: (0, b)),
        scratch_shapes=[
            pltpu.VMEM((6, M1), jnp.float32),                 # y1  (conv1 out)
            pltpu.VMEM((8, L1), jnp.float32),                 # z1  (pool1 out, 8-row padded)
            pltpu.VMEM((72, M2), jnp.float32),                # p2  (conv2 im2col)
            pltpu.VMEM((16, M2), jnp.float32),                # y2  (conv2 out)
            pltpu.VMEM((1, 576), jnp.float32),                # flattened features
        ],
        compiler_params=pltpu.CompilerParams(
            dimension_semantics=("parallel",)),
    )(x_flat, p["w1"], p["b1"], p["w2"], p["b2"], p["sel"],
      p["wfc1"], p["bfc1"], p["wfc2"], p["bfc2"], p["wfc3"], p["bfc3"])

    return out.reshape(B, 128)[:, :10]    # strip lane padding of the logits


# ---------------------------------------------------------------------------
# One-time parameter preparation (hoisted out of the forward path)
# ---------------------------------------------------------------------------
def _pad_fc(w, b, in_pad, out_pad):
    """Torch-layout (out, in) weight -> transposed + zero-padded (in_pad, out_pad)."""
    wt = jnp.transpose(w)
    wt = jnp.pad(wt, ((0, in_pad - wt.shape[0]), (0, out_pad - wt.shape[1])))
    bp = jnp.pad(b, (0, out_pad - b.shape[0])).reshape(1, out_pad)
    return wt, bp


def prepare_params(params):
    prep = {}
    # conv1: (6,1,3,3) -> (6,9); column k = di*3 + dj matches the tap order.
    prep["w1"] = params["conv1_w"].reshape(6, 9)
    prep["b1"] = params["conv1_b"].reshape(6, 1)
    # conv2: (16,6,3,3) -> (16,72) with column k*8 + ci = w[o, ci, di, dj]
    # (k = di*3 + dj; ci = 6,7 are zero pad to keep 8-sublane-aligned im2col).
    w2 = jnp.transpose(params["conv2_w"], (0, 2, 3, 1))      # (16, 3, 3, 6)
    w2 = jnp.pad(w2, ((0, 0), (0, 0), (0, 0), (0, 2)))       # (16, 3, 3, 8)
    prep["w2"] = w2.reshape(16, 72)
    prep["b2"] = params["conv2_b"].reshape(16, 1)
    # fc head, transposed + lane-padded to 128.
    prep["wfc1"], prep["bfc1"] = _pad_fc(params["fc1_w"], params["fc1_b"], 576, 128)
    prep["wfc2"], prep["bfc2"] = _pad_fc(params["fc2_w"], params["fc2_b"], 128, 128)
    prep["wfc3"], prep["bfc3"] = _pad_fc(params["fc3_w"], params["fc3_b"], 128, 128)
    # 0/1 selection: flat offset 128*i3 + 4*j3 -> feature slot 6*i3 + j3.
    sel = np.zeros((L2, 36), np.float32)
    for i3 in range(6):
        for j3 in range(6):
            sel[128 * i3 + 4 * j3, 6 * i3 + j3] = 1.0
    prep["sel"] = jnp.asarray(sel)
    return prep


def init_params(key):
    ks = jax.random.split(key, 10)
    s = 0.1
    return {
        "conv1_w": s * jax.random.normal(ks[0], (6, 1, 3, 3), jnp.float32),
        "conv1_b": s * jax.random.normal(ks[1], (6,), jnp.float32),
        "conv2_w": s * jax.random.normal(ks[2], (16, 6, 3, 3), jnp.float32),
        "conv2_b": s * jax.random.normal(ks[3], (16,), jnp.float32),
        "fc1_w": s * jax.random.normal(ks[4], (120, 16 * 6 * 6), jnp.float32),
        "fc1_b": s * jax.random.normal(ks[5], (120,), jnp.float32),
        "fc2_w": s * jax.random.normal(ks[6], (84, 120), jnp.float32),
        "fc2_b": s * jax.random.normal(ks[7], (84,), jnp.float32),
        "fc3_w": s * jax.random.normal(ks[8], (10, 84), jnp.float32),
        "fc3_b": s * jax.random.normal(ks[9], (10,), jnp.float32),
    }


# ---------------------------------------------------------------------------
# Pure-JAX reference (matches the PyTorch module) for a correctness check
# ---------------------------------------------------------------------------
def net_reference(x, params):
    hi = lax.Precision.HIGHEST
    dn = ("NCHW", "OIHW", "NCHW")
    y = lax.conv_general_dilated(x, params["conv1_w"], (1, 1), "VALID",
                                 dimension_numbers=dn, precision=hi)
    y = jax.nn.relu(y + params["conv1_b"].reshape(1, 6, 1, 1))
    y = lax.reduce_window(y, -jnp.inf, lax.max, (1, 1, 2, 2), (1, 1, 2, 2), "VALID")
    y = lax.conv_general_dilated(y, params["conv2_w"], (1, 1), "VALID",
                                 dimension_numbers=dn, precision=hi)
    y = jax.nn.relu(y + params["conv2_b"].reshape(1, 16, 1, 1))
    y = lax.reduce_window(y, -jnp.inf, lax.max, (1, 1, 2, 2), (1, 1, 2, 2), "VALID")
    y = y.reshape(y.shape[0], -1)                                  # (B, 576)
    y = jax.nn.relu(jnp.dot(y, params["fc1_w"].T, precision=hi) + params["fc1_b"])
    y = jax.nn.relu(jnp.dot(y, params["fc2_w"].T, precision=hi) + params["fc2_b"])
    return jnp.dot(y, params["fc3_w"].T, precision=hi) + params["fc3_b"]


if __name__ == "__main__":
    key = jax.random.PRNGKey(0)
    k_x, k_p = jax.random.split(key)
    # Net requires 32x32 single-channel inputs (fc1 expects 16*6*6 features).
    x = jax.random.normal(k_x, (2, 1, 32, 32), jnp.float32)
    params = init_params(k_p)
    prep = prepare_params(params)          # one-time weight repacking/padding

    out = jax.block_until_ready(jax.jit(net_forward)(x, prep))
    assert out.shape == (2, 10), out.shape
    assert out.dtype == jnp.float32

    ref = net_reference(x, params)
    np.testing.assert_allclose(np.asarray(out), np.asarray(ref), rtol=5e-3, atol=5e-3)
    print("KERNEL_OK")
</pallas_src>

<mosaic_0001>
module attributes {stable_mosaic.version = 11 : i64} {
  func.func @_net_kernel(%arg0: i32, %arg1: memref<1x1024xf32, #tpu.memory_space<vmem>>, %arg2: memref<6x9xf32, #tpu.memory_space<vmem>>, %arg3: memref<6x1xf32, #tpu.memory_space<vmem>>, %arg4: memref<16x72xf32, #tpu.memory_space<vmem>>, %arg5: memref<16x1xf32, #tpu.memory_space<vmem>>, %arg6: memref<727x36xf32, #tpu.memory_space<vmem>>, %arg7: memref<576x128xf32, #tpu.memory_space<vmem>>, %arg8: memref<1x128xf32, #tpu.memory_space<vmem>>, %arg9: memref<128x128xf32, #tpu.memory_space<vmem>>, %arg10: memref<1x128xf32, #tpu.memory_space<vmem>>, %arg11: memref<128x128xf32, #tpu.memory_space<vmem>>, %arg12: memref<1x128xf32, #tpu.memory_space<vmem>>, %arg13: memref<1x128xf32, #tpu.memory_space<vmem>>, %arg14: memref<6x958xf32, #tpu.memory_space<vmem>>, %arg15: memref<8x925xf32, #tpu.memory_space<vmem>>, %arg16: memref<72x793xf32, #tpu.memory_space<vmem>>, %arg17: memref<16x793xf32, #tpu.memory_space<vmem>>, %arg18: memref<1x576xf32, #tpu.memory_space<vmem>>) attributes {dimension_semantics = [#tpu.dimension_semantics<parallel>], iteration_bounds = array<i64: 2>, scalar_prefetch = 0 : i64, scratch_operands = 5 : i64, tpu.core_type = #tpu.core_type<tc>, window_params = [{transform_indices = @transform_0, window_bounds = array<i64: 1, 1024>}, {pipeline_mode = #tpu.pipeline_mode<synchronous>, transform_indices = @transform_1, window_bounds = array<i64: 6, 9>}, {pipeline_mode = #tpu.pipeline_mode<synchronous>, transform_indices = @transform_2, window_bounds = array<i64: 6, 1>}, {pipeline_mode = #tpu.pipeline_mode<synchronous>, transform_indices = @transform_3, window_bounds = array<i64: 16, 72>}, {pipeline_mode = #tpu.pipeline_mode<synchronous>, transform_indices = @transform_4, window_bounds = array<i64: 16, 1>}, {pipeline_mode = #tpu.pipeline_mode<synchronous>, transform_indices = @transform_5, window_bounds = array<i64: 727, 36>}, {pipeline_mode = #tpu.pipeline_mode<synchronous>, transform_indices = @transform_6, window_bounds = array<i64: 576, 128>}, {pipeline_mode = #tpu.pipeline_mode<synchronous>, transform_indices = @transform_7, window_bounds = array<i64: 1, 128>}, {pipeline_mode = #tpu.pipeline_mode<synchronous>, transform_indices = @transform_8, window_bounds = array<i64: 128, 128>}, {pipeline_mode = #tpu.pipeline_mode<synchronous>, transform_indices = @transform_9, window_bounds = array<i64: 1, 128>}, {pipeline_mode = #tpu.pipeline_mode<synchronous>, transform_indices = @transform_10, window_bounds = array<i64: 128, 128>}, {pipeline_mode = #tpu.pipeline_mode<synchronous>, transform_indices = @transform_11, window_bounds = array<i64: 1, 128>}, {transform_indices = @transform_12, window_bounds = array<i64: 1, 128>}]} {
    %cst = arith.constant 0.000000e+00 : f32
    %0 = vector.broadcast %cst : f32 to vector<6x958xf32>
    %c0 = arith.constant 0 : index
    %c0_0 = arith.constant 0 : index
    %1 = vector.load %arg2[%c0, %c0_0] : memref<6x9xf32, #tpu.memory_space<vmem>>, vector<6x1xf32>
    %c0_1 = arith.constant 0 : index
    %c0_2 = arith.constant 0 : index
    %2 = vector.load %arg1[%c0_1, %c0_2] : memref<1x1024xf32, #tpu.memory_space<vmem>>, vector<1x958xf32>
    %3 = vector.broadcast %1 : vector<6x1xf32> to vector<6x958xf32>
    %4 = vector.broadcast %2 : vector<1x958xf32> to vector<6x958xf32>
    %5 = arith.mulf %3, %4 : vector<6x958xf32>
    %6 = arith.addf %0, %5 : vector<6x958xf32>
    %c0_3 = arith.constant 0 : index
    %c1 = arith.constant 1 : index
    %7 = vector.load %arg2[%c0_3, %c1] : memref<6x9xf32, #tpu.memory_space<vmem>>, vector<6x1xf32>
    %c0_4 = arith.constant 0 : index
    %c1_5 = arith.constant 1 : index
    %8 = vector.load %arg1[%c0_4, %c1_5] : memref<1x1024xf32, #tpu.memory_space<vmem>>, vector<1x958xf32>
    %9 = vector.broadcast %7 : vector<6x1xf32> to vector<6x958xf32>
    %10 = vector.broadcast %8 : vector<1x958xf32> to vector<6x958xf32>
    %11 = arith.mulf %9, %10 : vector<6x958xf32>
    %12 = arith.addf %6, %11 : vector<6x958xf32>
    %c0_6 = arith.constant 0 : index
    %c2 = arith.constant 2 : index
    %13 = vector.load %arg2[%c0_6, %c2] : memref<6x9xf32, #tpu.memory_space<vmem>>, vector<6x1xf32>
    %c0_7 = arith.constant 0 : index
    %c2_8 = arith.constant 2 : index
    %14 = vector.load %arg1[%c0_7, %c2_8] : memref<1x1024xf32, #tpu.memory_space<vmem>>, vector<1x958xf32>
    %15 = vector.broadcast %13 : vector<6x1xf32> to vector<6x958xf32>
    %16 = vector.broadcast %14 : vector<1x958xf32> to vector<6x958xf32>
    %17 = arith.mulf %15, %16 : vector<6x958xf32>
    %18 = arith.addf %12, %17 : vector<6x958xf32>
    %c0_9 = arith.constant 0 : index
    %c3 = arith.constant 3 : index
    %19 = vector.load %arg2[%c0_9, %c3] : memref<6x9xf32, #tpu.memory_space<vmem>>, vector<6x1xf32>
    %c0_10 = arith.constant 0 : index
    %c32 = arith.constant 32 : index
    %20 = vector.load %arg1[%c0_10, %c32] : memref<1x1024xf32, #tpu.memory_space<vmem>>, vector<1x958xf32>
    %21 = vector.broadcast %19 : vector<6x1xf32> to vector<6x958xf32>
    %22 = vector.broadcast %20 : vector<1x958xf32> to vector<6x958xf32>
    %23 = arith.mulf %21, %22 : vector<6x958xf32>
    %24 = arith.addf %18, %23 : vector<6x958xf32>
    %c0_11 = arith.constant 0 : index
    %c4 = arith.constant 4 : index
    %25 = vector.load %arg2[%c0_11, %c4] : memref<6x9xf32, #tpu.memory_space<vmem>>, vector<6x1xf32>
    %c0_12 = arith.constant 0 : index
    %c33 = arith.constant 33 : index
    %26 = vector.load %arg1[%c0_12, %c33] : memref<1x1024xf32, #tpu.memory_space<vmem>>, vector<1x958xf32>
    %27 = vector.broadcast %25 : vector<6x1xf32> to vector<6x958xf32>
    %28 = vector.broadcast %26 : vector<1x958xf32> to vector<6x958xf32>
    %29 = arith.mulf %27, %28 : vector<6x958xf32>
    %30 = arith.addf %24, %29 : vector<6x958xf32>
    %c0_13 = arith.constant 0 : index
    %c5 = arith.constant 5 : index
    %31 = vector.load %arg2[%c0_13, %c5] : memref<6x9xf32, #tpu.memory_space<vmem>>, vector<6x1xf32>
    %c0_14 = arith.constant 0 : index
    %c34 = arith.constant 34 : index
    %32 = vector.load %arg1[%c0_14, %c34] : memref<1x1024xf32, #tpu.memory_space<vmem>>, vector<1x958xf32>
    %33 = vector.broadcast %31 : vector<6x1xf32> to vector<6x958xf32>
    %34 = vector.broadcast %32 : vector<1x958xf32> to vector<6x958xf32>
    %35 = arith.mulf %33, %34 : vector<6x958xf32>
    %36 = arith.addf %30, %35 : vector<6x958xf32>
    %c0_15 = arith.constant 0 : index
    %c6 = arith.constant 6 : index
    %37 = vector.load %arg2[%c0_15, %c6] : memref<6x9xf32, #tpu.memory_space<vmem>>, vector<6x1xf32>
    %c0_16 = arith.constant 0 : index
    %c64 = arith.constant 64 : index
    %38 = vector.load %arg1[%c0_16, %c64] : memref<1x1024xf32, #tpu.memory_space<vmem>>, vector<1x958xf32>
    %39 = vector.broadcast %37 : vector<6x1xf32> to vector<6x958xf32>
    %40 = vector.broadcast %38 : vector<1x958xf32> to vector<6x958xf32>
    %41 = arith.mulf %39, %40 : vector<6x958xf32>
    %42 = arith.addf %36, %41 : vector<6x958xf32>
    %c0_17 = arith.constant 0 : index
    %c7 = arith.constant 7 : index
    %43 = vector.load %arg2[%c0_17, %c7] : memref<6x9xf32, #tpu.memory_space<vmem>>, vector<6x1xf32>
    %c0_18 = arith.constant 0 : index
    %c65 = arith.constant 65 : index
    %44 = vector.load %arg1[%c0_18, %c65] : memref<1x1024xf32, #tpu.memory_space<vmem>>, vector<1x958xf32>
    %45 = vector.broadcast %43 : vector<6x1xf32> to vector<6x958xf32>
    %46 = vector.broadcast %44 : vector<1x958xf32> to vector<6x958xf32>
    %47 = arith.mulf %45, %46 : vector<6x958xf32>
    %48 = arith.addf %42, %47 : vector<6x958xf32>
    %c0_19 = arith.constant 0 : index
    %c8 = arith.constant 8 : index
    %49 = vector.load %arg2[%c0_19, %c8] : memref<6x9xf32, #tpu.memory_space<vmem>>, vector<6x1xf32>
    %c0_20 = arith.constant 0 : index
    %c66 = arith.constant 66 : index
    %50 = vector.load %arg1[%c0_20, %c66] : memref<1x1024xf32, #tpu.memory_space<vmem>>, vector<1x958xf32>
    %51 = vector.broadcast %49 : vector<6x1xf32> to vector<6x958xf32>
    %52 = vector.broadcast %50 : vector<1x958xf32> to vector<6x958xf32>
    %53 = arith.mulf %51, %52 : vector<6x958xf32>
    %54 = arith.addf %48, %53 : vector<6x958xf32>
    %c0_21 = arith.constant 0 : index
    %c0_22 = arith.constant 0 : index
    %55 = vector.load %arg3[%c0_21, %c0_22] : memref<6x1xf32, #tpu.memory_space<vmem>>, vector<6x1xf32>
    %56 = vector.broadcast %55 : vector<6x1xf32> to vector<6x958xf32>
    %57 = arith.addf %54, %56 : vector<6x958xf32>
    %cst_23 = arith.constant 0.000000e+00 : f32
    %58 = vector.broadcast %cst_23 : f32 to vector<6x958xf32>
    %59 = arith.maximumf %57, %58 : vector<6x958xf32>
    %c0_24 = arith.constant 0 : index
    %c0_25 = arith.constant 0 : index
    %60 = vector.load %arg14[%c0_24, %c0_25] : memref<6x958xf32, #tpu.memory_space<vmem>>, vector<6x958xf32>
    tpu.vector_store %arg14[%c0_24, %c0_25], %59 {strides = array<i32>} : memref<6x958xf32, #tpu.memory_space<vmem>>, vector<6x958xf32>,
    %c0_26 = arith.constant 0 : index
    %c0_27 = arith.constant 0 : index
    %61 = vector.load %arg14[%c0_26, %c0_27] : memref<6x958xf32, #tpu.memory_space<vmem>>, vector<6x925xf32>
    %c0_28 = arith.constant 0 : index
    %c1_29 = arith.constant 1 : index
    %62 = vector.load %arg14[%c0_28, %c1_29] : memref<6x958xf32, #tpu.memory_space<vmem>>, vector<6x925xf32>
    %63 = arith.maximumf %61, %62 : vector<6x925xf32>
    %c0_30 = arith.constant 0 : index
    %c32_31 = arith.constant 32 : index
    %64 = vector.load %arg14[%c0_30, %c32_31] : memref<6x958xf32, #tpu.memory_space<vmem>>, vector<6x925xf32>
    %c0_32 = arith.constant 0 : index
    %c33_33 = arith.constant 33 : index
    %65 = vector.load %arg14[%c0_32, %c33_33] : memref<6x958xf32, #tpu.memory_space<vmem>>, vector<6x925xf32>
    %66 = arith.maximumf %64, %65 : vector<6x925xf32>
    %67 = arith.maximumf %63, %66 : vector<6x925xf32>
    %c0_34 = arith.constant 0 : index
    %c0_35 = arith.constant 0 : index
    %68 = vector.load %arg15[%c0_34, %c0_35] : memref<8x925xf32, #tpu.memory_space<vmem>>, vector<6x925xf32>
    tpu.vector_store %arg15[%c0_34, %c0_35], %67 {strides = array<i32>} : memref<8x925xf32, #tpu.memory_space<vmem>>, vector<6x925xf32>,
    %cst_36 = arith.constant 0.000000e+00 : f32
    %69 = vector.broadcast %cst_36 : f32 to vector<2x925xf32>
    %c6_37 = arith.constant 6 : index
    %c0_38 = arith.constant 0 : index
    %70 = vector.load %arg15[%c6_37, %c0_38] : memref<8x925xf32, #tpu.memory_space<vmem>>, vector<2x925xf32>
    tpu.vector_store %arg15[%c6_37, %c0_38], %69 {strides = array<i32>} : memref<8x925xf32, #tpu.memory_space<vmem>>, vector<2x925xf32>,
    %c0_39 = arith.constant 0 : index
    %c0_40 = arith.constant 0 : index
    %71 = vector.load %arg15[%c0_39, %c0_40] : memref<8x925xf32, #tpu.memory_space<vmem>>, vector<8x793xf32>
    %c0_41 = arith.constant 0 : index
    %c0_42 = arith.constant 0 : index
    %72 = vector.load %arg16[%c0_41, %c0_42] : memref<72x793xf32, #tpu.memory_space<vmem>>, vector<8x793xf32>
    tpu.vector_store %arg16[%c0_41, %c0_42], %71 {strides = array<i32>} : memref<72x793xf32, #tpu.memory_space<vmem>>, vector<8x793xf32>,
    %c0_43 = arith.constant 0 : index
    %c2_44 = arith.constant 2 : index
    %73 = vector.load %arg15[%c0_43, %c2_44] : memref<8x925xf32, #tpu.memory_space<vmem>>, vector<8x793xf32>
    %c8_45 = arith.constant 8 : index
    %c0_46 = arith.constant 0 : index
    %74 = vector.load %arg16[%c8_45, %c0_46] : memref<72x793xf32, #tpu.memory_space<vmem>>, vector<8x793xf32>
    tpu.vector_store %arg16[%c8_45, %c0_46], %73 {strides = array<i32>} : memref<72x793xf32, #tpu.memory_space<vmem>>, vector<8x793xf32>,
    %c0_47 = arith.constant 0 : index
    %c4_48 = arith.constant 4 : index
    %75 = vector.load %arg15[%c0_47, %c4_48] : memref<8x925xf32, #tpu.memory_space<vmem>>, vector<8x793xf32>
    %c16 = arith.constant 16 : index
    %c0_49 = arith.constant 0 : index
    %76 = vector.load %arg16[%c16, %c0_49] : memref<72x793xf32, #tpu.memory_space<vmem>>, vector<8x793xf32>
    tpu.vector_store %arg16[%c16, %c0_49], %75 {strides = array<i32>} : memref<72x793xf32, #tpu.memory_space<vmem>>, vector<8x793xf32>,
    %c0_50 = arith.constant 0 : index
    %c64_51 = arith.constant 64 : index
    %77 = vector.load %arg15[%c0_50, %c64_51] : memref<8x925xf32, #tpu.memory_space<vmem>>, vector<8x793xf32>
    %c24 = arith.constant 24 : index
    %c0_52 = arith.constant 0 : index
    %78 = vector.load %arg16[%c24, %c0_52] : memref<72x793xf32, #tpu.memory_space<vmem>>, vector<8x793xf32>
    tpu.vector_store %arg16[%c24, %c0_52], %77 {strides = array<i32>} : memref<72x793xf32, #tpu.memory_space<vmem>>, vector<8x793xf32>,
    %c0_53 = arith.constant 0 : index
    %c66_54 = arith.constant 66 : index
    %79 = vector.load %arg15[%c0_53, %c66_54] : memref<8x925xf32, #tpu.memory_space<vmem>>, vector<8x793xf32>
    %c32_55 = arith.constant 32 : index
    %c0_56 = arith.constant 0 : index
    %80 = vector.load %arg16[%c32_55, %c0_56] : memref<72x793xf32, #tpu.memory_space<vmem>>, vector<8x793xf32>
    tpu.vector_store %arg16[%c32_55, %c0_56], %79 {strides = array<i32>} : memref<72x793xf32, #tpu.memory_space<vmem>>, vector<8x793xf32>,
    %c0_57 = arith.constant 0 : index
    %c68 = arith.constant 68 : index
    %81 = vector.load %arg15[%c0_57, %c68] : memref<8x925xf32, #tpu.memory_space<vmem>>, vector<8x793xf32>
    %c40 = arith.constant 40 : index
    %c0_58 = arith.constant 0 : index
    %82 = vector.load %arg16[%c40, %c0_58] : memref<72x793xf32, #tpu.memory_space<vmem>>, vector<8x793xf32>
    tpu.vector_store %arg16[%c40, %c0_58], %81 {strides = array<i32>} : memref<72x793xf32, #tpu.memory_space<vmem>>, vector<8x793xf32>,
    %c0_59 = arith.constant 0 : index
    %c128 = arith.constant 128 : index
    %83 = vector.load %arg15[%c0_59, %c128] : memref<8x925xf32, #tpu.memory_space<vmem>>, vector<8x793xf32>
    %c48 = arith.constant 48 : index
    %c0_60 = arith.constant 0 : index
    %84 = vector.load %arg16[%c48, %c0_60] : memref<72x793xf32, #tpu.memory_space<vmem>>, vector<8x793xf32>
    tpu.vector_store %arg16[%c48, %c0_60], %83 {strides = array<i32>} : memref<72x793xf32, #tpu.memory_space<vmem>>, vector<8x793xf32>,
    %c0_61 = arith.constant 0 : index
    %c130 = arith.constant 130 : index
    %85 = vector.load %arg15[%c0_61, %c130] : memref<8x925xf32, #tpu.memory_space<vmem>>, vector<8x793xf32>
    %c56 = arith.constant 56 : index
    %c0_62 = arith.constant 0 : index
    %86 = vector.load %arg16[%c56, %c0_62] : memref<72x793xf32, #tpu.memory_space<vmem>>, vector<8x793xf32>
    tpu.vector_store %arg16[%c56, %c0_62], %85 {strides = array<i32>} : memref<72x793xf32, #tpu.memory_space<vmem>>, vector<8x793xf32>,
    %c0_63 = arith.constant 0 : index
    %c132 = arith.constant 132 : index
    %87 = vector.load %arg15[%c0_63, %c132] : memref<8x925xf32, #tpu.memory_space<vmem>>, vector<8x793xf32>
    %c64_64 = arith.constant 64 : index
    %c0_65 = arith.constant 0 : index
    %88 = vector.load %arg16[%c64_64, %c0_65] : memref<72x793xf32, #tpu.memory_space<vmem>>, vector<8x793xf32>
    tpu.vector_store %arg16[%c64_64, %c0_65], %87 {strides = array<i32>} : memref<72x793xf32, #tpu.memory_space<vmem>>, vector<8x793xf32>,
    %c0_66 = arith.constant 0 : index
    %c0_67 = arith.constant 0 : index
    %89 = vector.load %arg4[%c0_66, %c0_67] : memref<16x72xf32, #tpu.memory_space<vmem>>, vector<16x72xf32>
    %c0_68 = arith.constant 0 : index
    %c0_69 = arith.constant 0 : index
    %90 = vector.load %arg16[%c0_68, %c0_69] : memref<72x793xf32, #tpu.memory_space<vmem>>, vector<72x793xf32>
    %cst_70 = arith.constant dense<0.000000e+00> : vector<16x793xf32>
    %91 = tpu.matmul %89, %90, %cst_70 {dimension_numbers = #tpu.dot_dimension_numbers<[1], [0], [0], [1], [0, 0, 1, 1], [], []>} : vector<16x72xf32>, vector<72x793xf32>, vector<16x793xf32> -> vector<16x793xf32>
    %c0_71 = arith.constant 0 : index
    %c0_72 = arith.constant 0 : index
    %92 = vector.load %arg5[%c0_71, %c0_72] : memref<16x1xf32, #tpu.memory_space<vmem>>, vector<16x1xf32>
    %93 = vector.broadcast %92 : vector<16x1xf32> to vector<16x793xf32>
    %94 = arith.addf %91, %93 : vector<16x793xf32>
    %cst_73 = arith.constant 0.000000e+00 : f32
    %95 = vector.broadcast %cst_73 : f32 to vector<16x793xf32>
    %96 = arith.maximumf %94, %95 : vector<16x793xf32>
    %c0_74 = arith.constant 0 : index
    %c0_75 = arith.constant 0 : index
    %97 = vector.load %arg17[%c0_74, %c0_75] : memref<16x793xf32, #tpu.memory_space<vmem>>, vector<16x793xf32>
    tpu.vector_store %arg17[%c0_74, %c0_75], %96 {strides = array<i32>} : memref<16x793xf32, #tpu.memory_space<vmem>>, vector<16x793xf32>,
    %c0_76 = arith.constant 0 : index
    %c0_77 = arith.constant 0 : index
    %98 = vector.load %arg17[%c0_76, %c0_77] : memref<16x793xf32, #tpu.memory_space<vmem>>, vector<16x727xf32>
    %c0_78 = arith.constant 0 : index
    %c2_79 = arith.constant 2 : index
    %99 = vector.load %arg17[%c0_78, %c2_79] : memref<16x793xf32, #tpu.memory_space<vmem>>, vector<16x727xf32>
    %100 = arith.maximumf %98, %99 : vector<16x727xf32>
    %c0_80 = arith.constant 0 : index
    %c64_81 = arith.constant 64 : index
    %101 = vector.load %arg17[%c0_80, %c64_81] : memref<16x793xf32, #tpu.memory_space<vmem>>, vector<16x727xf32>
    %c0_82 = arith.constant 0 : index
    %c66_83 = arith.constant 66 : index
    %102 = vector.load %arg17[%c0_82, %c66_83] : memref<16x793xf32, #tpu.memory_space<vmem>>, vector<16x727xf32>
    %103 = arith.maximumf %101, %102 : vector<16x727xf32>
    %104 = arith.maximumf %100, %103 : vector<16x727xf32>
    %c0_84 = arith.constant 0 : index
    %c0_85 = arith.constant 0 : index
    %105 = vector.load %arg6[%c0_84, %c0_85] : memref<727x36xf32, #tpu.memory_space<vmem>>, vector<727x36xf32>
    %cst_86 = arith.constant dense<0.000000e+00> : vector<16x36xf32>
    %106 = tpu.matmul %104, %105, %cst_86 {dimension_numbers = #tpu.dot_dimension_numbers<[1], [0], [0], [1], [0, 0, 1, 1], [], []>} : vector<16x727xf32>, vector<727x36xf32>, vector<16x36xf32> -> vector<16x36xf32>
    %107 = vector.extract_strided_slice %106 {offsets = [0, 0], sizes = [1, 36], strides = [1, 1]} : vector<16x36xf32> to vector<1x36xf32>
    %108 = vector.shape_cast %107 : vector<1x36xf32> to vector<36xf32>
    %c0_87 = arith.constant 0 : index
    %c0_88 = arith.constant 0 : index
    %109 = vector.load %arg18[%c0_87, %c0_88] : memref<1x576xf32, #tpu.memory_space<vmem>>, vector<1x36xf32>
    %110 = vector.shape_cast %109 : vector<1x36xf32> to vector<36xf32>
    %111 = vector.shape_cast %108 : vector<36xf32> to vector<1x36xf32>
    tpu.vector_store %arg18[%c0_87, %c0_88], %111 {strides = array<i32>} : memref<1x576xf32, #tpu.memory_space<vmem>>, vector<1x36xf32>,
    %112 = vector.extract_strided_slice %106 {offsets = [1, 0], sizes = [1, 36], strides = [1, 1]} : vector<16x36xf32> to vector<1x36xf32>
    %113 = vector.shape_cast %112 : vector<1x36xf32> to vector<36xf32>
    %c0_89 = arith.constant 0 : index
    %c36 = arith.constant 36 : index
    %114 = vector.load %arg18[%c0_89, %c36] : memref<1x576xf32, #tpu.memory_space<vmem>>, vector<1x36xf32>
    %115 = vector.shape_cast %114 : vector<1x36xf32> to vector<36xf32>
    %116 = vector.shape_cast %113 : vector<36xf32> to vector<1x36xf32>
    tpu.vector_store %arg18[%c0_89, %c36], %116 {strides = array<i32>} : memref<1x576xf32, #tpu.memory_space<vmem>>, vector<1x36xf32>,
    %117 = vector.extract_strided_slice %106 {offsets = [2, 0], sizes = [1, 36], strides = [1, 1]} : vector<16x36xf32> to vector<1x36xf32>
    %118 = vector.shape_cast %117 : vector<1x36xf32> to vector<36xf32>
    %c0_90 = arith.constant 0 : index
    %c72 = arith.constant 72 : index
    %119 = vector.load %arg18[%c0_90, %c72] : memref<1x576xf32, #tpu.memory_space<vmem>>, vector<1x36xf32>
    %120 = vector.shape_cast %119 : vector<1x36xf32> to vector<36xf32>
    %121 = vector.shape_cast %118 : vector<36xf32> to vector<1x36xf32>
    tpu.vector_store %arg18[%c0_90, %c72], %121 {strides = array<i32>} : memref<1x576xf32, #tpu.memory_space<vmem>>, vector<1x36xf32>,
    %122 = vector.extract_strided_slice %106 {offsets = [3, 0], sizes = [1, 36], strides = [1, 1]} : vector<16x36xf32> to vector<1x36xf32>
    %123 = vector.shape_cast %122 : vector<1x36xf32> to vector<36xf32>
    %c0_91 = arith.constant 0 : index
    %c108 = arith.constant 108 : index
    %124 = vector.load %arg18[%c0_91, %c108] : memref<1x576xf32, #tpu.memory_space<vmem>>, vector<1x36xf32>
    %125 = vector.shape_cast %124 : vector<1x36xf32> to vector<36xf32>
    %126 = vector.shape_cast %123 : vector<36xf32> to vector<1x36xf32>
    tpu.vector_store %arg18[%c0_91, %c108], %126 {strides = array<i32>} : memref<1x576xf32, #tpu.memory_space<vmem>>, vector<1x36xf32>,
    %127 = vector.extract_strided_slice %106 {offsets = [4, 0], sizes = [1, 36], strides = [1, 1]} : vector<16x36xf32> to vector<1x36xf32>
    %128 = vector.shape_cast %127 : vector<1x36xf32> to vector<36xf32>
    %c0_92 = arith.constant 0 : index
    %c144 = arith.constant 144 : index
    %129 = vector.load %arg18[%c0_92, %c144] : memref<1x576xf32, #tpu.memory_space<vmem>>, vector<1x36xf32>
    %130 = vector.shape_cast %129 : vector<1x36xf32> to vector<36xf32>
    %131 = vector.shape_cast %128 : vector<36xf32> to vector<1x36xf32>
    tpu.vector_store %arg18[%c0_92, %c144], %131 {strides = array<i32>} : memref<1x576xf32, #tpu.memory_space<vmem>>, vector<1x36xf32>,
    %132 = vector.extract_strided_slice %106 {offsets = [5, 0], sizes = [1, 36], strides = [1, 1]} : vector<16x36xf32> to vector<1x36xf32>
    %133 = vector.shape_cast %132 : vector<1x36xf32> to vector<36xf32>
    %c0_93 = arith.constant 0 : index
    %c180 = arith.constant 180 : index
    %134 = vector.load %arg18[%c0_93, %c180] : memref<1x576xf32, #tpu.memory_space<vmem>>, vector<1x36xf32>
    %135 = vector.shape_cast %134 : vector<1x36xf32> to vector<36xf32>
    %136 = vector.shape_cast %133 : vector<36xf32> to vector<1x36xf32>
    tpu.vector_store %arg18[%c0_93, %c180], %136 {strides = array<i32>} : memref<1x576xf32, #tpu.memory_space<vmem>>, vector<1x36xf32>,
    %137 = vector.extract_strided_slice %106 {offsets = [6, 0], sizes = [1, 36], strides = [1, 1]} : vector<16x36xf32> to vector<1x36xf32>
    %138 = vector.shape_cast %137 : vector<1x36xf32> to vector<36xf32>
    %c0_94 = arith.constant 0 : index
    %c216 = arith.constant 216 : index
    %139 = vector.load %arg18[%c0_94, %c216] : memref<1x576xf32, #tpu.memory_space<vmem>>, vector<1x36xf32>
    %140 = vector.shape_cast %139 : vector<1x36xf32> to vector<36xf32>
    %141 = vector.shape_cast %138 : vector<36xf32> to vector<1x36xf32>
    tpu.vector_store %arg18[%c0_94, %c216], %141 {strides = array<i32>} : memref<1x576xf32, #tpu.memory_space<vmem>>, vector<1x36xf32>,
    %142 = vector.extract_strided_slice %106 {offsets = [7, 0], sizes = [1, 36], strides = [1, 1]} : vector<16x36xf32> to vector<1x36xf32>
    %143 = vector.shape_cast %142 : vector<1x36xf32> to vector<36xf32>
    %c0_95 = arith.constant 0 : index
    %c252 = arith.constant 252 : index
    %144 = vector.load %arg18[%c0_95, %c252] : memref<1x576xf32, #tpu.memory_space<vmem>>, vector<1x36xf32>
    %145 = vector.shape_cast %144 : vector<1x36xf32> to vector<36xf32>
    %146 = vector.shape_cast %143 : vector<36xf32> to vector<1x36xf32>
    tpu.vector_store %arg18[%c0_95, %c252], %146 {strides = array<i32>} : memref<1x576xf32, #tpu.memory_space<vmem>>, vector<1x36xf32>,
    %147 = vector.extract_strided_slice %106 {offsets = [8, 0], sizes = [1, 36], strides = [1, 1]} : vector<16x36xf32> to vector<1x36xf32>
    %148 = vector.shape_cast %147 : vector<1x36xf32> to vector<36xf32>
    %c0_96 = arith.constant 0 : index
    %c288 = arith.constant 288 : index
    %149 = vector.load %arg18[%c0_96, %c288] : memref<1x576xf32, #tpu.memory_space<vmem>>, vector<1x36xf32>
    %150 = vector.shape_cast %149 : vector<1x36xf32> to vector<36xf32>
    %151 = vector.shape_cast %148 : vector<36xf32> to vector<1x36xf32>
    tpu.vector_store %arg18[%c0_96, %c288], %151 {strides = array<i32>} : memref<1x576xf32, #tpu.memory_space<vmem>>, vector<1x36xf32>,
    %152 = vector.extract_strided_slice %106 {offsets = [9, 0], sizes = [1, 36], strides = [1, 1]} : vector<16x36xf32> to vector<1x36xf32>
    %153 = vector.shape_cast %152 : vector<1x36xf32> to vector<36xf32>
    %c0_97 = arith.constant 0 : index
    %c324 = arith.constant 324 : index
    %154 = vector.load %arg18[%c0_97, %c324] : memref<1x576xf32, #tpu.memory_space<vmem>>, vector<1x36xf32>
    %155 = vector.shape_cast %154 : vector<1x36xf32> to vector<36xf32>
    %156 = vector.shape_cast %153 : vector<36xf32> to vector<1x36xf32>
    tpu.vector_store %arg18[%c0_97, %c324], %156 {strides = array<i32>} : memref<1x576xf32, #tpu.memory_space<vmem>>, vector<1x36xf32>,
    %157 = vector.extract_strided_slice %106 {offsets = [10, 0], sizes = [1, 36], strides = [1, 1]} : vector<16x36xf32> to vector<1x36xf32>
    %158 = vector.shape_cast %157 : vector<1x36xf32> to vector<36xf32>
    %c0_98 = arith.constant 0 : index
    %c360 = arith.constant 360 : index
    %159 = vector.load %arg18[%c0_98, %c360] : memref<1x576xf32, #tpu.memory_space<vmem>>, vector<1x36xf32>
    %160 = vector.shape_cast %159 : vector<1x36xf32> to vector<36xf32>
    %161 = vector.shape_cast %158 : vector<36xf32> to vector<1x36xf32>
    tpu.vector_store %arg18[%c0_98, %c360], %161 {strides = array<i32>} : memref<1x576xf32, #tpu.memory_space<vmem>>, vector<1x36xf32>,
    %162 = vector.extract_strided_slice %106 {offsets = [11, 0], sizes = [1, 36], strides = [1, 1]} : vector<16x36xf32> to vector<1x36xf32>
    %163 = vector.shape_cast %162 : vector<1x36xf32> to vector<36xf32>
    %c0_99 = arith.constant 0 : index
    %c396 = arith.constant 396 : index
    %164 = vector.load %arg18[%c0_99, %c396] : memref<1x576xf32, #tpu.memory_space<vmem>>, vector<1x36xf32>
    %165 = vector.shape_cast %164 : vector<1x36xf32> to vector<36xf32>
    %166 = vector.shape_cast %163 : vector<36xf32> to vector<1x36xf32>
    tpu.vector_store %arg18[%c0_99, %c396], %166 {strides = array<i32>} : memref<1x576xf32, #tpu.memory_space<vmem>>, vector<1x36xf32>,
    %167 = vector.extract_strided_slice %106 {offsets = [12, 0], sizes = [1, 36], strides = [1, 1]} : vector<16x36xf32> to vector<1x36xf32>
    %168 = vector.shape_cast %167 : vector<1x36xf32> to vector<36xf32>
    %c0_100 = arith.constant 0 : index
    %c432 = arith.constant 432 : index
    %169 = vector.load %arg18[%c0_100, %c432] : memref<1x576xf32, #tpu.memory_space<vmem>>, vector<1x36xf32>
    %170 = vector.shape_cast %169 : vector<1x36xf32> to vector<36xf32>
    %171 = vector.shape_cast %168 : vector<36xf32> to vector<1x36xf32>
    tpu.vector_store %arg18[%c0_100, %c432], %171 {strides = array<i32>} : memref<1x576xf32, #tpu.memory_space<vmem>>, vector<1x36xf32>,
    %172 = vector.extract_strided_slice %106 {offsets = [13, 0], sizes = [1, 36], strides = [1, 1]} : vector<16x36xf32> to vector<1x36xf32>
    %173 = vector.shape_cast %172 : vector<1x36xf32> to vector<36xf32>
    %c0_101 = arith.constant 0 : index
    %c468 = arith.constant 468 : index
    %174 = vector.load %arg18[%c0_101, %c468] : memref<1x576xf32, #tpu.memory_space<vmem>>, vector<1x36xf32>
    %175 = vector.shape_cast %174 : vector<1x36xf32> to vector<36xf32>
    %176 = vector.shape_cast %173 : vector<36xf32> to vector<1x36xf32>
    tpu.vector_store %arg18[%c0_101, %c468], %176 {strides = array<i32>} : memref<1x576xf32, #tpu.memory_space<vmem>>, vector<1x36xf32>,
    %177 = vector.extract_strided_slice %106 {offsets = [14, 0], sizes = [1, 36], strides = [1, 1]} : vector<16x36xf32> to vector<1x36xf32>
    %178 = vector.shape_cast %177 : vector<1x36xf32> to vector<36xf32>
    %c0_102 = arith.constant 0 : index
    %c504 = arith.constant 504 : index
    %179 = vector.load %arg18[%c0_102, %c504] : memref<1x576xf32, #tpu.memory_space<vmem>>, vector<1x36xf32>
    %180 = vector.shape_cast %179 : vector<1x36xf32> to vector<36xf32>
    %181 = vector.shape_cast %178 : vector<36xf32> to vector<1x36xf32>
    tpu.vector_store %arg18[%c0_102, %c504], %181 {strides = array<i32>} : memref<1x576xf32, #tpu.memory_space<vmem>>, vector<1x36xf32>,
    %182 = vector.extract_strided_slice %106 {offsets = [15, 0], sizes = [1, 36], strides = [1, 1]} : vector<16x36xf32> to vector<1x36xf32>
    %183 = vector.shape_cast %182 : vector<1x36xf32> to vector<36xf32>
    %c0_103 = arith.constant 0 : index
    %c540 = arith.constant 540 : index
    %184 = vector.load %arg18[%c0_103, %c540] : memref<1x576xf32, #tpu.memory_space<vmem>>, vector<1x36xf32>
    %185 = vector.shape_cast %184 : vector<1x36xf32> to vector<36xf32>
    %186 = vector.shape_cast %183 : vector<36xf32> to vector<1x36xf32>
    tpu.vector_store %arg18[%c0_103, %c540], %186 {strides = array<i32>} : memref<1x576xf32, #tpu.memory_space<vmem>>, vector<1x36xf32>,
    %c0_104 = arith.constant 0 : index
    %c0_105 = arith.constant 0 : index
    %187 = vector.load %arg18[%c0_104, %c0_105] : memref<1x576xf32, #tpu.memory_space<vmem>>, vector<1x576xf32>
    %c0_106 = arith.constant 0 : index
    %c0_107 = arith.constant 0 : index
    %188 = vector.load %arg7[%c0_106, %c0_107] : memref<576x128xf32, #tpu.memory_space<vmem>>, vector<576x128xf32>
    %cst_108 = arith.constant dense<0.000000e+00> : vector<1x128xf32>
    %189 = tpu.matmul %187, %188, %cst_108 {dimension_numbers = #tpu.dot_dimension_numbers<[1], [0], [0], [1], [0, 0, 1, 1], [], []>} : vector<1x576xf32>, vector<576x128xf32>, vector<1x128xf32> -> vector<1x128xf32>
    %c0_109 = arith.constant 0 : index
    %c0_110 = arith.constant 0 : index
    %190 = vector.load %arg8[%c0_109, %c0_110] : memref<1x128xf32, #tpu.memory_space<vmem>>, vector<1x128xf32>
    %191 = arith.addf %189, %190 : vector<1x128xf32>
    %cst_111 = arith.constant 0.000000e+00 : f32
    %192 = vector.broadcast %cst_111 : f32 to vector<1x128xf32>
    %193 = arith.maximumf %191, %192 : vector<1x128xf32>
    %c0_112 = arith.constant 0 : index
    %c0_113 = arith.constant 0 : index
    %194 = vector.load %arg9[%c0_112, %c0_113] : memref<128x128xf32, #tpu.memory_space<vmem>>, vector<128x128xf32>
    %cst_114 = arith.constant dense<0.000000e+00> : vector<1x128xf32>
    %195 = tpu.matmul %193, %194, %cst_114 {dimension_numbers = #tpu.dot_dimension_numbers<[1], [0], [0], [1], [0, 0, 1, 1], [], []>} : vector<1x128xf32>, vector<128x128xf32>, vector<1x128xf32> -> vector<1x128xf32>
    %c0_115 = arith.constant 0 : index
    %c0_116 = arith.constant 0 : index
    %196 = vector.load %arg10[%c0_115, %c0_116] : memref<1x128xf32, #tpu.memory_space<vmem>>, vector<1x128xf32>
    %197 = arith.addf %195, %196 : vector<1x128xf32>
    %cst_117 = arith.constant 0.000000e+00 : f32
    %198 = vector.broadcast %cst_117 : f32 to vector<1x128xf32>
    %199 = arith.maximumf %197, %198 : vector<1x128xf32>
    %c0_118 = arith.constant 0 : index
    %c0_119 = arith.constant 0 : index
    %200 = vector.load %arg11[%c0_118, %c0_119] : memref<128x128xf32, #tpu.memory_space<vmem>>, vector<128x128xf32>
    %cst_120 = arith.constant dense<0.000000e+00> : vector<1x128xf32>
    %201 = tpu.matmul %199, %200, %cst_120 {dimension_numbers = #tpu.dot_dimension_numbers<[1], [0], [0], [1], [0, 0, 1, 1], [], []>} : vector<1x128xf32>, vector<128x128xf32>, vector<1x128xf32> -> vector<1x128xf32>
    %c0_121 = arith.constant 0 : index
    %c0_122 = arith.constant 0 : index
    %202 = vector.load %arg12[%c0_121, %c0_122] : memref<1x128xf32, #tpu.memory_space<vmem>>, vector<1x128xf32>
    %203 = arith.addf %201, %202 : vector<1x128xf32>
    %c0_123 = arith.constant 0 : index
    %c0_124 = arith.constant 0 : index
    %204 = vector.load %arg13[%c0_123, %c0_124] : memref<1x128xf32, #tpu.memory_space<vmem>>, vector<1x128xf32>
    tpu.vector_store %arg13[%c0_123, %c0_124], %203 {strides = array<i32>} : memref<1x128xf32, #tpu.memory_space<vmem>>, vector<1x128xf32>,
    return
  }
  func.func @transform_0(%arg0: i32) -> (i32, i32) {
    %c0_i32 = arith.constant 0 : i32
    %c0_i32_0 = arith.constant 0 : i32
    return %c0_i32, %arg0 : i32, i32
  }
  func.func @transform_1(%arg0: i32) -> (i32, i32) {
    %c0_i32 = arith.constant 0 : i32
    %c0_i32_0 = arith.constant 0 : i32
    %c0_i32_1 = arith.constant 0 : i32
    return %c0_i32, %c0_i32_0 : i32, i32
  }
  func.func @transform_2(%arg0: i32) -> (i32, i32) {
    %c0_i32 = arith.constant 0 : i32
    %c0_i32_0 = arith.constant 0 : i32
    %c0_i32_1 = arith.constant 0 : i32
    return %c0_i32, %c0_i32_0 : i32, i32
  }
  func.func @transform_3(%arg0: i32) -> (i32, i32) {
    %c0_i32 = arith.constant 0 : i32
    %c0_i32_0 = arith.constant 0 : i32
    %c0_i32_1 = arith.constant 0 : i32
    return %c0_i32, %c0_i32_0 : i32, i32
  }
  func.func @transform_4(%arg0: i32) -> (i32, i32) {
    %c0_i32 = arith.constant 0 : i32
    %c0_i32_0 = arith.constant 0 : i32
    %c0_i32_1 = arith.constant 0 : i32
    return %c0_i32, %c0_i32_0 : i32, i32
  }
  func.func @transform_5(%arg0: i32) -> (i32, i32) {
    %c0_i32 = arith.constant 0 : i32
    %c0_i32_0 = arith.constant 0 : i32
    %c0_i32_1 = arith.constant 0 : i32
    return %c0_i32, %c0_i32_0 : i32, i32
  }
  func.func @transform_6(%arg0: i32) -> (i32, i32) {
    %c0_i32 = arith.constant 0 : i32
    %c0_i32_0 = arith.constant 0 : i32
    %c0_i32_1 = arith.constant 0 : i32
    return %c0_i32, %c0_i32_0 : i32, i32
  }
  func.func @transform_7(%arg0: i32) -> (i32, i32) {
    %c0_i32 = arith.constant 0 : i32
    %c0_i32_0 = arith.constant 0 : i32
    %c0_i32_1 = arith.constant 0 : i32
    return %c0_i32, %c0_i32_0 : i32, i32
  }
  func.func @transform_8(%arg0: i32) -> (i32, i32) {
    %c0_i32 = arith.constant 0 : i32
    %c0_i32_0 = arith.constant 0 : i32
    %c0_i32_1 = arith.constant 0 : i32
    return %c0_i32, %c0_i32_0 : i32, i32
  }
  func.func @transform_9(%arg0: i32) -> (i32, i32) {
    %c0_i32 = arith.constant 0 : i32
    %c0_i32_0 = arith.constant 0 : i32
    %c0_i32_1 = arith.constant 0 : i32
    return %c0_i32, %c0_i32_0 : i32, i32
  }
  func.func @transform_10(%arg0: i32) -> (i32, i32) {
    %c0_i32 = arith.constant 0 : i32
    %c0_i32_0 = arith.constant 0 : i32
    %c0_i32_1 = arith.constant 0 : i32
    return %c0_i32, %c0_i32_0 : i32, i32
  }
  func.func @transform_11(%arg0: i32) -> (i32, i32) {
    %c0_i32 = arith.constant 0 : i32
    %c0_i32_0 = arith.constant 0 : i32
    %c0_i32_1 = arith.constant 0 : i32
    return %c0_i32, %c0_i32_0 : i32, i32
  }
  func.func @transform_12(%arg0: i32) -> (i32, i32) {
    %c0_i32 = arith.constant 0 : i32
    %c0_i32_0 = arith.constant 0 : i32
    return %c0_i32, %arg0 : i32, i32
  }
}

</mosaic_0001>

<llo_original>
// kernel: net_forward.1
$region0: #{net_forward.1}
  #allocation0 [shape = 'u32[]', space=smem, size = 0x4, offset = 0x4, fixed_abs, tag = 'smem constant byte address 0x4 - core index']
  #allocation1 [shape = 'u32[144,128]{1,0:T(1,128)}', space=vmem, size = 0x12000, scoped, tag = 'internal scratch']
  #allocation2 [shape = 'f32[6,958]{1,0:T(8,128)}', space=vmem, size = 0x8000, scoped, tag = 'scratch operand']
  #allocation3 [shape = 'f32[8,925]{1,0:T(8,128)}', space=vmem, size = 0x8000, scoped, tag = 'scratch operand']
  #allocation4 [shape = 'f32[72,793]{1,0:T(8,128)}', space=vmem, size = 0x3f000, scoped, tag = 'scratch operand']
  #allocation5 [shape = 'f32[16,793]{1,0:T(8,128)}', space=vmem, size = 0xe000, scoped, tag = 'scratch operand']
  #allocation6 [shape = 'f32[1,576]{1,0:T(1,128)}', space=vmem, size = 0xa00, scoped, tag = 'scratch operand']
  %s0 = inlined_call_operand.vmem [shape: f32[1,2048], index: 0, kind: input, shape index: {}]
  %s1 = inlined_call_operand.vmem [shape: f32[6,9], index: 1, kind: input, shape index: {}]
  %s2 = inlined_call_operand.vmem [shape: f32[6,1], index: 2, kind: input, shape index: {}]
  %s3 = inlined_call_operand.vmem [shape: f32[16,72], index: 3, kind: input, shape index: {}]
  %s4 = inlined_call_operand.vmem [shape: f32[16,1], index: 4, kind: input, shape index: {}]
  %s5 = inlined_call_operand.vmem [shape: f32[727,36], index: 5, kind: input, shape index: {}]
  %s6 = inlined_call_operand.vmem [shape: f32[576,128], index: 6, kind: input, shape index: {}]
  %s7 = inlined_call_operand.vmem [shape: f32[1,128], index: 7, kind: input, shape index: {}]
  %s8 = inlined_call_operand.vmem [shape: f32[128,128], index: 8, kind: input, shape index: {}]
  %s9 = inlined_call_operand.vmem [shape: f32[1,128], index: 9, kind: input, shape index: {}]
  %s10 = inlined_call_operand.vmem [shape: f32[128,128], index: 10, kind: input, shape index: {}]
  %s11 = inlined_call_operand.vmem [shape: f32[1,128], index: 11, kind: input, shape index: {}]
  %s12 = inlined_call_operand.hbm [shape: f32[1,256], index: 12, kind: output, shape index: {}]
  %s13 = sld [smem:[#allocation0]]
  $region81: #{net_forward.1} parent=0
    _
  %s15 = ssub.s32 1, %s13
  %s16 = scalar_select 0, %s15, %s13
  $region1: #{net_forward.1} parent=0
    #allocation7 [shape = 'u8[1024]{0}', space=vmem, size = 0x400, scoped, tag = 'output window, operand 0']
    #allocation8 [shape = 's32[2]{0}', space=sflag, size = 0x8, scoped, tag = 'scoped memory for net_forward.1']
    %17 = vsyncpa [#allocation8], 0
    %s18 = scalar_lea.sflag [#allocation8], 1
    %19 = vsyncpa %s18, 0
    loop: start=0, step=1, limit=4
    $region2: #{net_forward.1} parent=1 // loop_pre_header
      _
    $region3: #{net_forward.1} parent=1 // loop_header
      %s21 = sphi 0, %s25
      %p22 = scmp.ge.s32.totalorder %s21, 4
      %s31 = sphi 0, %s33
      %s34 = sphi 0, %s31
      %s35 = sphi 0, %s34
      %s51 = sphi 0, %s35
      %s55 = sphi 0, %s55
      %s57 = sphi 0, %s55
      %s58 = sphi 0, %s57
      %s72 = sphi 0, %s58
      %s76 = sphi 0, %s76
      %s78 = sphi 0, %s76
      %s79 = sphi 0, %s78
      %s93 = sphi 0, %s79
      %s97 = sphi 0, %s97
      %s99 = sphi 0, %s97
      %s100 = sphi 0, %s99
      %s114 = sphi 0, %s100
      %s118 = sphi 0, %s118
      %s120 = sphi 0, %s118
      %s121 = sphi 0, %s120
      %s135 = sphi 0, %s121
      %s139 = sphi 0, %s139
      %s141 = sphi 0, %s139
      %s142 = sphi 0, %s141
      %s156 = sphi 0, %s142
      %s160 = sphi 0, %s160
      %s162 = sphi 0, %s160
      %s163 = sphi 0, %s162
      %s177 = sphi 0, %s163
      %s181 = sphi 0, %s181
      %s183 = sphi 0, %s181
      %s184 = sphi 0, %s183
      %s198 = sphi 0, %s184
      %s202 = sphi 0, %s202
      %s204 = sphi 0, %s202
      %s205 = sphi 0, %s204
      %s219 = sphi 0, %s205
      %s223 = sphi 0, %s223
      %s225 = sphi 0, %s223
      %s226 = sphi 0, %s225
      %s240 = sphi 0, %s226
      %s244 = sphi 0, %s244
      %s246 = sphi 0, %s244
      %s247 = sphi 0, %s246
      %s261 = sphi 0, %s247
      %s265 = sphi 0, %s265
      %s267 = sphi 0, %s265
      %s268 = sphi 0, %s267
      %s282 = sphi 0, %s268
      %s288 = sphi 0, %s290
      %s291 = sphi 0, %s288
      %s292 = sphi 0, %s291
      %s308 = sphi 0, %s292
    $region4: #{net_forward.1} parent=1 // loop_header_branch
      %24 = sbr.rel (%p22) target = $region8
    $region5: #{net_forward.1} parent=1 // loop_body
      %s26 = ssub.s32 %s21, 1
      %s27 = ssub.s32 %s21, 2
      %s28 = sadd.s32 %s21, 1
      %s29 = ssub.s32 %s21, %s28
      %p30 = scmp.eq.s32.totalorder %s29, 0
      %s32 = sadd.s32 %s31, 1
      %s33 = scalar_select %p30, %s31, %s32
      %p36 = pneg %p30
      %p37 = scmp.eq.s32.totalorder %s21, 1
      %p38 = por %p36, %p37
      %p39 = scmp.ne.s32.totalorder %s31, %s34
      %p40 = scmp.eq.s32.totalorder %s21, 0
      %p41 = por %p39, %p40
      %p42 = scmp.ne.s32.totalorder %s31, %s34
      %p43 = scmp.eq.s32.totalorder %s26, 1
      %p44 = por %p42, %p43
      %p45 = scmp.ne.s32.totalorder %s34, %s35
      %p46 = scmp.eq.s32.totalorder %s26, 0
      %p47 = por %p45, %p46
      %p48 = scmp.ne.s32.totalorder %s34, %s35
      %p49 = scmp.eq.s32.totalorder %s27, 1
      %p50 = por %p48, %p49
      %p52 = scmp.ne.s32.totalorder %s35, %s51
      %p53 = scmp.eq.s32.totalorder %s27, 0
      %p54 = por %p52, %p53
      %s56 = sadd.s32 %s55, 1
      %p59 = scmp.eq.s32.totalorder %s21, 1
      %p60 = scmp.ne.s32.totalorder %s55, %s57
      %p61 = scmp.eq.s32.totalorder %s21, 0
      %p62 = por %p60, %p61
      %p63 = scmp.ne.s32.totalorder %s55, %s57
      %p64 = scmp.eq.s32.totalorder %s26, 1
      %p65 = por %p63, %p64
      %p66 = scmp.ne.s32.totalorder %s57, %s58
      %p67 = scmp.eq.s32.totalorder %s26, 0
      %p68 = por %p66, %p67
      %p69 = scmp.ne.s32.totalorder %s57, %s58
      %p70 = scmp.eq.s32.totalorder %s27, 1
      %p71 = por %p69, %p70
      %p73 = scmp.ne.s32.totalorder %s58, %s72
      %p74 = scmp.eq.s32.totalorder %s27, 0
      %p75 = por %p73, %p74
      %s77 = sadd.s32 %s76, 1
      %p80 = scmp.eq.s32.totalorder %s21, 1
      %p81 = scmp.ne.s32.totalorder %s76, %s78
      %p82 = scmp.eq.s32.totalorder %s21, 0
      %p83 = por %p81, %p82
      %p84 = scmp.ne.s32.totalorder %s76, %s78
      %p85 = scmp.eq.s32.totalorder %s26, 1
      %p86 = por %p84, %p85
      %p87 = scmp.ne.s32.totalorder %s78, %s79
      %p88 = scmp.eq.s32.totalorder %s26, 0
      %p89 = por %p87, %p88
      %p90 = scmp.ne.s32.totalorder %s78, %s79
      %p91 = scmp.eq.s32.totalorder %s27, 1
      %p92 = por %p90, %p91
      %p94 = scmp.ne.s32.totalorder %s79, %s93
      %p95 = scmp.eq.s32.totalorder %s27, 0
      %p96 = por %p94, %p95
      %s98 = sadd.s32 %s97, 1
      %p101 = scmp.eq.s32.totalorder %s21, 1
      %p102 = scmp.ne.s32.totalorder %s97, %s99
      %p103 = scmp.eq.s32.totalorder %s21, 0
      %p104 = por %p102, %p103
      %p105 = scmp.ne.s32.totalorder %s97, %s99
      %p106 = scmp.eq.s32.totalorder %s26, 1
      %p107 = por %p105, %p106
      %p108 = scmp.ne.s32.totalorder %s99, %s100
      %p109 = scmp.eq.s32.totalorder %s26, 0
      %p110 = por %p108, %p109
      %p111 = scmp.ne.s32.totalorder %s99, %s100
      %p112 = scmp.eq.s32.totalorder %s27, 1
      %p113 = por %p111, %p112
      %p115 = scmp.ne.s32.totalorder %s100, %s114
      %p116 = scmp.eq.s32.totalorder %s27, 0
      %p117 = por %p115, %p116
      %s119 = sadd.s32 %s118, 1
      %p122 = scmp.eq.s32.totalorder %s21, 1
      %p123 = scmp.ne.s32.totalorder %s118, %s120
      %p124 = scmp.eq.s32.totalorder %s21, 0
      %p125 = por %p123, %p124
      %p126 = scmp.ne.s32.totalorder %s118, %s120
      %p127 = scmp.eq.s32.totalorder %s26, 1
      %p128 = por %p126, %p127
      %p129 = scmp.ne.s32.totalorder %s120, %s121
      %p130 = scmp.eq.s32.totalorder %s26, 0
      %p131 = por %p129, %p130
      %p132 = scmp.ne.s32.totalorder %s120, %s121
      %p133 = scmp.eq.s32.totalorder %s27, 1
      %p134 = por %p132, %p133
      %p136 = scmp.ne.s32.totalorder %s121, %s135
      %p137 = scmp.eq.s32.totalorder %s27, 0
      %p138 = por %p136, %p137
      %s140 = sadd.s32 %s139, 1
      %p143 = scmp.eq.s32.totalorder %s21, 1
      %p144 = scmp.ne.s32.totalorder %s139, %s141
      %p145 = scmp.eq.s32.totalorder %s21, 0
      %p146 = por %p144, %p145
      %p147 = scmp.ne.s32.totalorder %s139, %s141
      %p148 = scmp.eq.s32.totalorder %s26, 1
      %p149 = por %p147, %p148
      %p150 = scmp.ne.s32.totalorder %s141, %s142
      %p151 = scmp.eq.s32.totalorder %s26, 0
      %p152 = por %p150, %p151
      %p153 = scmp.ne.s32.totalorder %s141, %s142
      %p154 = scmp.eq.s32.totalorder %s27, 1
      %p155 = por %p153, %p154
      %p157 = scmp.ne.s32.totalorder %s142, %s156
      %p158 = scmp.eq.s32.totalorder %s27, 0
      %p159 = por %p157, %p158
      %s161 = sadd.s32 %s160, 1
      %p164 = scmp.eq.s32.totalorder %s21, 1
      %p165 = scmp.ne.s32.totalorder %s160, %s162
      %p166 = scmp.eq.s32.totalorder %s21, 0
      %p167 = por %p165, %p166
      %p168 = scmp.ne.s32.totalorder %s160, %s162
      %p169 = scmp.eq.s32.totalorder %s26, 1
      %p170 = por %p168, %p169
      %p171 = scmp.ne.s32.totalorder %s162, %s163
      %p172 = scmp.eq.s32.totalorder %s26, 0
      %p173 = por %p171, %p172
      %p174 = scmp.ne.s32.totalorder %s162, %s163
      %p175 = scmp.eq.s32.totalorder %s27, 1
      %p176 = por %p174, %p175
      %p178 = scmp.ne.s32.totalorder %s163, %s177
      %p179 = scmp.eq.s32.totalorder %s27, 0
      %p180 = por %p178, %p179
      %s182 = sadd.s32 %s181, 1
      %p185 = scmp.eq.s32.totalorder %s21, 1
      %p186 = scmp.ne.s32.totalorder %s181, %s183
      %p187 = scmp.eq.s32.totalorder %s21, 0
      %p188 = por %p186, %p187
      %p189 = scmp.ne.s32.totalorder %s181, %s183
      %p190 = scmp.eq.s32.totalorder %s26, 1
      %p191 = por %p189, %p190
      %p192 = scmp.ne.s32.totalorder %s183, %s184
      %p193 = scmp.eq.s32.totalorder %s26, 0
      %p194 = por %p192, %p193
      %p195 = scmp.ne.s32.totalorder %s183, %s184
      %p196 = scmp.eq.s32.totalorder %s27, 1
      %p197 = por %p195, %p196
      %p199 = scmp.ne.s32.totalorder %s184, %s198
      %p200 = scmp.eq.s32.totalorder %s27, 0
      %p201 = por %p199, %p200
      %s203 = sadd.s32 %s202, 1
      %p206 = scmp.eq.s32.totalorder %s21, 1
      %p207 = scmp.ne.s32.totalorder %s202, %s204
      %p208 = scmp.eq.s32.totalorder %s21, 0
      %p209 = por %p207, %p208
      %p210 = scmp.ne.s32.totalorder %s202, %s204
      %p211 = scmp.eq.s32.totalorder %s26, 1
      %p212 = por %p210, %p211
      %p213 = scmp.ne.s32.totalorder %s204, %s205
      %p214 = scmp.eq.s32.totalorder %s26, 0
      %p215 = por %p213, %p214
      %p216 = scmp.ne.s32.totalorder %s204, %s205
      %p217 = scmp.eq.s32.totalorder %s27, 1
      %p218 = por %p216, %p217
      %p220 = scmp.ne.s32.totalorder %s205, %s219
      %p221 = scmp.eq.s32.totalorder %s27, 0
      %p222 = por %p220, %p221
      %s224 = sadd.s32 %s223, 1
      %p227 = scmp.eq.s32.totalorder %s21, 1
      %p228 = scmp.ne.s32.totalorder %s223, %s225
      %p229 = scmp.eq.s32.totalorder %s21, 0
      %p230 = por %p228, %p229
      %p231 = scmp.ne.s32.totalorder %s223, %s225
      %p232 = scmp.eq.s32.totalorder %s26, 1
      %p233 = por %p231, %p232
      %p234 = scmp.ne.s32.totalorder %s225, %s226
      %p235 = scmp.eq.s32.totalorder %s26, 0
      %p236 = por %p234, %p235
      %p237 = scmp.ne.s32.totalorder %s225, %s226
      %p238 = scmp.eq.s32.totalorder %s27, 1
      %p239 = por %p237, %p238
      %p241 = scmp.ne.s32.totalorder %s226, %s240
      %p242 = scmp.eq.s32.totalorder %s27, 0
      %p243 = por %p241, %p242
      %s245 = sadd.s32 %s244, 1
      %p248 = scmp.eq.s32.totalorder %s21, 1
      %p249 = scmp.ne.s32.totalorder %s244, %s246
      %p250 = scmp.eq.s32.totalorder %s21, 0
      %p251 = por %p249, %p250
      %p252 = scmp.ne.s32.totalorder %s244, %s246
      %p253 = scmp.eq.s32.totalorder %s26, 1
      %p254 = por %p252, %p253
      %p255 = scmp.ne.s32.totalorder %s246, %s247
      %p256 = scmp.eq.s32.totalorder %s26, 0
      %p257 = por %p255, %p256
      %p258 = scmp.ne.s32.totalorder %s246, %s247
      %p259 = scmp.eq.s32.totalorder %s27, 1
      %p260 = por %p258, %p259
      %p262 = scmp.ne.s32.totalorder %s247, %s261
      %p263 = scmp.eq.s32.totalorder %s27, 0
      %p264 = por %p262, %p263
      %s266 = sadd.s32 %s265, 1
      %p269 = scmp.eq.s32.totalorder %s21, 1
      %p270 = scmp.ne.s32.totalorder %s265, %s267
      %p271 = scmp.eq.s32.totalorder %s21, 0
      %p272 = por %p270, %p271
      %p273 = scmp.ne.s32.totalorder %s265, %s267
      %p274 = scmp.eq.s32.totalorder %s26, 1
      %p275 = por %p273, %p274
      %p276 = scmp.ne.s32.totalorder %s267, %s268
      %p277 = scmp.eq.s32.totalorder %s26, 0
      %p278 = por %p276, %p277
      %p279 = scmp.ne.s32.totalorder %s267, %s268
      %p280 = scmp.eq.s32.totalorder %s27, 1
      %p281 = por %p279, %p280
      %p283 = scmp.ne.s32.totalorder %s268, %s282
      %p284 = scmp.eq.s32.totalorder %s27, 0
      %p285 = por %p283, %p284
      %s286 = ssub.s32 %s21, %s28
      %p287 = scmp.eq.s32.totalorder %s286, 0
      %s289 = sadd.s32 %s288, 1
      %s290 = scalar_select %p287, %s288, %s289
      %p293 = pneg %p287
      %p294 = scmp.eq.s32.totalorder %s21, 1
      %p295 = por %p293, %p294
      %p296 = scmp.ne.s32.totalorder %s288, %s291
      %p297 = scmp.eq.s32.totalorder %s21, 0
      %p298 = por %p296, %p297
      %p299 = scmp.ne.s32.totalorder %s288, %s291
      %p300 = scmp.eq.s32.totalorder %s26, 1
      %p301 = por %p299, %p300
      %p302 = scmp.ne.s32.totalorder %s291, %s292
      %p303 = scmp.eq.s32.totalorder %s26, 0
      %p304 = por %p302, %p303
      %p305 = scmp.ne.s32.totalorder %s291, %s292
      %p306 = scmp.eq.s32.totalorder %s27, 1
      %p307 = por %p305, %p306
      %p309 = scmp.ne.s32.totalorder %s292, %s308
      %p310 = scmp.eq.s32.totalorder %s27, 0
      %p311 = por %p309, %p310
      %p312 = scmp.le.s32.totalorder 1, %s21
      %p313 = scmp.lt.s32.totalorder %s21, 3
      %p314 = pnand %p312, %p313
      %p315 = pneg %p314
      // Predicated region
      $region9: #{net_forward.1} parent=5 // pred_check
        _
      $region10: #{net_forward.1} parent=5 // pred_check_branch
        %317 = sbr.rel (%p314) target = $region12
      $region11: #{net_forward.1} parent=5 // pred_region
        %s318 = ssub.s32 %s21, 1
        // Predicated region
        $region13: #{net_forward.1} parent=11 // pred_check
          %p319 = pneg %p68
        $region14: #{net_forward.1} parent=11 // pred_check_branch
          %321 = sbr.rel (%p319) target = $region16
        $region15: #{net_forward.1} parent=11 // pred_region
          _
        $region16: #{net_forward.1} parent=11 // pred_fallthru
          _
        // Predicated region
        $region17: #{net_forward.1} parent=11 // pred_check
          %p322 = pneg %p89
        $region18: #{net_forward.1} parent=11 // pred_check_branch
          %324 = sbr.rel (%p322) target = $region20
        $region19: #{net_forward.1} parent=11 // pred_region
          _
        $region20: #{net_forward.1} parent=11 // pred_fallthru
          _
        // Predicated region
        $region21: #{net_forward.1} parent=11 // pred_check
          %p325 = pneg %p110
        $region22: #{net_forward.1} parent=11 // pred_check_branch
          %327 = sbr.rel (%p325) target = $region24
        $region23: #{net_forward.1} parent=11 // pred_region
          _
        $region24: #{net_forward.1} parent=11 // pred_fallthru
          _
        // Predicated region
        $region25: #{net_forward.1} parent=11 // pred_check
          %p328 = pneg %p131
        $region26: #{net_forward.1} parent=11 // pred_check_branch
          %330 = sbr.rel (%p328) target = $region28
        $region27: #{net_forward.1} parent=11 // pred_region
          _
        $region28: #{net_forward.1} parent=11 // pred_fallthru
          _
        // Predicated region
        $region29: #{net_forward.1} parent=11 // pred_check
          %p331 = pneg %p152
        $region30: #{net_forward.1} parent=11 // pred_check_branch
          %333 = sbr.rel (%p331) target = $region32
        $region31: #{net_forward.1} parent=11 // pred_region
          _
        $region32: #{net_forward.1} parent=11 // pred_fallthru
          _
        // Predicated region
        $region33: #{net_forward.1} parent=11 // pred_check
          %p334 = pneg %p173
        $region34: #{net_forward.1} parent=11 // pred_check_branch
          %336 = sbr.rel (%p334) target = $region36
        $region35: #{net_forward.1} parent=11 // pred_region
          _
        $region36: #{net_forward.1} parent=11 // pred_fallthru
          _
        // Predicated region
        $region37: #{net_forward.1} parent=11 // pred_check
          %p337 = pneg %p194
        $region38: #{net_forward.1} parent=11 // pred_check_branch
          %339 = sbr.rel (%p337) target = $region40
        $region39: #{net_forward.1} parent=11 // pred_region
          _
        $region40: #{net_forward.1} parent=11 // pred_fallthru
          _
        // Predicated region
        $region41: #{net_forward.1} parent=11 // pred_check
          %p340 = pneg %p215
        $region42: #{net_forward.1} parent=11 // pred_check_branch
          %342 = sbr.rel (%p340) target = $region44
        $region43: #{net_forward.1} parent=11 // pred_region
          _
        $region44: #{net_forward.1} parent=11 // pred_fallthru
          _
        // Predicated region
        $region45: #{net_forward.1} parent=11 // pred_check
          %p343 = pneg %p236
        $region46: #{net_forward.1} parent=11 // pred_check_branch
          %345 = sbr.rel (%p343) target = $region48
        $region47: #{net_forward.1} parent=11 // pred_region
          _
        $region48: #{net_forward.1} parent=11 // pred_fallthru
          _
        // Predicated region
        $region49: #{net_forward.1} parent=11 // pred_check
          %p346 = pneg %p257
        $region50: #{net_forward.1} parent=11 // pred_check_branch
          %348 = sbr.rel (%p346) target = $region52
        $region51: #{net_forward.1} parent=11 // pred_region
          _
        $region52: #{net_forward.1} parent=11 // pred_fallthru
          _
        // Predicated region
        $region53: #{net_forward.1} parent=11 // pred_check
          %p349 = pneg %p278
        $region54: #{net_forward.1} parent=11 // pred_check_branch
          %351 = sbr.rel (%p349) target = $region56
        $region55: #{net_forward.1} parent=11 // pred_region
          _
        $region56: #{net_forward.1} parent=11 // pred_fallthru
          _
      $region12: #{net_forward.1} parent=5 // pred_fallthru
        _
      %p352 = scmp.lt.s32.totalorder %s21, 2
      // Predicated region
      $region57: #{net_forward.1} parent=5 // pred_check
        %p353 = pneg %p352
      $region58: #{net_forward.1} parent=5 // pred_check_branch
        %355 = sbr.rel (%p353) target = $region60
      $region59: #{net_forward.1} parent=5 // pred_region
        // Predicated region
        $region61: #{net_forward.1} parent=59 // pred_check
          %p356 = pneg %p41
        $region62: #{net_forward.1} parent=59 // pred_check_branch
          %358 = sbr.rel (%p356) target = $region64
        $region63: #{net_forward.1} parent=59 // pred_region
          %s359 = smul.u32 8, %s21
          %p360 = scmp.lt.s32.totalorder %s359, 15
          %s361 = scalar_select %p360, %s359, 15
          %s362 = scalar_lea.vmem %s0, %s361
          %s363 = smul.u32 8, %s21
        $region64: #{net_forward.1} parent=59 // pred_fallthru
          _
      $region60: #{net_forward.1} parent=5 // pred_fallthru
        _
      %p364 = scmp.le.s32.totalorder 1, %s21
      %p365 = scmp.lt.s32.totalorder %s21, 3
      %p366 = pnand %p364, %p365
      %p367 = pneg %p366
      // Predicated region
      $region65: #{net_forward.1} parent=5 // pred_check
        _
      $region66: #{net_forward.1} parent=5 // pred_check_branch
        %369 = sbr.rel (%p366) target = $region68
      $region67: #{net_forward.1} parent=5 // pred_region
        %s370 = ssub.s32 %s21, 1
        %s371 = smul.u32 8, %s26
        %p372 = scmp.lt.s32.totalorder %s371, 15
        %s373 = scalar_select %p372, %s371, 15
        %s374 = scalar_lea.vmem %s0, %s373
        %p375 = pneg %p47
        %p376 = pneg %p44
        %p377 = pneg %p68
        %p378 = pneg %p65
        %p379 = pneg %p89
        %p380 = pneg %p86
        %p381 = pneg %p110
        %p382 = pneg %p107
        %p383 = pneg %p131
        %p384 = pneg %p128
        %p385 = pneg %p152
        %p386 = pneg %p149
        %p387 = pneg %p173
        %p388 = pneg %p170
        %p389 = pneg %p194
        %p390 = pneg %p191
        %p391 = pneg %p215
        %p392 = pneg %p212
        %p393 = pneg %p236
        %p394 = pneg %p233
        %p395 = pneg %p257
        %p396 = pneg %p254
        %p397 = pneg %p278
        %p398 = pneg %p275
        %p399 = pneg %p304
        %p400 = pneg %p301
        %s401 = sand.u32 %s291, 1
        %s402 = scalar_lea.sflag [#allocation8], %s401
        %s403 = sand.u32 %s291, 1
        %s404 = scalar_lea.vmem [#allocation7], %s403
        %s405 = smul.u32 8, %s26
        %p406 = scmp.lt.s32.totalorder %s405, 15
        %s407 = scalar_select %p406, %s405, 15
        %s408 = scalar_lea.vmem %s0, %s407
        %s409 = smul.u32 8, %s26
        %v410 = vld [vmem:[%s1] sm:$0x3f]
        %v411 = vld [vmem:[%s408] sm:$0xff]
        %413 = vset.pattern.permute.xlu0 0
        %414 = vperm.xlu0 %413, %v410
        %v415 = vpop.permute.xlu0 %414
        %v418 = vlaneseq
        %v419 = vshrl.u32 %v418, 7
        %v420 = vsub.s32 0, %v419
        %v421 = vrot.slane %v411, %v420
        %v422 = vlaneseq
        %v423 = vshrl.u32 %v422, 7
        %v424 = vsub.s32 1, %v423
        %v425 = vrot.slane %v411, %v424
        %v426 = vlaneseq
        %v427 = vshrl.u32 %v426, 7
        %v428 = vsub.s32 2, %v427
        %v429 = vrot.slane %v411, %v428
        %v430 = vlaneseq
        %v431 = vshrl.u32 %v430, 7
        %v432 = vsub.s32 3, %v431
        %v433 = vrot.slane %v411, %v432
        %v434 = vlaneseq
        %v435 = vshrl.u32 %v434, 7
        %v436 = vsub.s32 4, %v435
        %v437 = vrot.slane %v411, %v436
        %v438 = vlaneseq
        %v439 = vshrl.u32 %v438, 7
        %v440 = vsub.s32 5, %v439
        %v441 = vrot.slane %v411, %v440
        %v442 = vlaneseq
        %v443 = vshrl.u32 %v442, 7
        %v444 = vsub.s32 6, %v443
        %v445 = vrot.slane %v411, %v444
        %v446 = vlaneseq
        %v447 = vshrl.u32 %v446, 7
        %v448 = vsub.s32 7, %v447
        %v449 = vrot.slane %v411, %v448
        %v458 = vmul.f32 %v415, %v421
        %v459 = vmul.f32 %v415, %v425
        %v460 = vmul.f32 %v415, %v429
        %v461 = vmul.f32 %v415, %v433
        %v462 = vmul.f32 %v415, %v437
        %v463 = vmul.f32 %v415, %v441
        %v464 = vmul.f32 %v415, %v445
        %v465 = vmul.f32 %v415, %v449
        %v466 = vadd.f32 %v458, 0.0
        %v467 = vadd.f32 %v459, 0.0
        %v468 = vadd.f32 %v460, 0.0
        %v469 = vadd.f32 %v461, 0.0
        %v470 = vadd.f32 %v462, 0.0
        %v471 = vadd.f32 %v463, 0.0
        %v472 = vadd.f32 %v464, 0.0
        %v473 = vadd.f32 %v465, 0.0
        %474 = vset.pattern.permute.xlu0 1
        %475 = vperm.xlu0 %474, %v410
        %v476 = vpop.permute.xlu0 %475
        %v478 = vmul.f32 %v476, %v421
        %v479 = vmul.f32 %v476, %v425
        %v480 = vmul.f32 %v476, %v429
        %v481 = vmul.f32 %v476, %v433
        %v482 = vmul.f32 %v476, %v437
        %v483 = vmul.f32 %v476, %v441
        %v484 = vmul.f32 %v476, %v445
        %v485 = vmul.f32 %v476, %v449
        %494 = vrot.lane.b32.xlu0 %v478, 127
        %v495 = vpop.permute.xlu0 %494
        %496 = vrot.lane.b32.xlu0 %v479, 127
        %v497 = vpop.permute.xlu0 %496
        %498 = vrot.lane.b32.xlu0 %v480, 127
        %v499 = vpop.permute.xlu0 %498
        %500 = vrot.lane.b32.xlu0 %v481, 127
        %v501 = vpop.permute.xlu0 %500
        %502 = vrot.lane.b32.xlu0 %v482, 127
        %v503 = vpop.permute.xlu0 %502
        %504 = vrot.lane.b32.xlu0 %v483, 127
        %v505 = vpop.permute.xlu0 %504
        %506 = vrot.lane.b32.xlu0 %v484, 127
        %v507 = vpop.permute.xlu0 %506
        %508 = vrot.lane.b32.xlu0 %v485, 127
        %v509 = vpop.permute.xlu0 %508
        %vm510 = vcmask 1039360
        %v511 = vsel %vm510, %v495, %v497
        %v512 = vsel %vm510, %v497, %v499
        %v513 = vsel %vm510, %v499, %v501
        %v514 = vsel %vm510, %v501, %v503
        %v515 = vsel %vm510, %v503, %v505
        %v516 = vsel %vm510, %v505, %v507
        %v517 = vsel %vm510, %v507, %v509
        %v526 = vadd.f32 %v466, %v511
        %v527 = vadd.f32 %v467, %v512
        %v528 = vadd.f32 %v468, %v513
        %v529 = vadd.f32 %v469, %v514
        %v530 = vadd.f32 %v470, %v515
        %v531 = vadd.f32 %v471, %v516
        %v532 = vadd.f32 %v472, %v517
        %v533 = vadd.f32 %v473, %v509
        %534 = vset.pattern.permute.xlu0 2
        %535 = vperm.xlu0 %534, %v410
        %v536 = vpop.permute.xlu0 %535
        %v538 = vmul.f32 %v536, %v421
        %v539 = vmul.f32 %v536, %v425
        %v540 = vmul.f32 %v536, %v429
        %v541 = vmul.f32 %v536, %v433
        %v542 = vmul.f32 %v536, %v437
        %v543 = vmul.f32 %v536, %v441
        %v544 = vmul.f32 %v536, %v445
        %v545 = vmul.f32 %v536, %v449
        %554 = vrot.lane.b32.xlu0 %v538, 126
        %v555 = vpop.permute.xlu0 %554
        %556 = vrot.lane.b32.xlu0 %v539, 126
        %v557 = vpop.permute.xlu0 %556
        %558 = vrot.lane.b32.xlu0 %v540, 126
        %v559 = vpop.permute.xlu0 %558
        %560 = vrot.lane.b32.xlu0 %v541, 126
        %v561 = vpop.permute.xlu0 %560
        %562 = vrot.lane.b32.xlu0 %v542, 126
        %v563 = vpop.permute.xlu0 %562
        %564 = vrot.lane.b32.xlu0 %v543, 126
        %v565 = vpop.permute.xlu0 %564
        %566 = vrot.lane.b32.xlu0 %v544, 126
        %v567 = vpop.permute.xlu0 %566
        %568 = vrot.lane.b32.xlu0 %v545, 126
        %v569 = vpop.permute.xlu0 %568
        %vm570 = vcmask 1031168
        %v571 = vsel %vm570, %v555, %v557
        %v572 = vsel %vm570, %v557, %v559
        %v573 = vsel %vm570, %v559, %v561
        %v574 = vsel %vm570, %v561, %v563
        %v575 = vsel %vm570, %v563, %v565
        %v576 = vsel %vm570, %v565, %v567
        %v577 = vsel %vm570, %v567, %v569
        %v586 = vadd.f32 %v526, %v571
        %v587 = vadd.f32 %v527, %v572
        %v588 = vadd.f32 %v528, %v573
        %v589 = vadd.f32 %v529, %v574
        %v590 = vadd.f32 %v530, %v575
        %v591 = vadd.f32 %v531, %v576
        %v592 = vadd.f32 %v532, %v577
        %v593 = vadd.f32 %v533, %v569
        %594 = vset.pattern.permute.xlu0 3
        %595 = vperm.xlu0 %594, %v410
        %v596 = vpop.permute.xlu0 %595
        %v598 = vmul.f32 %v596, %v421
        %v599 = vmul.f32 %v596, %v425
        %v600 = vmul.f32 %v596, %v429
        %v601 = vmul.f32 %v596, %v433
        %v602 = vmul.f32 %v596, %v437
        %v603 = vmul.f32 %v596, %v441
        %v604 = vmul.f32 %v596, %v445
        %v605 = vmul.f32 %v596, %v449
        %614 = vrot.lane.b32.xlu0 %v598, 96
        %v615 = vpop.permute.xlu0 %614
        %616 = vrot.lane.b32.xlu0 %v599, 96
        %v617 = vpop.permute.xlu0 %616
        %618 = vrot.lane.b32.xlu0 %v600, 96
        %v619 = vpop.permute.xlu0 %618
        %620 = vrot.lane.b32.xlu0 %v601, 96
        %v621 = vpop.permute.xlu0 %620
        %622 = vrot.lane.b32.xlu0 %v602, 96
        %v623 = vpop.permute.xlu0 %622
        %624 = vrot.lane.b32.xlu0 %v603, 96
        %v625 = vpop.permute.xlu0 %624
        %626 = vrot.lane.b32.xlu0 %v604, 96
        %v627 = vpop.permute.xlu0 %626
        %628 = vrot.lane.b32.xlu0 %v605, 96
        %v629 = vpop.permute.xlu0 %628
        %vm630 = vcmask 785408
        %v631 = vsel %vm630, %v615, %v617
        %v632 = vsel %vm630, %v617, %v619
        %v633 = vsel %vm630, %v619, %v621
        %v634 = vsel %vm630, %v621, %v623
        %v635 = vsel %vm630, %v623, %v625
        %v636 = vsel %vm630, %v625, %v627
        %v637 = vsel %vm630, %v627, %v629
        %v646 = vadd.f32 %v586, %v631
        %v647 = vadd.f32 %v587, %v632
        %v648 = vadd.f32 %v588, %v633
        %v649 = vadd.f32 %v589, %v634
        %v650 = vadd.f32 %v590, %v635
        %v651 = vadd.f32 %v591, %v636
        %v652 = vadd.f32 %v592, %v637
        %v653 = vadd.f32 %v593, %v629
        %654 = vset.pattern.permute.xlu0 4
        %655 = vperm.xlu0 %654, %v410
        %v656 = vpop.permute.xlu0 %655
        %v658 = vmul.f32 %v656, %v421
        %v659 = vmul.f32 %v656, %v425
        %v660 = vmul.f32 %v656, %v429
        %v661 = vmul.f32 %v656, %v433
        %v662 = vmul.f32 %v656, %v437
        %v663 = vmul.f32 %v656, %v441
        %v664 = vmul.f32 %v656, %v445
        %v665 = vmul.f32 %v656, %v449
        %674 = vrot.lane.b32.xlu0 %v658, 95
        %v675 = vpop.permute.xlu0 %674
        %676 = vrot.lane.b32.xlu0 %v659, 95
        %v677 = vpop.permute.xlu0 %676
        %678 = vrot.lane.b32.xlu0 %v660, 95
        %v679 = vpop.permute.xlu0 %678
        %680 = vrot.lane.b32.xlu0 %v661, 95
        %v681 = vpop.permute.xlu0 %680
        %682 = vrot.lane.b32.xlu0 %v662, 95
        %v683 = vpop.permute.xlu0 %682
        %684 = vrot.lane.b32.xlu0 %v663, 95
        %v685 = vpop.permute.xlu0 %684
        %686 = vrot.lane.b32.xlu0 %v664, 95
        %v687 = vpop.permute.xlu0 %686
        %688 = vrot.lane.b32.xlu0 %v665, 95
        %v689 = vpop.permute.xlu0 %688
        %vm690 = vcmask 777216
        %v691 = vsel %vm690, %v675, %v677
        %v692 = vsel %vm690, %v677, %v679
        %v693 = vsel %vm690, %v679, %v681
        %v694 = vsel %vm690, %v681, %v683
        %v695 = vsel %vm690, %v683, %v685
        %v696 = vsel %vm690, %v685, %v687
        %v697 = vsel %vm690, %v687, %v689
        %v706 = vadd.f32 %v646, %v691
        %v707 = vadd.f32 %v647, %v692
        %v708 = vadd.f32 %v648, %v693
        %v709 = vadd.f32 %v649, %v694
        %v710 = vadd.f32 %v650, %v695
        %v711 = vadd.f32 %v651, %v696
        %v712 = vadd.f32 %v652, %v697
        %v713 = vadd.f32 %v653, %v689
        %714 = vset.pattern.permute.xlu0 5
        %715 = vperm.xlu0 %714, %v410
        %v716 = vpop.permute.xlu0 %715
        %v718 = vmul.f32 %v716, %v421
        %v719 = vmul.f32 %v716, %v425
        %v720 = vmul.f32 %v716, %v429
        %v721 = vmul.f32 %v716, %v433
        %v722 = vmul.f32 %v716, %v437
        %v723 = vmul.f32 %v716, %v441
        %v724 = vmul.f32 %v716, %v445
        %v725 = vmul.f32 %v716, %v449
        %734 = vrot.lane.b32.xlu0 %v718, 94
        %v735 = vpop.permute.xlu0 %734
        %736 = vrot.lane.b32.xlu0 %v719, 94
        %v737 = vpop.permute.xlu0 %736
        %738 = vrot.lane.b32.xlu0 %v720, 94
        %v739 = vpop.permute.xlu0 %738
        %740 = vrot.lane.b32.xlu0 %v721, 94
        %v741 = vpop.permute.xlu0 %740
        %742 = vrot.lane.b32.xlu0 %v722, 94
        %v743 = vpop.permute.xlu0 %742
        %744 = vrot.lane.b32.xlu0 %v723, 94
        %v745 = vpop.permute.xlu0 %744
        %746 = vrot.lane.b32.xlu0 %v724, 94
        %v747 = vpop.permute.xlu0 %746
        %748 = vrot.lane.b32.xlu0 %v725, 94
        %v749 = vpop.permute.xlu0 %748
        %vm750 = vcmask 769024
        %v751 = vsel %vm750, %v735, %v737
        %v752 = vsel %vm750, %v737, %v739
        %v753 = vsel %vm750, %v739, %v741
        %v754 = vsel %vm750, %v741, %v743
        %v755 = vsel %vm750, %v743, %v745
        %v756 = vsel %vm750, %v745, %v747
        %v757 = vsel %vm750, %v747, %v749
        %v766 = vadd.f32 %v706, %v751
        %v767 = vadd.f32 %v707, %v752
        %v768 = vadd.f32 %v708, %v753
        %v769 = vadd.f32 %v709, %v754
        %v770 = vadd.f32 %v710, %v755
        %v771 = vadd.f32 %v711, %v756
        %v772 = vadd.f32 %v712, %v757
        %v773 = vadd.f32 %v713, %v749
        %774 = vset.pattern.permute.xlu0 6
        %775 = vperm.xlu0 %774, %v410
        %v776 = vpop.permute.xlu0 %775
        %v778 = vmul.f32 %v776, %v421
        %v779 = vmul.f32 %v776, %v425
        %v780 = vmul.f32 %v776, %v429
        %v781 = vmul.f32 %v776, %v433
        %v782 = vmul.f32 %v776, %v437
        %v783 = vmul.f32 %v776, %v441
        %v784 = vmul.f32 %v776, %v445
        %v785 = vmul.f32 %v776, %v449
        %794 = vrot.lane.b32.xlu0 %v778, 64
        %v795 = vpop.permute.xlu0 %794
        %796 = vrot.lane.b32.xlu0 %v779, 64
        %v797 = vpop.permute.xlu0 %796
        %798 = vrot.lane.b32.xlu0 %v780, 64
        %v799 = vpop.permute.xlu0 %798
        %800 = vrot.lane.b32.xlu0 %v781, 64
        %v801 = vpop.permute.xlu0 %800
        %802 = vrot.lane.b32.xlu0 %v782, 64
        %v803 = vpop.permute.xlu0 %802
        %804 = vrot.lane.b32.xlu0 %v783, 64
        %v805 = vpop.permute.xlu0 %804
        %806 = vrot.lane.b32.xlu0 %v784, 64
        %v807 = vpop.permute.xlu0 %806
        %808 = vrot.lane.b32.xlu0 %v785, 64
        %v809 = vpop.permute.xlu0 %808
        %vm810 = vcmask 523264
        %v811 = vsel %vm810, %v795, %v797
        %v812 = vsel %vm810, %v797, %v799
        %v813 = vsel %vm810, %v799, %v801
        %v814 = vsel %vm810, %v801, %v803
        %v815 = vsel %vm810, %v803, %v805
        %v816 = vsel %vm810, %v805, %v807
        %v817 = vsel %vm810, %v807, %v809
        %v826 = vadd.f32 %v766, %v811
        %v827 = vadd.f32 %v767, %v812
        %v828 = vadd.f32 %v768, %v813
        %v829 = vadd.f32 %v769, %v814
        %v830 = vadd.f32 %v770, %v815
        %v831 = vadd.f32 %v771, %v816
        %v832 = vadd.f32 %v772, %v817
        %v833 = vadd.f32 %v773, %v809
        %834 = vset.pattern.permute.xlu0 7
        %835 = vperm.xlu0 %834, %v410
        %v836 = vpop.permute.xlu0 %835
        %v838 = vmul.f32 %v836, %v421
        %v839 = vmul.f32 %v836, %v425
        %v840 = vmul.f32 %v836, %v429
        %v841 = vmul.f32 %v836, %v433
        %v842 = vmul.f32 %v836, %v437
        %v843 = vmul.f32 %v836, %v441
        %v844 = vmul.f32 %v836, %v445
        %v845 = vmul.f32 %v836, %v449
        %854 = vrot.lane.b32.xlu0 %v838, 63
        %v855 = vpop.permute.xlu0 %854
        %856 = vrot.lane.b32.xlu0 %v839, 63
        %v857 = vpop.permute.xlu0 %856
        %858 = vrot.lane.b32.xlu0 %v840, 63
        %v859 = vpop.permute.xlu0 %858
        %860 = vrot.lane.b32.xlu0 %v841, 63
        %v861 = vpop.permute.xlu0 %860
        %862 = vrot.lane.b32.xlu0 %v842, 63
        %v863 = vpop.permute.xlu0 %862
        %864 = vrot.lane.b32.xlu0 %v843, 63
        %v865 = vpop.permute.xlu0 %864
        %866 = vrot.lane.b32.xlu0 %v844, 63
        %v867 = vpop.permute.xlu0 %866
        %868 = vrot.lane.b32.xlu0 %v845, 63
        %v869 = vpop.permute.xlu0 %868
        %vm870 = vcmask 515072
        %v871 = vsel %vm870, %v855, %v857
        %v872 = vsel %vm870, %v857, %v859
        %v873 = vsel %vm870, %v859, %v861
        %v874 = vsel %vm870, %v861, %v863
        %v875 = vsel %vm870, %v863, %v865
        %v876 = vsel %vm870, %v865, %v867
        %v877 = vsel %vm870, %v867, %v869
        %v886 = vadd.f32 %v826, %v871
        %v887 = vadd.f32 %v827, %v872
        %v888 = vadd.f32 %v828, %v873
        %v889 = vadd.f32 %v829, %v874
        %v890 = vadd.f32 %v830, %v875
        %v891 = vadd.f32 %v831, %v876
        %v892 = vadd.f32 %v832, %v877
        %v893 = vadd.f32 %v833, %v869
        %894 = vset.pattern.permute.xlu0 8
        %895 = vperm.xlu0 %894, %v410
        %v896 = vpop.permute.xlu0 %895
        %v898 = vmul.f32 %v896, %v421
        %v899 = vmul.f32 %v896, %v425
        %v900 = vmul.f32 %v896, %v429
        %v901 = vmul.f32 %v896, %v433
        %v902 = vmul.f32 %v896, %v437
        %v903 = vmul.f32 %v896, %v441
        %v904 = vmul.f32 %v896, %v445
        %v905 = vmul.f32 %v896, %v449
        %914 = vrot.lane.b32.xlu0 %v898, 62
        %v915 = vpop.permute.xlu0 %914
        %916 = vrot.lane.b32.xlu0 %v899, 62
        %v917 = vpop.permute.xlu0 %916
        %918 = vrot.lane.b32.xlu0 %v900, 62
        %v919 = vpop.permute.xlu0 %918
        %920 = vrot.lane.b32.xlu0 %v901, 62
        %v921 = vpop.permute.xlu0 %920
        %922 = vrot.lane.b32.xlu0 %v902, 62
        %v923 = vpop.permute.xlu0 %922
        %924 = vrot.lane.b32.xlu0 %v903, 62
        %v925 = vpop.permute.xlu0 %924
        %926 = vrot.lane.b32.xlu0 %v904, 62
        %v927 = vpop.permute.xlu0 %926
        %928 = vrot.lane.b32.xlu0 %v905, 62
        %v929 = vpop.permute.xlu0 %928
        %vm930 = vcmask 506880
        %v931 = vsel %vm930, %v915, %v917
        %v932 = vsel %vm930, %v917, %v919
        %v933 = vsel %vm930, %v919, %v921
        %v934 = vsel %vm930, %v921, %v923
        %v935 = vsel %vm930, %v923, %v925
        %v936 = vsel %vm930, %v925, %v927
        %v937 = vsel %vm930, %v927, %v929
        %v946 = vadd.f32 %v886, %v931
        %v947 = vadd.f32 %v887, %v932
        %v948 = vadd.f32 %v888, %v933
        %v949 = vadd.f32 %v889, %v934
        %v950 = vadd.f32 %v890, %v935
        %v951 = vadd.f32 %v891, %v936
        %v952 = vadd.f32 %v892, %v937
        %v953 = vadd.f32 %v893, %v929
        %v954 = vld [vmem:[%s2] sm:$0x3f]
        %956 = vset.pattern.permute.xlu0 0
        %957 = vperm.xlu0 %956, %v954
        %v958 = vpop.permute.xlu0 %957
        %v960 = vadd.f32 %v946, %v958
        %v961 = vadd.f32 %v947, %v958
        %v962 = vadd.f32 %v948, %v958
        %v963 = vadd.f32 %v949, %v958
        %v964 = vadd.f32 %v950, %v958
        %v965 = vadd.f32 %v951, %v958
        %v966 = vadd.f32 %v952, %v958
        %v967 = vadd.f32 %v953, %v958
        %v968 = vmax.f32 %v960, 0.0
        %v969 = vmax.f32 %v961, 0.0
        %v970 = vmax.f32 %v962, 0.0
        %v971 = vmax.f32 %v963, 0.0
        %v972 = vmax.f32 %v964, 0.0
        %v973 = vmax.f32 %v965, 0.0
        %v974 = vmax.f32 %v966, 0.0
        %v975 = vmax.f32 %v967, 0.0
        %976 = vst [vmem:[#allocation2] sm:$0x3f] %v968
        %977 = vst [vmem:[#allocation2 + $0x8] sm:$0x3f] %v969
        %978 = vst [vmem:[#allocation2 + $0x10] sm:$0x3f] %v970
        %979 = vst [vmem:[#allocation2 + $0x18] sm:$0x3f] %v971
        %980 = vst [vmem:[#allocation2 + $0x20] sm:$0x3f] %v972
        %981 = vst [vmem:[#allocation2 + $0x28] sm:$0x3f] %v973
        %982 = vst [vmem:[#allocation2 + $0x30] sm:$0x3f] %v974
        %vm983 = vcmask 504832
        %984 = vst.msk [vmem:[#allocation2 + $0x38] sm:$0x3f] %vm983, %v975
        %v985 = vld [vmem:[#allocation2] sm:$0x3f]
        %v986 = vld [vmem:[#allocation2 + $0x8] sm:$0x3f]
        %v987 = vld [vmem:[#allocation2 + $0x10] sm:$0x3f]
        %v988 = vld [vmem:[#allocation2 + $0x18] sm:$0x3f]
        %v989 = vld [vmem:[#allocation2 + $0x20] sm:$0x3f]
        %v990 = vld [vmem:[#allocation2 + $0x28] sm:$0x3f]
        %v991 = vld [vmem:[#allocation2 + $0x30] sm:$0x3f]
        %v992 = vld [vmem:[#allocation2 + $0x38] sm:$0x3f]
        %1001 = vrot.lane.b32.xlu0 %v985, 127
        %v1002 = vpop.permute.xlu0 %1001
        %1003 = vrot.lane.b32.xlu0 %v986, 127
        %v1004 = vpop.permute.xlu0 %1003
        %1005 = vrot.lane.b32.xlu0 %v987, 127
        %v1006 = vpop.permute.xlu0 %1005
        %1007 = vrot.lane.b32.xlu0 %v988, 127
        %v1008 = vpop.permute.xlu0 %1007
        %1009 = vrot.lane.b32.xlu0 %v989, 127
        %v1010 = vpop.permute.xlu0 %1009
        %1011 = vrot.lane.b32.xlu0 %v990, 127
        %v1012 = vpop.permute.xlu0 %1011
        %1013 = vrot.lane.b32.xlu0 %v991, 127
        %v1014 = vpop.permute.xlu0 %1013
        %1015 = vrot.lane.b32.xlu0 %v992, 127
        %v1016 = vpop.permute.xlu0 %1015
        %v1017 = vsel %vm510, %v1002, %v1004
        %v1018 = vsel %vm510, %v1004, %v1006
        %v1019 = vsel %vm510, %v1006, %v1008
        %v1020 = vsel %vm510, %v1008, %v1010
        %v1021 = vsel %vm510, %v1010, %v1012
        %v1022 = vsel %vm510, %v1012, %v1014
        %v1023 = vsel %vm510, %v1014, %v1016
        %v1032 = vmax.f32 %v985, %v1017
        %v1033 = vmax.f32 %v986, %v1018
        %v1034 = vmax.f32 %v987, %v1019
        %v1035 = vmax.f32 %v988, %v1020
        %v1036 = vmax.f32 %v989, %v1021
        %v1037 = vmax.f32 %v990, %v1022
        %v1038 = vmax.f32 %v991, %v1023
        %v1039 = vmax.f32 %v992, %v1016
        %1048 = vrot.lane.b32.xlu0 %v1032, 96
        %v1049 = vpop.permute.xlu0 %1048
        %1050 = vrot.lane.b32.xlu0 %v1033, 96
        %v1051 = vpop.permute.xlu0 %1050
        %1052 = vrot.lane.b32.xlu0 %v1034, 96
        %v1053 = vpop.permute.xlu0 %1052
        %1054 = vrot.lane.b32.xlu0 %v1035, 96
        %v1055 = vpop.permute.xlu0 %1054
        %1056 = vrot.lane.b32.xlu0 %v1036, 96
        %v1057 = vpop.permute.xlu0 %1056
        %1058 = vrot.lane.b32.xlu0 %v1037, 96
        %v1059 = vpop.permute.xlu0 %1058
        %1060 = vrot.lane.b32.xlu0 %v1038, 96
        %v1061 = vpop.permute.xlu0 %1060
        %1062 = vrot.lane.b32.xlu0 %v1039, 96
        %v1063 = vpop.permute.xlu0 %1062
        %v1064 = vsel %vm630, %v1049, %v1051
        %v1065 = vsel %vm630, %v1051, %v1053
        %v1066 = vsel %vm630, %v1053, %v1055
        %v1067 = vsel %vm630, %v1055, %v1057
        %v1068 = vsel %vm630, %v1057, %v1059
        %v1069 = vsel %vm630, %v1059, %v1061
        %v1070 = vsel %vm630, %v1061, %v1063
        %v1079 = vmax.f32 %v1032, %v1064
        %v1080 = vmax.f32 %v1033, %v1065
        %v1081 = vmax.f32 %v1034, %v1066
        %v1082 = vmax.f32 %v1035, %v1067
        %v1083 = vmax.f32 %v1036, %v1068
        %v1084 = vmax.f32 %v1037, %v1069
        %v1085 = vmax.f32 %v1038, %v1070
        %v1086 = vmax.f32 %v1039, %v1063
        %1087 = vst [vmem:[#allocation3] sm:$0x3f] %v1079
        %1088 = vst [vmem:[#allocation3 + $0x8] sm:$0x3f] %v1080
        %1089 = vst [vmem:[#allocation3 + $0x10] sm:$0x3f] %v1081
        %1090 = vst [vmem:[#allocation3 + $0x18] sm:$0x3f] %v1082
        %1091 = vst [vmem:[#allocation3 + $0x20] sm:$0x3f] %v1083
        %1092 = vst [vmem:[#allocation3 + $0x28] sm:$0x3f] %v1084
        %1093 = vst [vmem:[#allocation3 + $0x30] sm:$0x3f] %v1085
        %vm1094 = vcmask 234496
        %1095 = vst.msk [vmem:[#allocation3 + $0x38] sm:$0x3f] %vm1094, %v1086
        %1096 = vst [vmem:[#allocation3] sm:$0xc0] 0.0
        %1097 = vst [vmem:[#allocation3 + $0x8] sm:$0xc0] 0.0
        %1098 = vst [vmem:[#allocation3 + $0x10] sm:$0xc0] 0.0
        %1099 = vst [vmem:[#allocation3 + $0x18] sm:$0xc0] 0.0
        %1100 = vst [vmem:[#allocation3 + $0x20] sm:$0xc0] 0.0
        %1101 = vst [vmem:[#allocation3 + $0x28] sm:$0xc0] 0.0
        %1102 = vst [vmem:[#allocation3 + $0x30] sm:$0xc0] 0.0
        %vm1103 = vcmask 236550
        %1104 = vst.msk [vmem:[#allocation3 + $0x38] sm:$0xc0] %vm1103, 0.0
        %v1105 = vld [vmem:[#allocation3] sm:$0xff]
        %v1106 = vld [vmem:[#allocation3 + $0x8] sm:$0xff]
        %v1107 = vld [vmem:[#allocation3 + $0x10] sm:$0xff]
        %v1108 = vld [vmem:[#allocation3 + $0x18] sm:$0xff]
        %v1109 = vld [vmem:[#allocation3 + $0x20] sm:$0xff]
        %v1110 = vld [vmem:[#allocation3 + $0x28] sm:$0xff]
        %v1111 = vld [vmem:[#allocation3 + $0x30] sm:$0xff]
        %1112 = vst [vmem:[#allocation4] sm:$0xff] %v1105
        %1113 = vst [vmem:[#allocation4 + $0x8] sm:$0xff] %v1106
        %1114 = vst [vmem:[#allocation4 + $0x10] sm:$0xff] %v1107
        %1115 = vst [vmem:[#allocation4 + $0x18] sm:$0xff] %v1108
        %1116 = vst [vmem:[#allocation4 + $0x20] sm:$0xff] %v1109
        %1117 = vst [vmem:[#allocation4 + $0x28] sm:$0xff] %v1110
        %vm1118 = vcmask 203776
        %1119 = vst.msk [vmem:[#allocation4 + $0x30] sm:$0xff] %vm1118, %v1111
        %v1120 = vld [vmem:[#allocation3] sm:$0xff]
        %v1121 = vld [vmem:[#allocation3 + $0x8] sm:$0xff]
        %v1122 = vld [vmem:[#allocation3 + $0x10] sm:$0xff]
        %v1123 = vld [vmem:[#allocation3 + $0x18] sm:$0xff]
        %v1124 = vld [vmem:[#allocation3 + $0x20] sm:$0xff]
        %v1125 = vld [vmem:[#allocation3 + $0x28] sm:$0xff]
        %v1126 = vld [vmem:[#allocation3 + $0x30] sm:$0xff]
        %1134 = vrot.lane.b32.xlu0 %v1120, 126
        %v1135 = vpop.permute.xlu0 %1134
        %1136 = vrot.lane.b32.xlu0 %v1121, 126
        %v1137 = vpop.permute.xlu0 %1136
        %1138 = vrot.lane.b32.xlu0 %v1122, 126
        %v1139 = vpop.permute.xlu0 %1138
        %1140 = vrot.lane.b32.xlu0 %v1123, 126
        %v1141 = vpop.permute.xlu0 %1140
        %1142 = vrot.lane.b32.xlu0 %v1124, 126
        %v1143 = vpop.permute.xlu0 %1142
        %1144 = vrot.lane.b32.xlu0 %v1125, 126
        %v1145 = vpop.permute.xlu0 %1144
        %1146 = vrot.lane.b32.xlu0 %v1126, 126
        %v1147 = vpop.permute.xlu0 %1146
        %v1148 = vsel %vm570, %v1135, %v1137
        %v1149 = vsel %vm570, %v1137, %v1139
        %v1150 = vsel %vm570, %v1139, %v1141
        %v1151 = vsel %vm570, %v1141, %v1143
        %v1152 = vsel %vm570, %v1143, %v1145
        %v1153 = vsel %vm570, %v1145, %v1147
        %1161 = vst [vmem:[#allocation4 + $0x38] sm:$0xff] %v1148
        %1162 = vst [vmem:[#allocation4 + $0x40] sm:$0xff] %v1149
        %1163 = vst [vmem:[#allocation4 + $0x48] sm:$0xff] %v1150
        %1164 = vst [vmem:[#allocation4 + $0x50] sm:$0xff] %v1151
        %1165 = vst [vmem:[#allocation4 + $0x58] sm:$0xff] %v1152
        %1166 = vst [vmem:[#allocation4 + $0x60] sm:$0xff] %v1153
        %1167 = vst.msk [vmem:[#allocation4 + $0x68] sm:$0xff] %vm1118, %v1147
        %v1168 = vld [vmem:[#allocation3] sm:$0xff]
        %v1169 = vld [vmem:[#allocation3 + $0x8] sm:$0xff]
        %v1170 = vld [vmem:[#allocation3 + $0x10] sm:$0xff]
        %v1171 = vld [vmem:[#allocation3 + $0x18] sm:$0xff]
        %v1172 = vld [vmem:[#allocation3 + $0x20] sm:$0xff]
        %v1173 = vld [vmem:[#allocation3 + $0x28] sm:$0xff]
        %v1174 = vld [vmem:[#allocation3 + $0x30] sm:$0xff]
        %1182 = vrot.lane.b32.xlu0 %v1168, 124
        %v1183 = vpop.permute.xlu0 %1182
        %1184 = vrot.lane.b32.xlu0 %v1169, 124
        %v1185 = vpop.permute.xlu0 %1184
        %1186 = vrot.lane.b32.xlu0 %v1170, 124
        %v1187 = vpop.permute.xlu0 %1186
        %1188 = vrot.lane.b32.xlu0 %v1171, 124
        %v1189 = vpop.permute.xlu0 %1188
        %1190 = vrot.lane.b32.xlu0 %v1172, 124
        %v1191 = vpop.permute.xlu0 %1190
        %1192 = vrot.lane.b32.xlu0 %v1173, 124
        %v1193 = vpop.permute.xlu0 %1192
        %1194 = vrot.lane.b32.xlu0 %v1174, 124
        %v1195 = vpop.permute.xlu0 %1194
        %vm1196 = vcmask 1014784
        %v1197 = vsel %vm1196, %v1183, %v1185
        %v1198 = vsel %vm1196, %v1185, %v1187
        %v1199 = vsel %vm1196, %v1187, %v1189
        %v1200 = vsel %vm1196, %v1189, %v1191
        %v1201 = vsel %vm1196, %v1191, %v1193
        %v1202 = vsel %vm1196, %v1193, %v1195
        %1210 = vst [vmem:[#allocation4 + $0x70] sm:$0xff] %v1197
        %1211 = vst [vmem:[#allocation4 + $0x78] sm:$0xff] %v1198
        %1212 = vst [vmem:[#allocation4 + $0x80] sm:$0xff] %v1199
        %1213 = vst [vmem:[#allocation4 + $0x88] sm:$0xff] %v1200
        %1214 = vst [vmem:[#allocation4 + $0x90] sm:$0xff] %v1201
        %1215 = vst [vmem:[#allocation4 + $0x98] sm:$0xff] %v1202
        %1216 = vst.msk [vmem:[#allocation4 + $0xa0] sm:$0xff] %vm1118, %v1195
        %v1217 = vld [vmem:[#allocation3] sm:$0xff]
        %v1218 = vld [vmem:[#allocation3 + $0x8] sm:$0xff]
        %v1219 = vld [vmem:[#allocation3 + $0x10] sm:$0xff]
        %v1220 = vld [vmem:[#allocation3 + $0x18] sm:$0xff]
        %v1221 = vld [vmem:[#allocation3 + $0x20] sm:$0xff]
        %v1222 = vld [vmem:[#allocation3 + $0x28] sm:$0xff]
        %v1223 = vld [vmem:[#allocation3 + $0x30] sm:$0xff]
        %1231 = vrot.lane.b32.xlu0 %v1217, 64
        %v1232 = vpop.permute.xlu0 %1231
        %1233 = vrot.lane.b32.xlu0 %v1218, 64
        %v1234 = vpop.permute.xlu0 %1233
        %1235 = vrot.lane.b32.xlu0 %v1219, 64
        %v1236 = vpop.permute.xlu0 %1235
        %1237 = vrot.lane.b32.xlu0 %v1220, 64
        %v1238 = vpop.permute.xlu0 %1237
        %1239 = vrot.lane.b32.xlu0 %v1221, 64
        %v1240 = vpop.permute.xlu0 %1239
        %1241 = vrot.lane.b32.xlu0 %v1222, 64
        %v1242 = vpop.permute.xlu0 %1241
        %1243 = vrot.lane.b32.xlu0 %v1223, 64
        %v1244 = vpop.permute.xlu0 %1243
        %v1245 = vsel %vm810, %v1232, %v1234
        %v1246 = vsel %vm810, %v1234, %v1236
        %v1247 = vsel %vm810, %v1236, %v1238
        %v1248 = vsel %vm810, %v1238, %v1240
        %v1249 = vsel %vm810, %v1240, %v1242
        %v1250 = vsel %vm810, %v1242, %v1244
        %1258 = vst [vmem:[#allocation4 + $0xa8] sm:$0xff] %v1245
        %1259 = vst [vmem:[#allocation4 + $0xb0] sm:$0xff] %v1246
        %1260 = vst [vmem:[#allocation4 + $0xb8] sm:$0xff] %v1247
        %1261 = vst [vmem:[#allocation4 + $0xc0] sm:$0xff] %v1248
        %1262 = vst [vmem:[#allocation4 + $0xc8] sm:$0xff] %v1249
        %1263 = vst [vmem:[#allocation4 + $0xd0] sm:$0xff] %v1250
        %1264 = vst.msk [vmem:[#allocation4 + $0xd8] sm:$0xff] %vm1118, %v1244
        %v1265 = vld [vmem:[#allocation3] sm:$0xff]
        %v1266 = vld [vmem:[#allocation3 + $0x8] sm:$0xff]
        %v1267 = vld [vmem:[#allocation3 + $0x10] sm:$0xff]
        %v1268 = vld [vmem:[#allocation3 + $0x18] sm:$0xff]
        %v1269 = vld [vmem:[#allocation3 + $0x20] sm:$0xff]
        %v1270 = vld [vmem:[#allocation3 + $0x28] sm:$0xff]
        %v1271 = vld [vmem:[#allocation3 + $0x30] sm:$0xff]
        %1279 = vrot.lane.b32.xlu0 %v1265, 62
        %v1280 = vpop.permute.xlu0 %1279
        %1281 = vrot.lane.b32.xlu0 %v1266, 62
        %v1282 = vpop.permute.xlu0 %1281
        %1283 = vrot.lane.b32.xlu0 %v1267, 62
        %v1284 = vpop.permute.xlu0 %1283
        %1285 = vrot.lane.b32.xlu0 %v1268, 62
        %v1286 = vpop.permute.xlu0 %1285
        %1287 = vrot.lane.b32.xlu0 %v1269, 62
        %v1288 = vpop.permute.xlu0 %1287
        %1289 = vrot.lane.b32.xlu0 %v1270, 62
        %v1290 = vpop.permute.xlu0 %1289
        %1291 = vrot.lane.b32.xlu0 %v1271, 62
        %v1292 = vpop.permute.xlu0 %1291
        %v1293 = vsel %vm930, %v1280, %v1282
        %v1294 = vsel %vm930, %v1282, %v1284
        %v1295 = vsel %vm930, %v1284, %v1286
        %v1296 = vsel %vm930, %v1286, %v1288
        %v1297 = vsel %vm930, %v1288, %v1290
        %v1298 = vsel %vm930, %v1290, %v1292
        %1306 = vst [vmem:[#allocation4 + $0xe0] sm:$0xff] %v1293
        %1307 = vst [vmem:[#allocation4 + $0xe8] sm:$0xff] %v1294
        %1308 = vst [vmem:[#allocation4 + $0xf0] sm:$0xff] %v1295
        %1309 = vst [vmem:[#allocation4 + $0xf8] sm:$0xff] %v1296
        %1310 = vst [vmem:[#allocation4 + $0x100] sm:$0xff] %v1297
        %1311 = vst [vmem:[#allocation4 + $0x108] sm:$0xff] %v1298
        %1312 = vst.msk [vmem:[#allocation4 + $0x110] sm:$0xff] %vm1118, %v1292
        %v1313 = vld [vmem:[#allocation3] sm:$0xff]
        %v1314 = vld [vmem:[#allocation3 + $0x8] sm:$0xff]
        %v1315 = vld [vmem:[#allocation3 + $0x10] sm:$0xff]
        %v1316 = vld [vmem:[#allocation3 + $0x18] sm:$0xff]
        %v1317 = vld [vmem:[#allocation3 + $0x20] sm:$0xff]
        %v1318 = vld [vmem:[#allocation3 + $0x28] sm:$0xff]
        %v1319 = vld [vmem:[#allocation3 + $0x30] sm:$0xff]
        %1327 = vrot.lane.b32.xlu0 %v1313, 60
        %v1328 = vpop.permute.xlu0 %1327
        %1329 = vrot.lane.b32.xlu0 %v1314, 60
        %v1330 = vpop.permute.xlu0 %1329
        %1331 = vrot.lane.b32.xlu0 %v1315, 60
        %v1332 = vpop.permute.xlu0 %1331
        %1333 = vrot.lane.b32.xlu0 %v1316, 60
        %v1334 = vpop.permute.xlu0 %1333
        %1335 = vrot.lane.b32.xlu0 %v1317, 60
        %v1336 = vpop.permute.xlu0 %1335
        %1337 = vrot.lane.b32.xlu0 %v1318, 60
        %v1338 = vpop.permute.xlu0 %1337
        %1339 = vrot.lane.b32.xlu0 %v1319, 60
        %v1340 = vpop.permute.xlu0 %1339
        %vm1341 = vcmask 490496
        %v1342 = vsel %vm1341, %v1328, %v1330
        %v1343 = vsel %vm1341, %v1330, %v1332
        %v1344 = vsel %vm1341, %v1332, %v1334
        %v1345 = vsel %vm1341, %v1334, %v1336
        %v1346 = vsel %vm1341, %v1336, %v1338
        %v1347 = vsel %vm1341, %v1338, %v1340
        %1355 = vst [vmem:[#allocation4 + $0x118] sm:$0xff] %v1342
        %1356 = vst [vmem:[#allocation4 + $0x120] sm:$0xff] %v1343
        %1357 = vst [vmem:[#allocation4 + $0x128] sm:$0xff] %v1344
        %1358 = vst [vmem:[#allocation4 + $0x130] sm:$0xff] %v1345
        %1359 = vst [vmem:[#allocation4 + $0x138] sm:$0xff] %v1346
        %1360 = vst [vmem:[#allocation4 + $0x140] sm:$0xff] %v1347
        %1361 = vst.msk [vmem:[#allocation4 + $0x148] sm:$0xff] %vm1118, %v1340
        %v1362 = vld [vmem:[#allocation3 + $0x8] sm:$0xff]
        %v1363 = vld [vmem:[#allocation3 + $0x10] sm:$0xff]
        %v1364 = vld [vmem:[#allocation3 + $0x18] sm:$0xff]
        %v1365 = vld [vmem:[#allocation3 + $0x20] sm:$0xff]
        %v1366 = vld [vmem:[#allocation3 + $0x28] sm:$0xff]
        %v1367 = vld [vmem:[#allocation3 + $0x30] sm:$0xff]
        %v1368 = vld [vmem:[#allocation3 + $0x38] sm:$0xff]
        %1369 = vst [vmem:[#allocation4 + $0x150] sm:$0xff] %v1362
        %1370 = vst [vmem:[#allocation4 + $0x158] sm:$0xff] %v1363
        %1371 = vst [vmem:[#allocation4 + $0x160] sm:$0xff] %v1364
        %1372 = vst [vmem:[#allocation4 + $0x168] sm:$0xff] %v1365
        %1373 = vst [vmem:[#allocation4 + $0x170] sm:$0xff] %v1366
        %1374 = vst [vmem:[#allocation4 + $0x178] sm:$0xff] %v1367
        %1375 = vst.msk [vmem:[#allocation4 + $0x180] sm:$0xff] %vm1118, %v1368
        %v1376 = vld [vmem:[#allocation3 + $0x8] sm:$0xff]
        %v1377 = vld [vmem:[#allocation3 + $0x10] sm:$0xff]
        %v1378 = vld [vmem:[#allocation3 + $0x18] sm:$0xff]
        %v1379 = vld [vmem:[#allocation3 + $0x20] sm:$0xff]
        %v1380 = vld [vmem:[#allocation3 + $0x28] sm:$0xff]
        %v1381 = vld [vmem:[#allocation3 + $0x30] sm:$0xff]
        %v1382 = vld [vmem:[#allocation3 + $0x38] sm:$0xff]
        %1390 = vrot.lane.b32.xlu0 %v1376, 126
        %v1391 = vpop.permute.xlu0 %1390
        %1392 = vrot.lane.b32.xlu0 %v1377, 126
        %v1393 = vpop.permute.xlu0 %1392
        %1394 = vrot.lane.b32.xlu0 %v1378, 126
        %v1395 = vpop.permute.xlu0 %1394
        %1396 = vrot.lane.b32.xlu0 %v1379, 126
        %v1397 = vpop.permute.xlu0 %1396
        %1398 = vrot.lane.b32.xlu0 %v1380, 126
        %v1399 = vpop.permute.xlu0 %1398
        %1400 = vrot.lane.b32.xlu0 %v1381, 126
        %v1401 = vpop.permute.xlu0 %1400
        %1402 = vrot.lane.b32.xlu0 %v1382, 126
        %v1403 = vpop.permute.xlu0 %1402
        %v1404 = vsel %vm570, %v1391, %v1393
        %v1405 = vsel %vm570, %v1393, %v1395
        %v1406 = vsel %vm570, %v1395, %v1397
        %v1407 = vsel %vm570, %v1397, %v1399
        %v1408 = vsel %vm570, %v1399, %v1401
        %v1409 = vsel %vm570, %v1401, %v1403
        %1417 = vst [vmem:[#allocation4 + $0x188] sm:$0xff] %v1404
        %1418 = vst [vmem:[#allocation4 + $0x190] sm:$0xff] %v1405
        %1419 = vst [vmem:[#allocation4 + $0x198] sm:$0xff] %v1406
        %1420 = vst [vmem:[#allocation4 + $0x1a0] sm:$0xff] %v1407
        %1421 = vst [vmem:[#allocation4 + $0x1a8] sm:$0xff] %v1408
        %1422 = vst [vmem:[#allocation4 + $0x1b0] sm:$0xff] %v1409
        %1423 = vst.msk [vmem:[#allocation4 + $0x1b8] sm:$0xff] %vm1118, %v1403
        %v1424 = vld [vmem:[#allocation3 + $0x8] sm:$0xff]
        %v1425 = vld [vmem:[#allocation3 + $0x10] sm:$0xff]
        %v1426 = vld [vmem:[#allocation3 + $0x18] sm:$0xff]
        %v1427 = vld [vmem:[#allocation3 + $0x20] sm:$0xff]
        %v1428 = vld [vmem:[#allocation3 + $0x28] sm:$0xff]
        %v1429 = vld [vmem:[#allocation3 + $0x30] sm:$0xff]
        %v1430 = vld [vmem:[#allocation3 + $0x38] sm:$0xff]
        %1438 = vrot.lane.b32.xlu0 %v1424, 124
        %v1439 = vpop.permute.xlu0 %1438
        %1440 = vrot.lane.b32.xlu0 %v1425, 124
        %v1441 = vpop.permute.xlu0 %1440
        %1442 = vrot.lane.b32.xlu0 %v1426, 124
        %v1443 = vpop.permute.xlu0 %1442
        %1444 = vrot.lane.b32.xlu0 %v1427, 124
        %v1445 = vpop.permute.xlu0 %1444
        %1446 = vrot.lane.b32.xlu0 %v1428, 124
        %v1447 = vpop.permute.xlu0 %1446
        %1448 = vrot.lane.b32.xlu0 %v1429, 124
        %v1449 = vpop.permute.xlu0 %1448
        %1450 = vrot.lane.b32.xlu0 %v1430, 124
        %v1451 = vpop.permute.xlu0 %1450
        %v1452 = vsel %vm1196, %v1439, %v1441
        %v1453 = vsel %vm1196, %v1441, %v1443
        %v1454 = vsel %vm1196, %v1443, %v1445
        %v1455 = vsel %vm1196, %v1445, %v1447
        %v1456 = vsel %vm1196, %v1447, %v1449
        %v1457 = vsel %vm1196, %v1449, %v1451
        %1465 = vst [vmem:[#allocation4 + $0x1c0] sm:$0xff] %v1452
        %1466 = vst [vmem:[#allocation4 + $0x1c8] sm:$0xff] %v1453
        %1467 = vst [vmem:[#allocation4 + $0x1d0] sm:$0xff] %v1454
        %1468 = vst [vmem:[#allocation4 + $0x1d8] sm:$0xff] %v1455
        %1469 = vst [vmem:[#allocation4 + $0x1e0] sm:$0xff] %v1456
        %1470 = vst [vmem:[#allocation4 + $0x1e8] sm:$0xff] %v1457
        %1471 = vst.msk [vmem:[#allocation4 + $0x1f0] sm:$0xff] %vm1118, %v1451
        %v1472 = vld [vmem:[%s3] sm:$0xff]
        %v1473 = vld [vmem:[%s3 + $0x8] sm:$0xff]
        %v1474 = vld [vmem:[#allocation4] sm:$0xff]
        %v1475 = vld [vmem:[#allocation4 + $0x8] sm:$0xff]
        %v1476 = vld [vmem:[#allocation4 + $0x10] sm:$0xff]
        %v1477 = vld [vmem:[#allocation4 + $0x18] sm:$0xff]
        %v1478 = vld [vmem:[#allocation4 + $0x20] sm:$0xff]
        %v1479 = vld [vmem:[#allocation4 + $0x28] sm:$0xff]
        %v1480 = vld [vmem:[#allocation4 + $0x30] sm:$0xff]
        %v1481 = vld [vmem:[#allocation4 + $0x38] sm:$0xff]
        %v1482 = vld [vmem:[#allocation4 + $0x40] sm:$0xff]
        %v1483 = vld [vmem:[#allocation4 + $0x48] sm:$0xff]
        %v1484 = vld [vmem:[#allocation4 + $0x50] sm:$0xff]
        %v1485 = vld [vmem:[#allocation4 + $0x58] sm:$0xff]
        %v1486 = vld [vmem:[#allocation4 + $0x60] sm:$0xff]
        %v1487 = vld [vmem:[#allocation4 + $0x68] sm:$0xff]
        %v1488 = vld [vmem:[#allocation4 + $0x70] sm:$0xff]
        %v1489 = vld [vmem:[#allocation4 + $0x78] sm:$0xff]
        %v1490 = vld [vmem:[#allocation4 + $0x80] sm:$0xff]
        %v1491 = vld [vmem:[#allocation4 + $0x88] sm:$0xff]
        %v1492 = vld [vmem:[#allocation4 + $0x90] sm:$0xff]
        %v1493 = vld [vmem:[#allocation4 + $0x98] sm:$0xff]
        %v1494 = vld [vmem:[#allocation4 + $0xa0] sm:$0xff]
        %v1495 = vld [vmem:[#allocation4 + $0xa8] sm:$0xff]
        %v1496 = vld [vmem:[#allocation4 + $0xb0] sm:$0xff]
        %v1497 = vld [vmem:[#allocation4 + $0xb8] sm:$0xff]
        %v1498 = vld [vmem:[#allocation4 + $0xc0] sm:$0xff]
        %v1499 = vld [vmem:[#allocation4 + $0xc8] sm:$0xff]
        %v1500 = vld [vmem:[#allocation4 + $0xd0] sm:$0xff]
        %v1501 = vld [vmem:[#allocation4 + $0xd8] sm:$0xff]
        %v1502 = vld [vmem:[#allocation4 + $0xe0] sm:$0xff]
        %v1503 = vld [vmem:[#allocation4 + $0xe8] sm:$0xff]
        %v1504 = vld [vmem:[#allocation4 + $0xf0] sm:$0xff]
        %v1505 = vld [vmem:[#allocation4 + $0xf8] sm:$0xff]
        %v1506 = vld [vmem:[#allocation4 + $0x100] sm:$0xff]
        %v1507 = vld [vmem:[#allocation4 + $0x108] sm:$0xff]
        %v1508 = vld [vmem:[#allocation4 + $0x110] sm:$0xff]
        %v1509 = vld [vmem:[#allocation4 + $0x118] sm:$0xff]
        %v1510 = vld [vmem:[#allocation4 + $0x120] sm:$0xff]
        %v1511 = vld [vmem:[#allocation4 + $0x128] sm:$0xff]
        %v1512 = vld [vmem:[#allocation4 + $0x130] sm:$0xff]
        %v1513 = vld [vmem:[#allocation4 + $0x138] sm:$0xff]
        %v1514 = vld [vmem:[#allocation4 + $0x140] sm:$0xff]
        %v1515 = vld [vmem:[#allocation4 + $0x148] sm:$0xff]
        %v1516 = vld [vmem:[#allocation4 + $0x150] sm:$0xff]
        %v1517 = vld [vmem:[#allocation4 + $0x158] sm:$0xff]
        %v1518 = vld [vmem:[#allocation4 + $0x160] sm:$0xff]
        %v1519 = vld [vmem:[#allocation4 + $0x168] sm:$0xff]
        %v1520 = vld [vmem:[#allocation4 + $0x170] sm:$0xff]
        %v1521 = vld [vmem:[#allocation4 + $0x178] sm:$0xff]
        %v1522 = vld [vmem:[#allocation4 + $0x180] sm:$0xff]
        %v1523 = vld [vmem:[#allocation4 + $0x188] sm:$0xff]
        %v1524 = vld [vmem:[#allocation4 + $0x190] sm:$0xff]
        %v1525 = vld [vmem:[#allocation4 + $0x198] sm:$0xff]
        %v1526 = vld [vmem:[#allocation4 + $0x1a0] sm:$0xff]
        %v1527 = vld [vmem:[#allocation4 + $0x1a8] sm:$0xff]
        %v1528 = vld [vmem:[#allocation4 + $0x1b0] sm:$0xff]
        %v1529 = vld [vmem:[#allocation4 + $0x1b8] sm:$0xff]
        %v1530 = vld [vmem:[#allocation4 + $0x1c0] sm:$0xff]
        %v1531 = vld [vmem:[#allocation4 + $0x1c8] sm:$0xff]
        %v1532 = vld [vmem:[#allocation4 + $0x1d0] sm:$0xff]
        %v1533 = vld [vmem:[#allocation4 + $0x1d8] sm:$0xff]
        %v1534 = vld [vmem:[#allocation4 + $0x1e0] sm:$0xff]
        %v1535 = vld [vmem:[#allocation4 + $0x1e8] sm:$0xff]
        %v1536 = vld [vmem:[#allocation4 + $0x1f0] sm:$0xff]
        %v1537 = vld [vmem:[%s4] sm:$0xff]
        %v1538 = vld [vmem:[%s4 + $0x8] sm:$0xff]
        %1540 = vset.pattern.permute.xlu0 0
        %1541 = vperm.xlu0 %1540, %v1537
        %v1542 = vpop.permute.xlu0 %1541
        %1545 = vset.pattern.permute.xlu0 0
        %1546 = vperm.xlu0 %1545, %v1538
        %v1547 = vpop.permute.xlu0 %1546
        %vm1549 = vcmask 588800
        %v1551 = vsel %vm1549, %v1472, 0
        %v1554 = vsel %vm1549, %v1473, 0
        %1556 = vmatprep.subr.mxu0 0.0
        %1557 = vmatpush1.msra.mxu0 0.0
        %1558 = vmatprep.subr.mxu0 0.0
        %1559 = vmatpush1.msra.mxu0 0.0
        %1560 = vmatprep.subr.mxu0 0.0
        %1561 = vmatpush1.msra.mxu0 0.0
        %1562 = vmatprep.subr.mxu0 0.0
        %1563 = vmatpush1.msra.mxu0 0.0
        %1564 = vmatprep.subr.mxu0 0.0
        %1565 = vmatpush1.msra.mxu0 0.0
        %1566 = vmatprep.subr.mxu0 0.0
        %1567 = vmatpush1.msra.mxu0 0.0
        %1568 = vmatprep.subr.mxu0 0.0
        %1569 = vmatpush1.msra.mxu0 0.0
        %1570 = vmatprep.subr.mxu0 %v1531
        %1571 = vmatpush1.msra.mxu0 %v1530
        %1572 = vmatprep.subr.mxu0 %v1524
        %1573 = vmatpush1.msra.mxu0 %v1523
        %1574 = vmatprep.subr.mxu0 %v1517
        %1575 = vmatpush1.msra.mxu0 %v1516
        %1576 = vmatprep.subr.mxu0 %v1510
        %1577 = vmatpush1.msra.mxu0 %v1509
        %1578 = vmatprep.subr.mxu0 %v1503
        %1579 = vmatpush1.msra.mxu0 %v1502
        %1580 = vmatprep.subr.mxu0 %v1496
        %1581 = vmatpush1.msra.mxu0 %v1495
        %1582 = vmatprep.subr.mxu0 %v1489
        %1583 = vmatpush1.msra.mxu0 %v1488
        %1584 = vmatprep.subr.mxu0 %v1482
        %1585 = vmatpush1.msra.mxu0 %v1481
        %1586 = vmatprep.subr.mxu0 %v1475
        %1587 = vmatpush1.msra.mxu0 %v1474
        %1588 = vmatprep.subr.mxu0 0.0
        %1589 = vmatpush2.msra.mxu0 0.0
        %1590 = vmatprep.subr.mxu0 0.0
        %1591 = vmatpush2.msra.mxu0 0.0
        %1592 = vmatprep.subr.mxu0 0.0
        %1593 = vmatpush2.msra.mxu0 0.0
        %1594 = vmatprep.subr.mxu0 0.0
        %1595 = vmatpush2.msra.mxu0 0.0
        %1596 = vmatprep.subr.mxu0 0.0
        %1597 = vmatpush2.msra.mxu0 0.0
        %1598 = vmatprep.subr.mxu0 0.0
        %1599 = vmatpush2.msra.mxu0 0.0
        %1600 = vmatprep.subr.mxu0 0.0
        %1601 = vmatpush2.msra.mxu0 0.0
        %1602 = vmatprep.subr.mxu0 0.0
        %1603 = vmatpush2.msra.mxu0 0.0
        %1604 = vmatprep.subr.mxu0 0.0
        %1605 = vmatpush2.msra.mxu0 0.0
        %1606 = vmatprep.subr.mxu0 0.0
        %1607 = vmatpush2.msra.mxu0 0.0
        %1608 = vmatprep.subr.mxu0 0.0
        %1609 = vmatpush2.msra.mxu0 0.0
        %1610 = vmatprep.subr.mxu0 0.0
        %1611 = vmatpush2.msra.mxu0 0.0
        %1612 = vmatprep.subr.mxu0 0.0
        %1613 = vmatpush2.msra.mxu0 0.0
        %1614 = vmatprep.subr.mxu0 0.0
        %1615 = vmatpush2.msra.mxu0 0.0
        %1616 = vmatprep.subr.mxu0 0.0
        %1617 = vmatpush2.msra.mxu0 0.0
        %1618 = vmatprep.subr.mxu0 0.0
        %1619 = vmatpush2.msra.mxu0 0.0
        %1620 = vmatprep.mubr.f32.mxu0 0.0
        %1621 = vmatmul.mubr.f32.gmra.mxu0 %v1551
        %v1622 = vpop.f32.mrf.mxu0
        %v1623 = vadd.f32 %v1542, %v1622
        %v1624 = vpop.f32.mrf.mxu0
        %v1625 = vadd.f32 %v1542, %v1624
        %1626 = vmatprep.mubr.f32.mxu0 0.0
        %1627 = vmatmul.mubr.f32.gmra.mxu0 %v1554
        %v1628 = vpop.f32.mrf.mxu0
        %v1629 = vadd.f32 %v1547, %v1628
        %v1630 = vpop.f32.mrf.mxu0
        %v1631 = vadd.f32 %v1547, %v1630
        %1632 = vdwg.mxu0
        %1633 = vmatprep.subr.mxu0 0.0
        %1634 = vmatpush1.msra.mxu0 0.0
        %1635 = vmatprep.subr.mxu0 0.0
        %1636 = vmatpush1.msra.mxu0 0.0
        %1637 = vmatprep.subr.mxu0 0.0
        %1638 = vmatpush1.msra.mxu0 0.0
        %1639 = vmatprep.subr.mxu0 0.0
        %1640 = vmatpush1.msra.mxu0 0.0
        %1641 = vmatprep.subr.mxu0 0.0
        %1642 = vmatpush1.msra.mxu0 0.0
        %1643 = vmatprep.subr.mxu0 0.0
        %1644 = vmatpush1.msra.mxu0 0.0
        %1645 = vmatprep.subr.mxu0 0.0
        %1646 = vmatpush1.msra.mxu0 0.0
        %1647 = vmatprep.subr.mxu0 %v1533
        %1648 = vmatpush1.msra.mxu0 %v1532
        %1649 = vmatprep.subr.mxu0 %v1526
        %1650 = vmatpush1.msra.mxu0 %v1525
        %1651 = vmatprep.subr.mxu0 %v1519
        %1652 = vmatpush1.msra.mxu0 %v1518
        %1653 = vmatprep.subr.mxu0 %v1512
        %1654 = vmatpush1.msra.mxu0 %v1511
        %1655 = vmatprep.subr.mxu0 %v1505
        %1656 = vmatpush1.msra.mxu0 %v1504
        %1657 = vmatprep.subr.mxu0 %v1498
        %1658 = vmatpush1.msra.mxu0 %v1497
        %1659 = vmatprep.subr.mxu0 %v1491
        %1660 = vmatpush1.msra.mxu0 %v1490
        %1661 = vmatprep.subr.mxu0 %v1484
        %1662 = vmatpush1.msra.mxu0 %v1483
        %1663 = vmatprep.subr.mxu0 %v1477
        %1664 = vmatpush1.msra.mxu0 %v1476
        %1665 = vmatprep.subr.mxu0 0.0
        %1666 = vmatpush2.msra.mxu0 0.0
        %1667 = vmatprep.subr.mxu0 0.0
        %1668 = vmatpush2.msra.mxu0 0.0
        %1669 = vmatprep.subr.mxu0 0.0
        %1670 = vmatpush2.msra.mxu0 0.0
        %1671 = vmatprep.subr.mxu0 0.0
        %1672 = vmatpush2.msra.mxu0 0.0
        %1673 = vmatprep.subr.mxu0 0.0
        %1674 = vmatpush2.msra.mxu0 0.0
        %1675 = vmatprep.subr.mxu0 0.0
        %1676 = vmatpush2.msra.mxu0 0.0
        %1677 = vmatprep.subr.mxu0 0.0
        %1678 = vmatpush2.msra.mxu0 0.0
        %1679 = vmatprep.subr.mxu0 0.0
        %1680 = vmatpush2.msra.mxu0 0.0
        %1681 = vmatprep.subr.mxu0 0.0
        %1682 = vmatpush2.msra.mxu0 0.0
        %1683 = vmatprep.subr.mxu0 0.0
        %1684 = vmatpush2.msra.mxu0 0.0
        %1685 = vmatprep.subr.mxu0 0.0
        %1686 = vmatpush2.msra.mxu0 0.0
        %1687 = vmatprep.subr.mxu0 0.0
        %1688 = vmatpush2.msra.mxu0 0.0
        %1689 = vmatprep.subr.mxu0 0.0
        %1690 = vmatpush2.msra.mxu0 0.0
        %1691 = vmatprep.subr.mxu0 0.0
        %1692 = vmatpush2.msra.mxu0 0.0
        %1693 = vmatprep.subr.mxu0 0.0
        %1694 = vmatpush2.msra.mxu0 0.0
        %1695 = vmatprep.subr.mxu0 0.0
        %1696 = vmatpush2.msra.mxu0 0.0
        %1697 = vmatprep.mubr.f32.mxu0 0.0
        %1698 = vmatmul.mubr.f32.gmra.mxu0 %v1551
        %v1699 = vpop.f32.mrf.mxu0
        %v1700 = vadd.f32 %v1542, %v1699
        %v1701 = vpop.f32.mrf.mxu0
        %v1702 = vadd.f32 %v1542, %v1701
        %1703 = vmatprep.mubr.f32.mxu0 0.0
        %1704 = vmatmul.mubr.f32.gmra.mxu0 %v1554
        %v1705 = vpop.f32.mrf.mxu0
        %v1706 = vadd.f32 %v1547, %v1705
        %v1707 = vpop.f32.mrf.mxu0
        %v1708 = vadd.f32 %v1547, %v1707
        %1709 = vdwg.mxu0
        %1710 = vmatprep.subr.mxu0 0.0
        %1711 = vmatpush1.msra.mxu0 0.0
        %1712 = vmatprep.subr.mxu0 0.0
        %1713 = vmatpush1.msra.mxu0 0.0
        %1714 = vmatprep.subr.mxu0 0.0
        %1715 = vmatpush1.msra.mxu0 0.0
        %1716 = vmatprep.subr.mxu0 0.0
        %1717 = vmatpush1.msra.mxu0 0.0
        %1718 = vmatprep.subr.mxu0 0.0
        %1719 = vmatpush1.msra.mxu0 0.0
        %1720 = vmatprep.subr.mxu0 0.0
        %1721 = vmatpush1.msra.mxu0 0.0
        %1722 = vmatprep.subr.mxu0 0.0
        %1723 = vmatpush1.msra.mxu0 0.0
        %1724 = vmatprep.subr.mxu0 %v1535
        %1725 = vmatpush1.msra.mxu0 %v1534
        %1726 = vmatprep.subr.mxu0 %v1528
        %1727 = vmatpush1.msra.mxu0 %v1527
        %1728 = vmatprep.subr.mxu0 %v1521
        %1729 = vmatpush1.msra.mxu0 %v1520
        %1730 = vmatprep.subr.mxu0 %v1514
        %1731 = vmatpush1.msra.mxu0 %v1513
        %1732 = vmatprep.subr.mxu0 %v1507
        %1733 = vmatpush1.msra.mxu0 %v1506
        %1734 = vmatprep.subr.mxu0 %v1500
        %1735 = vmatpush1.msra.mxu0 %v1499
        %1736 = vmatprep.subr.mxu0 %v1493
        %1737 = vmatpush1.msra.mxu0 %v1492
        %1738 = vmatprep.subr.mxu0 %v1486
        %1739 = vmatpush1.msra.mxu0 %v1485
        %1740 = vmatprep.subr.mxu0 %v1479
        %1741 = vmatpush1.msra.mxu0 %v1478
        %1742 = vmatprep.subr.mxu0 0.0
        %1743 = vmatpush2.msra.mxu0 0.0
        %1744 = vmatprep.subr.mxu0 0.0
        %1745 = vmatpush2.msra.mxu0 0.0
        %1746 = vmatprep.subr.mxu0 0.0
        %1747 = vmatpush2.msra.mxu0 0.0
        %1748 = vmatprep.subr.mxu0 0.0
        %1749 = vmatpush2.msra.mxu0 0.0
        %1750 = vmatprep.subr.mxu0 0.0
        %1751 = vmatpush2.msra.mxu0 0.0
        %1752 = vmatprep.subr.mxu0 0.0
        %1753 = vmatpush2.msra.mxu0 0.0
        %1754 = vmatprep.subr.mxu0 0.0
        %1755 = vmatpush2.msra.mxu0 0.0
        %1756 = vmatprep.subr.mxu0 0.0
        %1757 = vmatpush2.msra.mxu0 0.0
        %1758 = vmatprep.subr.mxu0 0.0
        %1759 = vmatpush2.msra.mxu0 0.0
        %1760 = vmatprep.subr.mxu0 0.0
        %1761 = vmatpush2.msra.mxu0 0.0
        %1762 = vmatprep.subr.mxu0 0.0
        %1763 = vmatpush2.msra.mxu0 0.0
        %1764 = vmatprep.subr.mxu0 0.0
        %1765 = vmatpush2.msra.mxu0 0.0
        %1766 = vmatprep.subr.mxu0 0.0
        %1767 = vmatpush2.msra.mxu0 0.0
        %1768 = vmatprep.subr.mxu0 0.0
        %1769 = vmatpush2.msra.mxu0 0.0
        %1770 = vmatprep.subr.mxu0 0.0
        %1771 = vmatpush2.msra.mxu0 0.0
        %1772 = vmatprep.subr.mxu0 0.0
        %1773 = vmatpush2.msra.mxu0 0.0
        %1774 = vmatprep.mubr.f32.mxu0 0.0
        %1775 = vmatmul.mubr.f32.gmra.mxu0 %v1551
        %v1776 = vpop.f32.mrf.mxu0
        %v1777 = vadd.f32 %v1542, %v1776
        %v1778 = vpop.f32.mrf.mxu0
        %v1779 = vadd.f32 %v1542, %v1778
        %1780 = vmatprep.mubr.f32.mxu0 0.0
        %1781 = vmatmul.mubr.f32.gmra.mxu0 %v1554
        %v1782 = vpop.f32.mrf.mxu0
        %v1783 = vadd.f32 %v1547, %v1782
        %v1784 = vpop.f32.mrf.mxu0
        %v1785 = vadd.f32 %v1547, %v1784
        %1786 = vdwg.mxu0
        %1787 = vmatprep.subr.mxu0 0.0
        %1788 = vmatpush1.msra.mxu0 0.0
        %1789 = vmatprep.subr.mxu0 0.0
        %1790 = vmatpush1.msra.mxu0 0.0
        %1791 = vmatprep.subr.mxu0 0.0
        %1792 = vmatpush1.msra.mxu0 0.0
        %1793 = vmatprep.subr.mxu0 0.0
        %1794 = vmatpush1.msra.mxu0 0.0
        %1795 = vmatprep.subr.mxu0 0.0
        %1796 = vmatpush1.msra.mxu0 0.0
        %1797 = vmatprep.subr.mxu0 0.0
        %1798 = vmatpush1.msra.mxu0 0.0
        %1799 = vmatprep.subr.mxu0 0.0
        %1800 = vmatpush1.msra.mxu0 0.0
        %1801 = vmatprep.subr.mxu0 0.0
        %1802 = vmatpush1.msra.mxu0 %v1536
        %1803 = vmatprep.subr.mxu0 0.0
        %1804 = vmatpush1.msra.mxu0 %v1529
        %1805 = vmatprep.subr.mxu0 0.0
        %1806 = vmatpush1.msra.mxu0 %v1522
        %1807 = vmatprep.subr.mxu0 0.0
        %1808 = vmatpush1.msra.mxu0 %v1515
        %1809 = vmatprep.subr.mxu0 0.0
        %1810 = vmatpush1.msra.mxu0 %v1508
        %1811 = vmatprep.subr.mxu0 0.0
        %1812 = vmatpush1.msra.mxu0 %v1501
        %1813 = vmatprep.subr.mxu0 0.0
        %1814 = vmatpush1.msra.mxu0 %v1494
        %1815 = vmatprep.subr.mxu0 0.0
        %1816 = vmatpush1.msra.mxu0 %v1487
        %1817 = vmatprep.subr.mxu0 0.0
        %1818 = vmatpush1.msra.mxu0 %v1480
        %1819 = vmatprep.subr.mxu0 0.0
        %1820 = vmatpush2.msra.mxu0 0.0
        %1821 = vmatprep.subr.mxu0 0.0
        %1822 = vmatpush2.msra.mxu0 0.0
        %1823 = vmatprep.subr.mxu0 0.0
        %1824 = vmatpush2.msra.mxu0 0.0
        %1825 = vmatprep.subr.mxu0 0.0
        %1826 = vmatpush2.msra.mxu0 0.0
        %1827 = vmatprep.subr.mxu0 0.0
        %1828 = vmatpush2.msra.mxu0 0.0
        %1829 = vmatprep.subr.mxu0 0.0
        %1830 = vmatpush2.msra.mxu0 0.0
        %1831 = vmatprep.subr.mxu0 0.0
        %1832 = vmatpush2.msra.mxu0 0.0
        %1833 = vmatprep.subr.mxu0 0.0
        %1834 = vmatpush2.msra.mxu0 0.0
        %1835 = vmatprep.subr.mxu0 0.0
        %1836 = vmatpush2.msra.mxu0 0.0
        %1837 = vmatprep.subr.mxu0 0.0
        %1838 = vmatpush2.msra.mxu0 0.0
        %1839 = vmatprep.subr.mxu0 0.0
        %1840 = vmatpush2.msra.mxu0 0.0
        %1841 = vmatprep.subr.mxu0 0.0
        %1842 = vmatpush2.msra.mxu0 0.0
        %1843 = vmatprep.subr.mxu0 0.0
        %1844 = vmatpush2.msra.mxu0 0.0
        %1845 = vmatprep.subr.mxu0 0.0
        %1846 = vmatpush2.msra.mxu0 0.0
        %1847 = vmatprep.subr.mxu0 0.0
        %1848 = vmatpush2.msra.mxu0 0.0
        %1849 = vmatprep.subr.mxu0 0.0
        %1850 = vmatpush2.msra.mxu0 0.0
        %1851 = vmatprep.mubr.f32.mxu0 0.0
        %1852 = vmatmul.mubr.f32.gmra.mxu0 %v1551
        %v1853 = vpop.f32.mrf.mxu0
        %v1854 = vadd.f32 %v1542, %v1853
        %v1855 = vpop.f32.mrf.mxu0
        %1856 = vmatprep.mubr.f32.mxu0 0.0
        %1857 = vmatmul.mubr.f32.gmra.mxu0 %v1554
        %v1858 = vpop.f32.mrf.mxu0
        %v1859 = vadd.f32 %v1547, %v1858
        %v1860 = vpop.f32.mrf.mxu0
        %1861 = vdwg.mxu0
        %v1862 = vmax.f32 %v1623, 0.0
        %v1863 = vmax.f32 %v1625, 0.0
        %v1864 = vmax.f32 %v1700, 0.0
        %v1865 = vmax.f32 %v1702, 0.0
        %v1866 = vmax.f32 %v1777, 0.0
        %v1867 = vmax.f32 %v1779, 0.0
        %v1868 = vmax.f32 %v1854, 0.0
        %v1869 = vmax.f32 %v1629, 0.0
        %v1870 = vmax.f32 %v1631, 0.0
        %v1871 = vmax.f32 %v1706, 0.0
        %v1872 = vmax.f32 %v1708, 0.0
        %v1873 = vmax.f32 %v1783, 0.0
        %v1874 = vmax.f32 %v1785, 0.0
        %v1875 = vmax.f32 %v1859, 0.0
        %1876 = vst [vmem:[#allocation5] sm:$0xff] %v1862
        %1877 = vst [vmem:[#allocation5 + $0x8] sm:$0xff] %v1863
        %1878 = vst [vmem:[#allocation5 + $0x10] sm:$0xff] %v1864
        %1879 = vst [vmem:[#allocation5 + $0x18] sm:$0xff] %v1865
        %1880 = vst [vmem:[#allocation5 + $0x20] sm:$0xff] %v1866
        %1881 = vst [vmem:[#allocation5 + $0x28] sm:$0xff] %v1867
        %1882 = vst.msk [vmem:[#allocation5 + $0x30] sm:$0xff] %vm1118, %v1868
        %1883 = vst [vmem:[#allocation5 + $0x38] sm:$0xff] %v1869
        %1884 = vst [vmem:[#allocation5 + $0x40] sm:$0xff] %v1870
        %1885 = vst [vmem:[#allocation5 + $0x48] sm:$0xff] %v1871
        %1886 = vst [vmem:[#allocation5 + $0x50] sm:$0xff] %v1872
        %1887 = vst [vmem:[#allocation5 + $0x58] sm:$0xff] %v1873
        %1888 = vst [vmem:[#allocation5 + $0x60] sm:$0xff] %v1874
        %1889 = vst.msk [vmem:[#allocation5 + $0x68] sm:$0xff] %vm1118, %v1875
        %v1890 = vld [vmem:[#allocation5] sm:$0xff]
        %v1891 = vld [vmem:[#allocation5 + $0x8] sm:$0xff]
        %v1892 = vld [vmem:[#allocation5 + $0x10] sm:$0xff]
        %v1893 = vld [vmem:[#allocation5 + $0x18] sm:$0xff]
        %v1894 = vld [vmem:[#allocation5 + $0x20] sm:$0xff]
        %v1895 = vld [vmem:[#allocation5 + $0x28] sm:$0xff]
        %v1896 = vld [vmem:[#allocation5 + $0x38] sm:$0xff]
        %v1897 = vld [vmem:[#allocation5 + $0x40] sm:$0xff]
        %v1898 = vld [vmem:[#allocation5 + $0x48] sm:$0xff]
        %v1899 = vld [vmem:[#allocation5 + $0x50] sm:$0xff]
        %v1900 = vld [vmem:[#allocation5 + $0x58] sm:$0xff]
        %v1901 = vld [vmem:[#allocation5 + $0x60] sm:$0xff]
        %1914 = vrot.lane.b32.xlu0 %v1890, 126
        %v1915 = vpop.permute.xlu0 %1914
        %1916 = vrot.lane.b32.xlu0 %v1891, 126
        %v1917 = vpop.permute.xlu0 %1916
        %1918 = vrot.lane.b32.xlu0 %v1892, 126
        %v1919 = vpop.permute.xlu0 %1918
        %1920 = vrot.lane.b32.xlu0 %v1893, 126
        %v1921 = vpop.permute.xlu0 %1920
        %1922 = vrot.lane.b32.xlu0 %v1894, 126
        %v1923 = vpop.permute.xlu0 %1922
        %1924 = vrot.lane.b32.xlu0 %v1895, 126
        %v1925 = vpop.permute.xlu0 %1924
        %1926 = vrot.lane.b32.xlu0 %v1896, 126
        %v1927 = vpop.permute.xlu0 %1926
        %1928 = vrot.lane.b32.xlu0 %v1897, 126
        %v1929 = vpop.permute.xlu0 %1928
        %1930 = vrot.lane.b32.xlu0 %v1898, 126
        %v1931 = vpop.permute.xlu0 %1930
        %1932 = vrot.lane.b32.xlu0 %v1899, 126
        %v1933 = vpop.permute.xlu0 %1932
        %1934 = vrot.lane.b32.xlu0 %v1900, 126
        %v1935 = vpop.permute.xlu0 %1934
        %1936 = vrot.lane.b32.xlu0 %v1901, 126
        %v1937 = vpop.permute.xlu0 %1936
        %v1938 = vsel %vm570, %v1915, %v1917
        %v1939 = vsel %vm570, %v1917, %v1919
        %v1940 = vsel %vm570, %v1919, %v1921
        %v1941 = vsel %vm570, %v1921, %v1923
        %v1942 = vsel %vm570, %v1923, %v1925
        %v1943 = vsel %vm570, %v1927, %v1929
        %v1944 = vsel %vm570, %v1929, %v1931
        %v1945 = vsel %vm570, %v1931, %v1933
        %v1946 = vsel %vm570, %v1933, %v1935
        %v1947 = vsel %vm570, %v1935, %v1937
        %v1960 = vmax.f32 %v1890, %v1938
        %v1961 = vmax.f32 %v1891, %v1939
        %v1962 = vmax.f32 %v1892, %v1940
        %v1963 = vmax.f32 %v1893, %v1941
        %v1964 = vmax.f32 %v1894, %v1942
        %v1965 = vmax.f32 %v1895, %v1925
        %v1966 = vmax.f32 %v1896, %v1943
        %v1967 = vmax.f32 %v1897, %v1944
        %v1968 = vmax.f32 %v1898, %v1945
        %v1969 = vmax.f32 %v1899, %v1946
        %v1970 = vmax.f32 %v1900, %v1947
        %v1971 = vmax.f32 %v1901, %v1937
        %v1972 = vld [vmem:[#allocation5 + $0x30] sm:$0xff]
        %v1973 = vld [vmem:[#allocation5 + $0x68] sm:$0xff]
        %1976 = vrot.lane.b32.xlu0 %v1972, 126
        %v1977 = vpop.permute.xlu0 %1976
        %1978 = vrot.lane.b32.xlu0 %v1973, 126
        %v1979 = vpop.permute.xlu0 %1978
        %v1980 = vsel %vm570, %v1925, %v1977
        %v1981 = vsel %vm570, %v1937, %v1979
        %v1986 = vmax.f32 %v1895, %v1980
        %v1987 = vmax.f32 %v1972, %v1977
        %v1988 = vmax.f32 %v1901, %v1981
        %v1989 = vmax.f32 %v1973, %v1979
        %2004 = vrot.lane.b32.xlu0 %v1960, 64
        %v2005 = vpop.permute.xlu0 %2004
        %2006 = vrot.lane.b32.xlu0 %v1961, 64
        %v2007 = vpop.permute.xlu0 %2006
        %2008 = vrot.lane.b32.xlu0 %v1962, 64
        %v2009 = vpop.permute.xlu0 %2008
        %2010 = vrot.lane.b32.xlu0 %v1963, 64
        %v2011 = vpop.permute.xlu0 %2010
        %2012 = vrot.lane.b32.xlu0 %v1964, 64
        %v2013 = vpop.permute.xlu0 %2012
        %2014 = vrot.lane.b32.xlu0 %v1986, 64
        %v2015 = vpop.permute.xlu0 %2014
        %2016 = vrot.lane.b32.xlu0 %v1987, 64
        %v2017 = vpop.permute.xlu0 %2016
        %2018 = vrot.lane.b32.xlu0 %v1966, 64
        %v2019 = vpop.permute.xlu0 %2018
        %2020 = vrot.lane.b32.xlu0 %v1967, 64
        %v2021 = vpop.permute.xlu0 %2020
        %2022 = vrot.lane.b32.xlu0 %v1968, 64
        %v2023 = vpop.permute.xlu0 %2022
        %2024 = vrot.lane.b32.xlu0 %v1969, 64
        %v2025 = vpop.permute.xlu0 %2024
        %2026 = vrot.lane.b32.xlu0 %v1970, 64
        %v2027 = vpop.permute.xlu0 %2026
        %2028 = vrot.lane.b32.xlu0 %v1988, 64
        %v2029 = vpop.permute.xlu0 %2028
        %2030 = vrot.lane.b32.xlu0 %v1989, 64
        %v2031 = vpop.permute.xlu0 %2030
        %v2032 = vsel %vm810, %v2005, %v2007
        %v2033 = vsel %vm810, %v2007, %v2009
        %v2034 = vsel %vm810, %v2009, %v2011
        %v2035 = vsel %vm810, %v2011, %v2013
        %v2036 = vsel %vm810, %v2013, %v2015
        %v2037 = vsel %vm810, %v2015, %v2017
        %v2038 = vsel %vm810, %v2019, %v2021
        %v2039 = vsel %vm810, %v2021, %v2023
        %v2040 = vsel %vm810, %v2023, %v2025
        %v2041 = vsel %vm810, %v2025, %v2027
        %v2042 = vsel %vm810, %v2027, %v2029
        %v2043 = vsel %vm810, %v2029, %v2031
        %v2056 = vmax.f32 %v1960, %v2032
        %v2057 = vmax.f32 %v1961, %v2033
        %v2058 = vmax.f32 %v1962, %v2034
        %v2059 = vmax.f32 %v1963, %v2035
        %v2060 = vmax.f32 %v1964, %v2036
        %v2061 = vmax.f32 %v1965, %v2037
        %v2062 = vmax.f32 %v1966, %v2038
        %v2063 = vmax.f32 %v1967, %v2039
        %v2064 = vmax.f32 %v1968, %v2040
        %v2065 = vmax.f32 %v1969, %v2041
        %v2066 = vmax.f32 %v1970, %v2042
        %v2067 = vmax.f32 %v1971, %v2043
        %v2068 = vld [vmem:[%s5] sm:$0xff]
        %v2069 = vld [vmem:[%s5 + $0x8] sm:$0xff]
        %v2070 = vld [vmem:[%s5 + $0x10] sm:$0xff]
        %v2071 = vld [vmem:[%s5 + $0x18] sm:$0xff]
        %v2072 = vld [vmem:[%s5 + $0x20] sm:$0xff]
        %v2073 = vld [vmem:[%s5 + $0x28] sm:$0xff]
        %v2074 = vld [vmem:[%s5 + $0x30] sm:$0xff]
        %v2075 = vld [vmem:[%s5 + $0x38] sm:$0xff]
        %v2076 = vld [vmem:[%s5 + $0x40] sm:$0xff]
        %v2077 = vld [vmem:[%s5 + $0x48] sm:$0xff]
        %v2078 = vld [vmem:[%s5 + $0x50] sm:$0xff]
        %v2079 = vld [vmem:[%s5 + $0x58] sm:$0xff]
        %v2080 = vld [vmem:[%s5 + $0x60] sm:$0xff]
        %v2081 = vld [vmem:[%s5 + $0x68] sm:$0xff]
        %v2082 = vld [vmem:[%s5 + $0x70] sm:$0xff]
        %v2083 = vld [vmem:[%s5 + $0x78] sm:$0xff]
        %v2084 = vld [vmem:[%s5 + $0x80] sm:$0xff]
        %v2085 = vld [vmem:[%s5 + $0x88] sm:$0xff]
        %v2086 = vld [vmem:[%s5 + $0x90] sm:$0xff]
        %v2087 = vld [vmem:[%s5 + $0x98] sm:$0xff]
        %v2088 = vld [vmem:[%s5 + $0xa0] sm:$0xff]
        %v2089 = vld [vmem:[%s5 + $0xa8] sm:$0xff]
        %v2090 = vld [vmem:[%s5 + $0xb0] sm:$0xff]
        %v2091 = vld [vmem:[%s5 + $0xb8] sm:$0xff]
        %v2092 = vld [vmem:[%s5 + $0xc0] sm:$0xff]
        %v2093 = vld [vmem:[%s5 + $0xc8] sm:$0xff]
        %v2094 = vld [vmem:[%s5 + $0xd0] sm:$0xff]
        %v2095 = vld [vmem:[%s5 + $0xd8] sm:$0xff]
        %v2096 = vld [vmem:[%s5 + $0xe0] sm:$0xff]
        %v2097 = vld [vmem:[%s5 + $0xe8] sm:$0xff]
        %v2098 = vld [vmem:[%s5 + $0xf0] sm:$0xff]
        %v2099 = vld [vmem:[%s5 + $0xf8] sm:$0xff]
        %v2100 = vld [vmem:[%s5 + $0x100] sm:$0xff]
        %v2101 = vld [vmem:[%s5 + $0x108] sm:$0xff]
        %v2102 = vld [vmem:[%s5 + $0x110] sm:$0xff]
        %v2103 = vld [vmem:[%s5 + $0x118] sm:$0xff]
        %v2104 = vld [vmem:[%s5 + $0x120] sm:$0xff]
        %v2105 = vld [vmem:[%s5 + $0x128] sm:$0xff]
        %v2106 = vld [vmem:[%s5 + $0x130] sm:$0xff]
        %v2107 = vld [vmem:[%s5 + $0x138] sm:$0xff]
        %v2108 = vld [vmem:[%s5 + $0x140] sm:$0xff]
        %v2109 = vld [vmem:[%s5 + $0x148] sm:$0xff]
        %v2110 = vld [vmem:[%s5 + $0x150] sm:$0xff]
        %v2111 = vld [vmem:[%s5 + $0x158] sm:$0xff]
        %v2112 = vld [vmem:[%s5 + $0x160] sm:$0xff]
        %v2113 = vld [vmem:[%s5 + $0x168] sm:$0xff]
        %v2114 = vld [vmem:[%s5 + $0x170] sm:$0xff]
        %v2115 = vld [vmem:[%s5 + $0x178] sm:$0xff]
        %v2116 = vld [vmem:[%s5 + $0x180] sm:$0xff]
        %v2117 = vld [vmem:[%s5 + $0x188] sm:$0xff]
        %v2118 = vld [vmem:[%s5 + $0x190] sm:$0xff]
        %v2119 = vld [vmem:[%s5 + $0x198] sm:$0xff]
        %v2120 = vld [vmem:[%s5 + $0x1a0] sm:$0xff]
        %v2121 = vld [vmem:[%s5 + $0x1a8] sm:$0xff]
        %v2122 = vld [vmem:[%s5 + $0x1b0] sm:$0xff]
        %v2123 = vld [vmem:[%s5 + $0x1b8] sm:$0xff]
        %v2124 = vld [vmem:[%s5 + $0x1c0] sm:$0xff]
        %v2125 = vld [vmem:[%s5 + $0x1c8] sm:$0xff]
        %v2126 = vld [vmem:[%s5 + $0x1d0] sm:$0xff]
        %v2127 = vld [vmem:[%s5 + $0x1d8] sm:$0xff]
        %v2128 = vld [vmem:[%s5 + $0x1e0] sm:$0xff]
        %v2129 = vld [vmem:[%s5 + $0x1e8] sm:$0xff]
        %v2130 = vld [vmem:[%s5 + $0x1f0] sm:$0xff]
        %v2131 = vld [vmem:[%s5 + $0x1f8] sm:$0xff]
        %v2132 = vld [vmem:[%s5 + $0x200] sm:$0xff]
        %v2133 = vld [vmem:[%s5 + $0x208] sm:$0xff]
        %v2134 = vld [vmem:[%s5 + $0x210] sm:$0xff]
        %v2135 = vld [vmem:[%s5 + $0x218] sm:$0xff]
        %v2136 = vld [vmem:[%s5 + $0x220] sm:$0xff]
        %v2137 = vld [vmem:[%s5 + $0x228] sm:$0xff]
        %v2138 = vld [vmem:[%s5 + $0x230] sm:$0xff]
        %v2139 = vld [vmem:[%s5 + $0x238] sm:$0xff]
        %v2140 = vld [vmem:[%s5 + $0x240] sm:$0xff]
        %v2141 = vld [vmem:[%s5 + $0x248] sm:$0xff]
        %v2142 = vld [vmem:[%s5 + $0x250] sm:$0xff]
        %v2143 = vld [vmem:[%s5 + $0x258] sm:$0xff]
        %v2144 = vld [vmem:[%s5 + $0x260] sm:$0xff]
        %v2145 = vld [vmem:[%s5 + $0x268] sm:$0xff]
        %v2146 = vld [vmem:[%s5 + $0x270] sm:$0xff]
        %v2147 = vld [vmem:[%s5 + $0x278] sm:$0xff]
        %v2148 = vld [vmem:[%s5 + $0x280] sm:$0xff]
        %v2149 = vld [vmem:[%s5 + $0x288] sm:$0xff]
        %v2150 = vld [vmem:[%s5 + $0x290] sm:$0xff]
        %v2151 = vld [vmem:[%s5 + $0x298] sm:$0xff]
        %v2152 = vld [vmem:[%s5 + $0x2a0] sm:$0xff]
        %v2153 = vld [vmem:[%s5 + $0x2a8] sm:$0xff]
        %v2154 = vld [vmem:[%s5 + $0x2b0] sm:$0xff]
        %v2155 = vld [vmem:[%s5 + $0x2b8] sm:$0xff]
        %v2156 = vld [vmem:[%s5 + $0x2c0] sm:$0xff]
        %v2157 = vld [vmem:[%s5 + $0x2c8] sm:$0xff]
        %v2158 = vld [vmem:[%s5 + $0x2d0] sm:$0x7f]
        %vm2159 = vcmask 711680
        %v2161 = vsel %vm2159, %v2061, 0
        %v2164 = vsel %vm2159, %v2067, 0
        %vm2166 = vcmask 1046528
        %v2168 = vsel %vm2166, %v2158, 0
        %2170 = vmatprep.subr.mxu0 0.0
        %2171 = vmatpush1.msra.mxu0 %v2083
        %2172 = vmatprep.subr.mxu0 0.0
        %2173 = vmatpush1.msra.mxu0 %v2082
        %2174 = vmatprep.subr.mxu0 0.0
        %2175 = vmatpush1.msra.mxu0 %v2081
        %2176 = vmatprep.subr.mxu0 0.0
        %2177 = vmatpush1.msra.mxu0 %v2080
        %2178 = vmatprep.subr.mxu0 0.0
        %2179 = vmatpush1.msra.mxu0 %v2079
        %2180 = vmatprep.subr.mxu0 0.0
        %2181 = vmatpush1.msra.mxu0 %v2078
        %2182 = vmatprep.subr.mxu0 0.0
        %2183 = vmatpush1.msra.mxu0 %v2077
        %2184 = vmatprep.subr.mxu0 0.0
        %2185 = vmatpush1.msra.mxu0 %v2076
        %2186 = vmatprep.subr.mxu0 0.0
        %2187 = vmatpush1.msra.mxu0 %v2075
        %2188 = vmatprep.subr.mxu0 0.0
        %2189 = vmatpush1.msra.mxu0 %v2074
        %2190 = vmatprep.subr.mxu0 0.0
        %2191 = vmatpush1.msra.mxu0 %v2073
        %2192 = vmatprep.subr.mxu0 0.0
        %2193 = vmatpush1.msra.mxu0 %v2072
        %2194 = vmatprep.subr.mxu0 0.0
        %2195 = vmatpush1.msra.mxu0 %v2071
        %2196 = vmatprep.subr.mxu0 0.0
        %2197 = vmatpush1.msra.mxu0 %v2070
        %2198 = vmatprep.subr.mxu0 0.0
        %2199 = vmatpush1.msra.mxu0 %v2069
        %2200 = vmatprep.subr.mxu0 0.0
        %2201 = vmatpush1.msra.mxu0 %v2068
        %2202 = vmatprep.subr.mxu0 0.0
        %2203 = vmatpush2.msra.mxu0 %v2099
        %2204 = vmatprep.subr.mxu0 0.0
        %2205 = vmatpush2.msra.mxu0 %v2098
        %2206 = vmatprep.subr.mxu0 0.0
        %2207 = vmatpush2.msra.mxu0 %v2097
        %2208 = vmatprep.subr.mxu0 0.0
        %2209 = vmatpush2.msra.mxu0 %v2096
        %2210 = vmatprep.subr.mxu0 0.0
        %2211 = vmatpush2.msra.mxu0 %v2095
        %2212 = vmatprep.subr.mxu0 0.0
        %2213 = vmatpush2.msra.mxu0 %v2094
        %2214 = vmatprep.subr.mxu0 0.0
        %2215 = vmatpush2.msra.mxu0 %v2093
        %2216 = vmatprep.subr.mxu0 0.0
        %2217 = vmatpush2.msra.mxu0 %v2092
        %2218 = vmatprep.subr.mxu0 0.0
        %2219 = vmatpush2.msra.mxu0 %v2091
        %2220 = vmatprep.subr.mxu0 0.0
        %2221 = vmatpush2.msra.mxu0 %v2090
        %2222 = vmatprep.subr.mxu0 0.0
        %2223 = vmatpush2.msra.mxu0 %v2089
        %2224 = vmatprep.subr.mxu0 0.0
        %2225 = vmatpush2.msra.mxu0 %v2088
        %2226 = vmatprep.subr.mxu0 0.0
        %2227 = vmatpush2.msra.mxu0 %v2087
        %2228 = vmatprep.subr.mxu0 0.0
        %2229 = vmatpush2.msra.mxu0 %v2086
        %2230 = vmatprep.subr.mxu0 0.0
        %2231 = vmatpush2.msra.mxu0 %v2085
        %2232 = vmatprep.subr.mxu0 0.0
        %2233 = vmatpush2.msra.mxu0 %v2084
        %2234 = vmatprep.mubr.f32.mxu0 %v2057
        %2235 = vmatmul.mubr.f32.gmra.mxu0 %v2056
        %v2236 = vpop.f32.mrf.mxu0
        %v2237 = vadd.f32 0.0, %v2236
        %v2238 = vpop.f32.mrf.mxu0
        %2239 = vmatprep.mubr.f32.mxu0 %v2063
        %2240 = vmatmul.mubr.f32.gmra.mxu0 %v2062
        %v2241 = vpop.f32.mrf.mxu0
        %v2242 = vadd.f32 0.0, %v2241
        %v2243 = vpop.f32.mrf.mxu0
        %2244 = vdwg.mxu0
        %2245 = vmatprep.subr.mxu0 0.0
        %2246 = vmatpush1.msra.mxu0 %v2115
        %2247 = vmatprep.subr.mxu0 0.0
        %2248 = vmatpush1.msra.mxu0 %v2114
        %2249 = vmatprep.subr.mxu0 0.0
        %2250 = vmatpush1.msra.mxu0 %v2113
        %2251 = vmatprep.subr.mxu0 0.0
        %2252 = vmatpush1.msra.mxu0 %v2112
        %2253 = vmatprep.subr.mxu0 0.0
        %2254 = vmatpush1.msra.mxu0 %v2111
        %2255 = vmatprep.subr.mxu0 0.0
        %2256 = vmatpush1.msra.mxu0 %v2110
        %2257 = vmatprep.subr.mxu0 0.0
        %2258 = vmatpush1.msra.mxu0 %v2109
        %2259 = vmatprep.subr.mxu0 0.0
        %2260 = vmatpush1.msra.mxu0 %v2108
        %2261 = vmatprep.subr.mxu0 0.0
        %2262 = vmatpush1.msra.mxu0 %v2107
        %2263 = vmatprep.subr.mxu0 0.0
        %2264 = vmatpush1.msra.mxu0 %v2106
        %2265 = vmatprep.subr.mxu0 0.0
        %2266 = vmatpush1.msra.mxu0 %v2105
        %2267 = vmatprep.subr.mxu0 0.0
        %2268 = vmatpush1.msra.mxu0 %v2104
        %2269 = vmatprep.subr.mxu0 0.0
        %2270 = vmatpush1.msra.mxu0 %v2103
        %2271 = vmatprep.subr.mxu0 0.0
        %2272 = vmatpush1.msra.mxu0 %v2102
        %2273 = vmatprep.subr.mxu0 0.0
        %2274 = vmatpush1.msra.mxu0 %v2101
        %2275 = vmatprep.subr.mxu0 0.0
        %2276 = vmatpush1.msra.mxu0 %v2100
        %2277 = vmatprep.subr.mxu0 0.0
        %2278 = vmatpush2.msra.mxu0 %v2131
        %2279 = vmatprep.subr.mxu0 0.0
        %2280 = vmatpush2.msra.mxu0 %v2130
        %2281 = vmatprep.subr.mxu0 0.0
        %2282 = vmatpush2.msra.mxu0 %v2129
        %2283 = vmatprep.subr.mxu0 0.0
        %2284 = vmatpush2.msra.mxu0 %v2128
        %2285 = vmatprep.subr.mxu0 0.0
        %2286 = vmatpush2.msra.mxu0 %v2127
        %2287 = vmatprep.subr.mxu0 0.0
        %2288 = vmatpush2.msra.mxu0 %v2126
        %2289 = vmatprep.subr.mxu0 0.0
        %2290 = vmatpush2.msra.mxu0 %v2125
        %2291 = vmatprep.subr.mxu0 0.0
        %2292 = vmatpush2.msra.mxu0 %v2124
        %2293 = vmatprep.subr.mxu0 0.0
        %2294 = vmatpush2.msra.mxu0 %v2123
        %2295 = vmatprep.subr.mxu0 0.0
        %2296 = vmatpush2.msra.mxu0 %v2122
        %2297 = vmatprep.subr.mxu0 0.0
        %2298 = vmatpush2.msra.mxu0 %v2121
        %2299 = vmatprep.subr.mxu0 0.0
        %2300 = vmatpush2.msra.mxu0 %v2120
        %2301 = vmatprep.subr.mxu0 0.0
        %2302 = vmatpush2.msra.mxu0 %v2119
        %2303 = vmatprep.subr.mxu0 0.0
        %2304 = vmatpush2.msra.mxu0 %v2118
        %2305 = vmatprep.subr.mxu0 0.0
        %2306 = vmatpush2.msra.mxu0 %v2117
        %2307 = vmatprep.subr.mxu0 0.0
        %2308 = vmatpush2.msra.mxu0 %v2116
        %2309 = vmatprep.mubr.f32.mxu0 %v2059
        %2310 = vmatmul.mubr.f32.gmra.mxu0 %v2058
        %v2311 = vpop.f32.mrf.mxu0
        %v2312 = vadd.f32 %v2237, %v2311
        %v2313 = vpop.f32.mrf.mxu0
        %2314 = vmatprep.mubr.f32.mxu0 %v2065
        %2315 = vmatmul.mubr.f32.gmra.mxu0 %v2064
        %v2316 = vpop.f32.mrf.mxu0
        %v2317 = vadd.f32 %v2242, %v2316
        %v2318 = vpop.f32.mrf.mxu0
        %2319 = vdwg.mxu0
        %2320 = vmatprep.subr.mxu0 0.0
        %2321 = vmatpush1.msra.mxu0 %v2147
        %2322 = vmatprep.subr.mxu0 0.0
        %2323 = vmatpush1.msra.mxu0 %v2146
        %2324 = vmatprep.subr.mxu0 0.0
        %2325 = vmatpush1.msra.mxu0 %v2145
        %2326 = vmatprep.subr.mxu0 0.0
        %2327 = vmatpush1.msra.mxu0 %v2144
        %2328 = vmatprep.subr.mxu0 0.0
        %2329 = vmatpush1.msra.mxu0 %v2143
        %2330 = vmatprep.subr.mxu0 0.0
        %2331 = vmatpush1.msra.mxu0 %v2142
        %2332 = vmatprep.subr.mxu0 0.0
        %2333 = vmatpush1.msra.mxu0 %v2141
        %2334 = vmatprep.subr.mxu0 0.0
        %2335 = vmatpush1.msra.mxu0 %v2140
        %2336 = vmatprep.subr.mxu0 0.0
        %2337 = vmatpush1.msra.mxu0 %v2139
        %2338 = vmatprep.subr.mxu0 0.0
        %2339 = vmatpush1.msra.mxu0 %v2138
        %2340 = vmatprep.subr.mxu0 0.0
        %2341 = vmatpush1.msra.mxu0 %v2137
        %2342 = vmatprep.subr.mxu0 0.0
        %2343 = vmatpush1.msra.mxu0 %v2136
        %2344 = vmatprep.subr.mxu0 0.0
        %2345 = vmatpush1.msra.mxu0 %v2135
        %2346 = vmatprep.subr.mxu0 0.0
        %2347 = vmatpush1.msra.mxu0 %v2134
        %2348 = vmatprep.subr.mxu0 0.0
        %2349 = vmatpush1.msra.mxu0 %v2133
        %2350 = vmatprep.subr.mxu0 0.0
        %2351 = vmatpush1.msra.mxu0 %v2132
        %2352 = vmatprep.subr.mxu0 0.0
        %2353 = vmatpush2.msra.mxu0 0.0
        %2354 = vmatprep.subr.mxu0 0.0
        %2355 = vmatpush2.msra.mxu0 0.0
        %2356 = vmatprep.subr.mxu0 0.0
        %2357 = vmatpush2.msra.mxu0 0.0
        %2358 = vmatprep.subr.mxu0 0.0
        %2359 = vmatpush2.msra.mxu0 0.0
        %2360 = vmatprep.subr.mxu0 0.0
        %2361 = vmatpush2.msra.mxu0 0.0
        %2362 = vmatprep.subr.mxu0 0.0
        %2363 = vmatpush2.msra.mxu0 %v2168
        %2364 = vmatprep.subr.mxu0 0.0
        %2365 = vmatpush2.msra.mxu0 %v2157
        %2366 = vmatprep.subr.mxu0 0.0
        %2367 = vmatpush2.msra.mxu0 %v2156
        %2368 = vmatprep.subr.mxu0 0.0
        %2369 = vmatpush2.msra.mxu0 %v2155
        %2370 = vmatprep.subr.mxu0 0.0
        %2371 = vmatpush2.msra.mxu0 %v2154
        %2372 = vmatprep.subr.mxu0 0.0
        %2373 = vmatpush2.msra.mxu0 %v2153
        %2374 = vmatprep.subr.mxu0 0.0
        %2375 = vmatpush2.msra.mxu0 %v2152
        %2376 = vmatprep.subr.mxu0 0.0
        %2377 = vmatpush2.msra.mxu0 %v2151
        %2378 = vmatprep.subr.mxu0 0.0
        %2379 = vmatpush2.msra.mxu0 %v2150
        %2380 = vmatprep.subr.mxu0 0.0
        %2381 = vmatpush2.msra.mxu0 %v2149
        %2382 = vmatprep.subr.mxu0 0.0
        %2383 = vmatpush2.msra.mxu0 %v2148
        %2384 = vmatprep.mubr.f32.mxu0 %v2161
        %2385 = vmatmul.mubr.f32.gmra.mxu0 %v2060
        %v2386 = vpop.f32.mrf.mxu0
        %v2387 = vadd.f32 %v2312, %v2386
        %v2388 = vpop.f32.mrf.mxu0
        %2389 = vmatprep.mubr.f32.mxu0 %v2164
        %2390 = vmatmul.mubr.f32.gmra.mxu0 %v2066
        %v2391 = vpop.f32.mrf.mxu0
        %v2392 = vadd.f32 %v2317, %v2391
        %v2393 = vpop.f32.mrf.mxu0
        %2394 = vdwg.mxu0
        %v2395 = vlaneseq
        %vm2396 = vcmp.ge.s32.totalorder %v2395, 0
        %vm2397 = vcmp.lt.s32.totalorder %v2395, 36
        %vm2398 = vmand %vm2396, %vm2397
        %2399 = vst.msk [vmem:[#allocation6] sm:$0x1] %vm2398, %v2387
        %v2402 = vunpack.c.l.s4 1966171168
        %v2403 = vunpack.c.0.s8 %v2402
        %v2404 = vlaneseq
        %v2405 = vshrl.u32 %v2404, 7
        %v2406 = vsub.s32 %v2403, %v2405
        %v2407 = vrot.slane %v2387, %v2406
        %v2408 = vcombine.high %v2407, %v2407
        %v2410 = vunpack.c.l.s4 1966171168
        %v2411 = vunpack.c.0.s8 %v2410
        %v2412 = vlaneseq
        %v2413 = vshrl.u32 %v2412, 7
        %v2414 = vsub.s32 %v2411, %v2413
        %v2415 = vrot.slane %v2407, %v2414
        %v2417 = vunpack.c.l.s4 1966171168
        %v2418 = vunpack.c.0.s8 %v2417
        %v2419 = vlaneseq
        %v2420 = vshrl.u32 %v2419, 7
        %v2421 = vsub.s32 %v2418, %v2420
        %v2422 = vrot.slane %v2408, %v2421
        %2423 = vrot.lane.b32.xlu0 %v2422, 36
        %v2424 = vpop.permute.xlu0 %2423
        %vm2426 = vcmp.ge.s32.totalorder %v2395, 36
        %vm2427 = vcmp.lt.s32.totalorder %v2395, 72
        %vm2428 = vmand %vm2426, %vm2427
        %2429 = vst.msk [vmem:[#allocation6] sm:$0x1] %vm2428, %v2424
        %v2430 = vcombine.high %v2415, %v2415
        %2431 = vrot.lane.b32.xlu0 %v2430, 72
        %v2432 = vpop.permute.xlu0 %2431
        %vm2434 = vcmp.ge.s32.totalorder %v2395, 72
        %vm2435 = vcmp.lt.s32.totalorder %v2395, 108
        %vm2436 = vmand %vm2434, %vm2435
        %2437 = vst.msk [vmem:[#allocation6] sm:$0x1] %vm2436, %v2432
        %v2438 = vcombine.high %v2422, %v2422
        %2439 = vrot.lane.b32.xlu0 %v2438, 108
        %v2440 = vpop.permute.xlu0 %2439
        %v2441 = vrot.slane %v2440, 7
        %vm2442 = vcmask 883712
        %v2443 = vsel %vm2442, %v2441, %v2440
        %vm2445 = vcmp.ge.s32.totalorder %v2395, 108
        %vm2446 = vcmp.lt.s32.totalorder %v2395, 144
        %vm2447 = vmand %vm2445, %vm2446
        %2448 = vst.msk [vmem:[#allocation6] sm:$0x3] %vm2447, %v2443
        %v2449 = vcombine.high %v2387, %v2387
        %v2451 = vunpack.c.l.s4 1966171168
        %v2452 = vunpack.c.0.s8 %v2451
        %v2453 = vlaneseq
        %v2454 = vshrl.u32 %v2453, 7
        %v2455 = vsub.s32 %v2452, %v2454
        %v2456 = vrot.slane %v2449, %v2455
        %v2458 = vunpack.c.l.s4 1966171168
        %v2459 = vunpack.c.0.s8 %v2458
        %v2460 = vlaneseq
        %v2461 = vshrl.u32 %v2460, 7
        %v2462 = vsub.s32 %v2459, %v2461
        %v2463 = vrot.slane %v2456, %v2462
        %2464 = vrot.lane.b32.xlu0 %v2463, 16
        %v2465 = vpop.permute.xlu0 %2464
        %vm2467 = vcmp.ge.s32.totalorder %v2395, 16
        %vm2468 = vcmp.lt.s32.totalorder %v2395, 52
        %vm2469 = vmand %vm2467, %vm2468
        %2470 = vst.msk [vmem:[#allocation6 + $0x1] sm:$0x1] %vm2469, %v2465
        %v2471 = vcombine.high %v2456, %v2456
        %v2473 = vunpack.c.l.s4 1966171168
        %v2474 = vunpack.c.0.s8 %v2473
        %v2475 = vlaneseq
        %v2476 = vshrl.u32 %v2475, 7
        %v2477 = vsub.s32 %v2474, %v2476
        %v2478 = vrot.slane %v2471, %v2477
        %2479 = vrot.lane.b32.xlu0 %v2478, 52
        %v2480 = vpop.permute.xlu0 %2479
        %vm2482 = vcmp.ge.s32.totalorder %v2395, 52
        %vm2483 = vcmp.lt.s32.totalorder %v2395, 88
        %vm2484 = vmand %vm2482, %vm2483
        %2485 = vst.msk [vmem:[#allocation6 + $0x1] sm:$0x1] %vm2484, %v2480
        %v2486 = vcombine.high %v2463, %v2463
        %2487 = vrot.lane.b32.xlu0 %v2486, 88
        %v2488 = vpop.permute.xlu0 %2487
        %vm2490 = vcmp.ge.s32.totalorder %v2395, 88
        %vm2491 = vcmp.lt.s32.totalorder %v2395, 124
        %vm2492 = vmand %vm2490, %vm2491
        %2493 = vst.msk [vmem:[#allocation6 + $0x1] sm:$0x1] %vm2492, %v2488
        %v2494 = vcombine.high %v2478, %v2478
        %2495 = vrot.lane.b32.xlu0 %v2494, 124
        %v2496 = vpop.permute.xlu0 %2495
        %v2497 = vrot.slane %v2496, 7
        %v2498 = vsel %vm1196, %v2497, %v2496
        %vm2500 = vcmp.ge.s32.totalorder %v2395, 124
        %vm2501 = vcmp.lt.s32.totalorder %v2395, 160
        %vm2502 = vmand %vm2500, %vm2501
        %2503 = vst.msk [vmem:[#allocation6 + $0x1] sm:$0x3] %vm2502, %v2498
        %v2506 = vunpack.c.l.s4 1966171168
        %v2507 = vunpack.c.0.s8 %v2506
        %v2508 = vlaneseq
        %v2509 = vshrl.u32 %v2508, 7
        %v2510 = vsub.s32 %v2507, %v2509
        %v2511 = vrot.slane %v2392, %v2510
        %v2513 = vunpack.c.l.s4 1966171168
        %v2514 = vunpack.c.0.s8 %v2513
        %v2515 = vlaneseq
        %v2516 = vshrl.u32 %v2515, 7
        %v2517 = vsub.s32 %v2514, %v2516
        %v2518 = vrot.slane %v2511, %v2517
        %2519 = vrot.lane.b32.xlu0 %v2518, 32
        %v2520 = vpop.permute.xlu0 %2519
        %vm2522 = vcmp.ge.s32.totalorder %v2395, 32
        %vm2523 = vcmp.lt.s32.totalorder %v2395, 68
        %vm2524 = vmand %vm2522, %vm2523
        %2525 = vst.msk [vmem:[#allocation6 + $0x2] sm:$0x1] %vm2524, %v2520
        %v2526 = vcombine.high %v2511, %v2511
        %v2528 = vunpack.c.l.s4 1966171168
        %v2529 = vunpack.c.0.s8 %v2528
        %v2530 = vlaneseq
        %v2531 = vshrl.u32 %v2530, 7
        %v2532 = vsub.s32 %v2529, %v2531
        %v2533 = vrot.slane %v2526, %v2532
        %2534 = vrot.lane.b32.xlu0 %v2533, 68
        %v2535 = vpop.permute.xlu0 %2534
        %vm2537 = vcmp.ge.s32.totalorder %v2395, 68
        %vm2538 = vcmp.lt.s32.totalorder %v2395, 104
        %vm2539 = vmand %vm2537, %vm2538
        %2540 = vst.msk [vmem:[#allocation6 + $0x2] sm:$0x1] %vm2539, %v2535
        %v2541 = vcombine.high %v2518, %v2518
        %2542 = vrot.lane.b32.xlu0 %v2541, 104
        %v2543 = vpop.permute.xlu0 %2542
        %v2544 = vrot.slane %v2543, 7
        %vm2545 = vcmask 850944
        %v2546 = vsel %vm2545, %v2544, %v2543
        %vm2548 = vcmp.ge.s32.totalorder %v2395, 104
        %vm2549 = vcmp.lt.s32.totalorder %v2395, 140
        %vm2550 = vmand %vm2548, %vm2549
        %2551 = vst.msk [vmem:[#allocation6 + $0x2] sm:$0x3] %vm2550, %v2546
        %v2552 = vcombine.high %v2533, %v2533
        %2553 = vrot.lane.b32.xlu0 %v2552, 12
        %v2554 = vpop.permute.xlu0 %2553
        %vm2556 = vcmp.ge.s32.totalorder %v2395, 12
        %vm2557 = vcmp.lt.s32.totalorder %v2395, 48
        %vm2558 = vmand %vm2556, %vm2557
        %2559 = vst.msk [vmem:[#allocation6 + $0x3] sm:$0x1] %vm2558, %v2554
        %v2560 = vcombine.high %v2392, %v2392
        %v2562 = vunpack.c.l.s4 1966171168
        %v2563 = vunpack.c.0.s8 %v2562
        %v2564 = vlaneseq
        %v2565 = vshrl.u32 %v2564, 7
        %v2566 = vsub.s32 %v2563, %v2565
        %v2567 = vrot.slane %v2560, %v2566
        %v2569 = vunpack.c.l.s4 1966171168
        %v2570 = vunpack.c.0.s8 %v2569
        %v2571 = vlaneseq
        %v2572 = vshrl.u32 %v2571, 7
        %v2573 = vsub.s32 %v2570, %v2572
        %v2574 = vrot.slane %v2567, %v2573
        %2575 = vrot.lane.b32.xlu0 %v2574, 48
        %v2576 = vpop.permute.xlu0 %2575
        %vm2578 = vcmp.ge.s32.totalorder %v2395, 48
        %vm2579 = vcmp.lt.s32.totalorder %v2395, 84
        %vm2580 = vmand %vm2578, %vm2579
        %2581 = vst.msk [vmem:[#allocation6 + $0x3] sm:$0x1] %vm2580, %v2576
        %v2582 = vcombine.high %v2567, %v2567
        %v2584 = vunpack.c.l.s4 1966171168
        %v2585 = vunpack.c.0.s8 %v2584
        %v2586 = vlaneseq
        %v2587 = vshrl.u32 %v2586, 7
        %v2588 = vsub.s32 %v2585, %v2587
        %v2589 = vrot.slane %v2582, %v2588
        %2590 = vrot.lane.b32.xlu0 %v2589, 84
        %v2591 = vpop.permute.xlu0 %2590
        %vm2593 = vcmp.ge.s32.totalorder %v2395, 84
        %vm2594 = vcmp.lt.s32.totalorder %v2395, 120
        %vm2595 = vmand %vm2593, %vm2594
        %2596 = vst.msk [vmem:[#allocation6 + $0x3] sm:$0x1] %vm2595, %v2591
        %v2597 = vcombine.high %v2574, %v2574
        %2598 = vrot.lane.b32.xlu0 %v2597, 120
        %v2599 = vpop.permute.xlu0 %2598
        %v2600 = vrot.slane %v2599, 7
        %vm2601 = vcmask 982016
        %v2602 = vsel %vm2601, %v2600, %v2599
        %vm2604 = vcmp.ge.s32.totalorder %v2395, 120
        %vm2605 = vcmp.lt.s32.totalorder %v2395, 156
        %vm2606 = vmand %vm2604, %vm2605
        %2607 = vst.msk [vmem:[#allocation6 + $0x3] sm:$0x3] %vm2606, %v2602
        %v2608 = vcombine.high %v2589, %v2589
        %2609 = vrot.lane.b32.xlu0 %v2608, 28
        %v2610 = vpop.permute.xlu0 %2609
        %vm2612 = vcmp.ge.s32.totalorder %v2395, 28
        %vm2613 = vcmp.lt.s32.totalorder %v2395, 64
        %vm2614 = vmand %vm2612, %vm2613
        %2615 = vst.msk [vmem:[#allocation6 + $0x4] sm:$0x1] %vm2614, %v2610
        %v2616 = vld [vmem:[#allocation6] sm:$0x1f]
        %v2617 = vld [vmem:[%s6] sm:$0xff]
        %v2618 = vld [vmem:[%s6 + $0x8] sm:$0xff]
        %v2619 = vld [vmem:[%s6 + $0x10] sm:$0xff]
        %v2620 = vld [vmem:[%s6 + $0x18] sm:$0xff]
        %v2621 = vld [vmem:[%s6 + $0x20] sm:$0xff]
        %v2622 = vld [vmem:[%s6 + $0x28] sm:$0xff]
        %v2623 = vld [vmem:[%s6 + $0x30] sm:$0xff]
        %v2624 = vld [vmem:[%s6 + $0x38] sm:$0xff]
        %v2625 = vld [vmem:[%s6 + $0x40] sm:$0xff]
        %v2626 = vld [vmem:[%s6 + $0x48] sm:$0xff]
        %v2627 = vld [vmem:[%s6 + $0x50] sm:$0xff]
        %v2628 = vld [vmem:[%s6 + $0x58] sm:$0xff]
        %v2629 = vld [vmem:[%s6 + $0x60] sm:$0xff]
        %v2630 = vld [vmem:[%s6 + $0x68] sm:$0xff]
        %v2631 = vld [vmem:[%s6 + $0x70] sm:$0xff]
        %v2632 = vld [vmem:[%s6 + $0x78] sm:$0xff]
        %v2633 = vld [vmem:[%s6 + $0x80] sm:$0xff]
        %v2634 = vld [vmem:[%s6 + $0x88] sm:$0xff]
        %v2635 = vld [vmem:[%s6 + $0x90] sm:$0xff]
        %v2636 = vld [vmem:[%s6 + $0x98] sm:$0xff]
        %v2637 = vld [vmem:[%s6 + $0xa0] sm:$0xff]
        %v2638 = vld [vmem:[%s6 + $0xa8] sm:$0xff]
        %v2639 = vld [vmem:[%s6 + $0xb0] sm:$0xff]
        %v2640 = vld [vmem:[%s6 + $0xb8] sm:$0xff]
        %v2641 = vld [vmem:[%s6 + $0xc0] sm:$0xff]
        %v2642 = vld [vmem:[%s6 + $0xc8] sm:$0xff]
        %v2643 = vld [vmem:[%s6 + $0xd0] sm:$0xff]
        %v2644 = vld [vmem:[%s6 + $0xd8] sm:$0xff]
        %v2645 = vld [vmem:[%s6 + $0xe0] sm:$0xff]
        %v2646 = vld [vmem:[%s6 + $0xe8] sm:$0xff]
        %v2647 = vld [vmem:[%s6 + $0xf0] sm:$0xff]
        %v2648 = vld [vmem:[%s6 + $0xf8] sm:$0xff]
        %v2649 = vld [vmem:[%s6 + $0x100] sm:$0xff]
        %v2650 = vld [vmem:[%s6 + $0x108] sm:$0xff]
        %v2651 = vld [vmem:[%s6 + $0x110] sm:$0xff]
        %v2652 = vld [vmem:[%s6 + $0x118] sm:$0xff]
        %v2653 = vld [vmem:[%s6 + $0x120] sm:$0xff]
        %v2654 = vld [vmem:[%s6 + $0x128] sm:$0xff]
        %v2655 = vld [vmem:[%s6 + $0x130] sm:$0xff]
        %v2656 = vld [vmem:[%s6 + $0x138] sm:$0xff]
        %v2657 = vld [vmem:[%s6 + $0x140] sm:$0xff]
        %v2658 = vld [vmem:[%s6 + $0x148] sm:$0xff]
        %v2659 = vld [vmem:[%s6 + $0x150] sm:$0xff]
        %v2660 = vld [vmem:[%s6 + $0x158] sm:$0xff]
        %v2661 = vld [vmem:[%s6 + $0x160] sm:$0xff]
        %v2662 = vld [vmem:[%s6 + $0x168] sm:$0xff]
        %v2663 = vld [vmem:[%s6 + $0x170] sm:$0xff]
        %v2664 = vld [vmem:[%s6 + $0x178] sm:$0xff]
        %v2665 = vld [vmem:[%s6 + $0x180] sm:$0xff]
        %v2666 = vld [vmem:[%s6 + $0x188] sm:$0xff]
        %v2667 = vld [vmem:[%s6 + $0x190] sm:$0xff]
        %v2668 = vld [vmem:[%s6 + $0x198] sm:$0xff]
        %v2669 = vld [vmem:[%s6 + $0x1a0] sm:$0xff]
        %v2670 = vld [vmem:[%s6 + $0x1a8] sm:$0xff]
        %v2671 = vld [vmem:[%s6 + $0x1b0] sm:$0xff]
        %v2672 = vld [vmem:[%s6 + $0x1b8] sm:$0xff]
        %v2673 = vld [vmem:[%s6 + $0x1c0] sm:$0xff]
        %v2674 = vld [vmem:[%s6 + $0x1c8] sm:$0xff]
        %v2675 = vld [vmem:[%s6 + $0x1d0] sm:$0xff]
        %v2676 = vld [vmem:[%s6 + $0x1d8] sm:$0xff]
        %v2677 = vld [vmem:[%s6 + $0x1e0] sm:$0xff]
        %v2678 = vld [vmem:[%s6 + $0x1e8] sm:$0xff]
        %v2679 = vld [vmem:[%s6 + $0x1f0] sm:$0xff]
        %v2680 = vld [vmem:[%s6 + $0x1f8] sm:$0xff]
        %v2681 = vld [vmem:[%s6 + $0x200] sm:$0xff]
        %v2682 = vld [vmem:[%s6 + $0x208] sm:$0xff]
        %v2683 = vld [vmem:[%s6 + $0x210] sm:$0xff]
        %v2684 = vld [vmem:[%s6 + $0x218] sm:$0xff]
        %v2685 = vld [vmem:[%s6 + $0x220] sm:$0xff]
        %v2686 = vld [vmem:[%s6 + $0x228] sm:$0xff]
        %v2687 = vld [vmem:[%s6 + $0x230] sm:$0xff]
        %v2688 = vld [vmem:[%s6 + $0x238] sm:$0xff]
        %v2689 = vld [vmem:[%s7] sm:$0x1]
        %v2691 = vlaneseq
        %v2692 = vshrl.u32 %v2691, 7
        %v2693 = vsub.s32 0, %v2692
        %v2694 = vrot.slane %v2616, %v2693
        %v2695 = vlaneseq
        %v2696 = vshrl.u32 %v2695, 7
        %v2697 = vsub.s32 1, %v2696
        %v2698 = vrot.slane %v2616, %v2697
        %v2699 = vlaneseq
        %v2700 = vshrl.u32 %v2699, 7
        %v2701 = vsub.s32 2, %v2700
        %v2702 = vrot.slane %v2616, %v2701
        %v2703 = vlaneseq
        %v2704 = vshrl.u32 %v2703, 7
        %v2705 = vsub.s32 3, %v2704
        %v2706 = vrot.slane %v2616, %v2705
        %v2707 = vlaneseq
        %v2708 = vshrl.u32 %v2707, 7
        %v2709 = vsub.s32 4, %v2708
        %v2710 = vrot.slane %v2616, %v2709
        %v2715 = vsel %vm810, %v2710, 0
        %2717 = vmatprep.subr.mxu0 0.0
        %2718 = vmatpush1.msra.mxu0 %v2632
        %2719 = vmatprep.subr.mxu0 0.0
        %2720 = vmatpush1.msra.mxu0 %v2631
        %2721 = vmatprep.subr.mxu0 0.0
        %2722 = vmatpush1.msra.mxu0 %v2630
        %2723 = vmatprep.subr.mxu0 0.0
        %2724 = vmatpush1.msra.mxu0 %v2629
        %2725 = vmatprep.subr.mxu0 0.0
        %2726 = vmatpush1.msra.mxu0 %v2628
        %2727 = vmatprep.subr.mxu0 0.0
        %2728 = vmatpush1.msra.mxu0 %v2627
        %2729 = vmatprep.subr.mxu0 0.0
        %2730 = vmatpush1.msra.mxu0 %v2626
        %2731 = vmatprep.subr.mxu0 0.0
        %2732 = vmatpush1.msra.mxu0 %v2625
        %2733 = vmatprep.subr.mxu0 0.0
        %2734 = vmatpush1.msra.mxu0 %v2624
        %2735 = vmatprep.subr.mxu0 0.0
        %2736 = vmatpush1.msra.mxu0 %v2623
        %2737 = vmatprep.subr.mxu0 0.0
        %2738 = vmatpush1.msra.mxu0 %v2622
        %2739 = vmatprep.subr.mxu0 0.0
        %2740 = vmatpush1.msra.mxu0 %v2621
        %2741 = vmatprep.subr.mxu0 0.0
        %2742 = vmatpush1.msra.mxu0 %v2620
        %2743 = vmatprep.subr.mxu0 0.0
        %2744 = vmatpush1.msra.mxu0 %v2619
        %2745 = vmatprep.subr.mxu0 0.0
        %2746 = vmatpush1.msra.mxu0 %v2618
        %2747 = vmatprep.subr.mxu0 0.0
        %2748 = vmatpush1.msra.mxu0 %v2617
        %2749 = vmatprep.subr.mxu0 0.0
        %2750 = vmatpush2.msra.mxu0 %v2648
        %2751 = vmatprep.subr.mxu0 0.0
        %2752 = vmatpush2.msra.mxu0 %v2647
        %2753 = vmatprep.subr.mxu0 0.0
        %2754 = vmatpush2.msra.mxu0 %v2646
        %2755 = vmatprep.subr.mxu0 0.0
        %2756 = vmatpush2.msra.mxu0 %v2645
        %2757 = vmatprep.subr.mxu0 0.0
        %2758 = vmatpush2.msra.mxu0 %v2644
        %2759 = vmatprep.subr.mxu0 0.0
        %2760 = vmatpush2.msra.mxu0 %v2643
        %2761 = vmatprep.subr.mxu0 0.0
        %2762 = vmatpush2.msra.mxu0 %v2642
        %2763 = vmatprep.subr.mxu0 0.0
        %2764 = vmatpush2.msra.mxu0 %v2641
        %2765 = vmatprep.subr.mxu0 0.0
        %2766 = vmatpush2.msra.mxu0 %v2640
        %2767 = vmatprep.subr.mxu0 0.0
        %2768 = vmatpush2.msra.mxu0 %v2639
        %2769 = vmatprep.subr.mxu0 0.0
        %2770 = vmatpush2.msra.mxu0 %v2638
        %2771 = vmatprep.subr.mxu0 0.0
        %2772 = vmatpush2.msra.mxu0 %v2637
        %2773 = vmatprep.subr.mxu0 0.0
        %2774 = vmatpush2.msra.mxu0 %v2636
        %2775 = vmatprep.subr.mxu0 0.0
        %2776 = vmatpush2.msra.mxu0 %v2635
        %2777 = vmatprep.subr.mxu0 0.0
        %2778 = vmatpush2.msra.mxu0 %v2634
        %2779 = vmatprep.subr.mxu0 0.0
        %2780 = vmatpush2.msra.mxu0 %v2633
        %2781 = vmatprep.mubr.f32.mxu0 %v2698
        %2782 = vmatmul.mubr.f32.gmra.mxu0 %v2694
        %v2783 = vpop.f32.mrf.mxu0
        %v2784 = vadd.f32 %v2689, %v2783
        %v2785 = vpop.f32.mrf.mxu0
        %2786 = vdwg.mxu0
        %2787 = vmatprep.subr.mxu0 0.0
        %2788 = vmatpush1.msra.mxu0 %v2664
        %2789 = vmatprep.subr.mxu0 0.0
        %2790 = vmatpush1.msra.mxu0 %v2663
        %2791 = vmatprep.subr.mxu0 0.0
        %2792 = vmatpush1.msra.mxu0 %v2662
        %2793 = vmatprep.subr.mxu0 0.0
        %2794 = vmatpush1.msra.mxu0 %v2661
        %2795 = vmatprep.subr.mxu0 0.0
        %2796 = vmatpush1.msra.mxu0 %v2660
        %2797 = vmatprep.subr.mxu0 0.0
        %2798 = vmatpush1.msra.mxu0 %v2659
        %2799 = vmatprep.subr.mxu0 0.0
        %2800 = vmatpush1.msra.mxu0 %v2658
        %2801 = vmatprep.subr.mxu0 0.0
        %2802 = vmatpush1.msra.mxu0 %v2657
        %2803 = vmatprep.subr.mxu0 0.0
        %2804 = vmatpush1.msra.mxu0 %v2656
        %2805 = vmatprep.subr.mxu0 0.0
        %2806 = vmatpush1.msra.mxu0 %v2655
        %2807 = vmatprep.subr.mxu0 0.0
        %2808 = vmatpush1.msra.mxu0 %v2654
        %2809 = vmatprep.subr.mxu0 0.0
        %2810 = vmatpush1.msra.mxu0 %v2653
        %2811 = vmatprep.subr.mxu0 0.0
        %2812 = vmatpush1.msra.mxu0 %v2652
        %2813 = vmatprep.subr.mxu0 0.0
        %2814 = vmatpush1.msra.mxu0 %v2651
        %2815 = vmatprep.subr.mxu0 0.0
        %2816 = vmatpush1.msra.mxu0 %v2650
        %2817 = vmatprep.subr.mxu0 0.0
        %2818 = vmatpush1.msra.mxu0 %v2649
        %2819 = vmatprep.subr.mxu0 0.0
        %2820 = vmatpush2.msra.mxu0 %v2680
        %2821 = vmatprep.subr.mxu0 0.0
        %2822 = vmatpush2.msra.mxu0 %v2679
        %2823 = vmatprep.subr.mxu0 0.0
        %2824 = vmatpush2.msra.mxu0 %v2678
        %2825 = vmatprep.subr.mxu0 0.0
        %2826 = vmatpush2.msra.mxu0 %v2677
        %2827 = vmatprep.subr.mxu0 0.0
        %2828 = vmatpush2.msra.mxu0 %v2676
        %2829 = vmatprep.subr.mxu0 0.0
        %2830 = vmatpush2.msra.mxu0 %v2675
        %2831 = vmatprep.subr.mxu0 0.0
        %2832 = vmatpush2.msra.mxu0 %v2674
        %2833 = vmatprep.subr.mxu0 0.0
        %2834 = vmatpush2.msra.mxu0 %v2673
        %2835 = vmatprep.subr.mxu0 0.0
        %2836 = vmatpush2.msra.mxu0 %v2672
        %2837 = vmatprep.subr.mxu0 0.0
        %2838 = vmatpush2.msra.mxu0 %v2671
        %2839 = vmatprep.subr.mxu0 0.0
        %2840 = vmatpush2.msra.mxu0 %v2670
        %2841 = vmatprep.subr.mxu0 0.0
        %2842 = vmatpush2.msra.mxu0 %v2669
        %2843 = vmatprep.subr.mxu0 0.0
        %2844 = vmatpush2.msra.mxu0 %v2668
        %2845 = vmatprep.subr.mxu0 0.0
        %2846 = vmatpush2.msra.mxu0 %v2667
        %2847 = vmatprep.subr.mxu0 0.0
        %2848 = vmatpush2.msra.mxu0 %v2666
        %2849 = vmatprep.subr.mxu0 0.0
        %2850 = vmatpush2.msra.mxu0 %v2665
        %2851 = vmatprep.mubr.f32.mxu0 %v2706
        %2852 = vmatmul.mubr.f32.gmra.mxu0 %v2702
        %v2853 = vpop.f32.mrf.mxu0
        %v2854 = vadd.f32 %v2784, %v2853
        %v2855 = vpop.f32.mrf.mxu0
        %2856 = vdwg.mxu0
        %2857 = vmatprep.subr.mxu0 0.0
        %2858 = vmatpush1.msra.mxu0 0.0
        %2859 = vmatprep.subr.mxu0 0.0
        %2860 = vmatpush1.msra.mxu0 0.0
        %2861 = vmatprep.subr.mxu0 0.0
        %2862 = vmatpush1.msra.mxu0 0.0
        %2863 = vmatprep.subr.mxu0 0.0
        %2864 = vmatpush1.msra.mxu0 0.0
        %2865 = vmatprep.subr.mxu0 0.0
        %2866 = vmatpush1.msra.mxu0 0.0
        %2867 = vmatprep.subr.mxu0 0.0
        %2868 = vmatpush1.msra.mxu0 0.0
        %2869 = vmatprep.subr.mxu0 0.0
        %2870 = vmatpush1.msra.mxu0 0.0
        %2871 = vmatprep.subr.mxu0 0.0
        %2872 = vmatpush1.msra.mxu0 0.0
        %2873 = vmatprep.subr.mxu0 0.0
        %2874 = vmatpush1.msra.mxu0 %v2688
        %2875 = vmatprep.subr.mxu0 0.0
        %2876 = vmatpush1.msra.mxu0 %v2687
        %2877 = vmatprep.subr.mxu0 0.0
        %2878 = vmatpush1.msra.mxu0 %v2686
        %2879 = vmatprep.subr.mxu0 0.0
        %2880 = vmatpush1.msra.mxu0 %v2685
        %2881 = vmatprep.subr.mxu0 0.0
        %2882 = vmatpush1.msra.mxu0 %v2684
        %2883 = vmatprep.subr.mxu0 0.0
        %2884 = vmatpush1.msra.mxu0 %v2683
        %2885 = vmatprep.subr.mxu0 0.0
        %2886 = vmatpush1.msra.mxu0 %v2682
        %2887 = vmatprep.subr.mxu0 0.0
        %2888 = vmatpush1.msra.mxu0 %v2681
        %2889 = vmatprep.subr.mxu0 0.0
        %2890 = vmatpush2.msra.mxu0 0.0
        %2891 = vmatprep.subr.mxu0 0.0
        %2892 = vmatpush2.msra.mxu0 0.0
        %2893 = vmatprep.subr.mxu0 0.0
        %2894 = vmatpush2.msra.mxu0 0.0
        %2895 = vmatprep.subr.mxu0 0.0
        %2896 = vmatpush2.msra.mxu0 0.0
        %2897 = vmatprep.subr.mxu0 0.0
        %2898 = vmatpush2.msra.mxu0 0.0
        %2899 = vmatprep.subr.mxu0 0.0
        %2900 = vmatpush2.msra.mxu0 0.0
        %2901 = vmatprep.subr.mxu0 0.0
        %2902 = vmatpush2.msra.mxu0 0.0
        %2903 = vmatprep.subr.mxu0 0.0
        %2904 = vmatpush2.msra.mxu0 0.0
        %2905 = vmatprep.subr.mxu0 0.0
        %2906 = vmatpush2.msra.mxu0 0.0
        %2907 = vmatprep.subr.mxu0 0.0
        %2908 = vmatpush2.msra.mxu0 0.0
        %2909 = vmatprep.subr.mxu0 0.0
        %2910 = vmatpush2.msra.mxu0 0.0
        %2911 = vmatprep.subr.mxu0 0.0
        %2912 = vmatpush2.msra.mxu0 0.0
        %2913 = vmatprep.subr.mxu0 0.0
        %2914 = vmatpush2.msra.mxu0 0.0
        %2915 = vmatprep.subr.mxu0 0.0
        %2916 = vmatpush2.msra.mxu0 0.0
        %2917 = vmatprep.subr.mxu0 0.0
        %2918 = vmatpush2.msra.mxu0 0.0
        %2919 = vmatprep.subr.mxu0 0.0
        %2920 = vmatpush2.msra.mxu0 0.0
        %2921 = vmatprep.mubr.f32.mxu0 0.0
        %2922 = vmatmul.mubr.f32.gmra.mxu0 %v2715
        %v2923 = vpop.f32.mrf.mxu0
        %v2924 = vadd.f32 %v2854, %v2923
        %v2925 = vpop.f32.mrf.mxu0
        %2926 = vdwg.mxu0
        %v2927 = vmax.f32 %v2924, 0.0
        %v2928 = vld [vmem:[%s8] sm:$0xff]
        %v2929 = vld [vmem:[%s8 + $0x8] sm:$0xff]
        %v2930 = vld [vmem:[%s8 + $0x10] sm:$0xff]
        %v2931 = vld [vmem:[%s8 + $0x18] sm:$0xff]
        %v2932 = vld [vmem:[%s8 + $0x20] sm:$0xff]
        %v2933 = vld [vmem:[%s8 + $0x28] sm:$0xff]
        %v2934 = vld [vmem:[%s8 + $0x30] sm:$0xff]
        %v2935 = vld [vmem:[%s8 + $0x38] sm:$0xff]
        %v2936 = vld [vmem:[%s8 + $0x40] sm:$0xff]
        %v2937 = vld [vmem:[%s8 + $0x48] sm:$0xff]
        %v2938 = vld [vmem:[%s8 + $0x50] sm:$0xff]
        %v2939 = vld [vmem:[%s8 + $0x58] sm:$0xff]
        %v2940 = vld [vmem:[%s8 + $0x60] sm:$0xff]
        %v2941 = vld [vmem:[%s8 + $0x68] sm:$0xff]
        %v2942 = vld [vmem:[%s8 + $0x70] sm:$0xff]
        %v2943 = vld [vmem:[%s8 + $0x78] sm:$0xff]
        %v2944 = vld [vmem:[%s9] sm:$0x1]
        %2945 = vmatprep.subr.mxu0 0.0
        %2946 = vmatpush1.msra.mxu0 %v2943
        %2947 = vmatprep.subr.mxu0 0.0
        %2948 = vmatpush1.msra.mxu0 %v2942
        %2949 = vmatprep.subr.mxu0 0.0
        %2950 = vmatpush1.msra.mxu0 %v2941
        %2951 = vmatprep.subr.mxu0 0.0
        %2952 = vmatpush1.msra.mxu0 %v2940
        %2953 = vmatprep.subr.mxu0 0.0
        %2954 = vmatpush1.msra.mxu0 %v2939
        %2955 = vmatprep.subr.mxu0 0.0
        %2956 = vmatpush1.msra.mxu0 %v2938
        %2957 = vmatprep.subr.mxu0 0.0
        %2958 = vmatpush1.msra.mxu0 %v2937
        %2959 = vmatprep.subr.mxu0 0.0
        %2960 = vmatpush1.msra.mxu0 %v2936
        %2961 = vmatprep.subr.mxu0 0.0
        %2962 = vmatpush1.msra.mxu0 %v2935
        %2963 = vmatprep.subr.mxu0 0.0
        %2964 = vmatpush1.msra.mxu0 %v2934
        %2965 = vmatprep.subr.mxu0 0.0
        %2966 = vmatpush1.msra.mxu0 %v2933
        %2967 = vmatprep.subr.mxu0 0.0
        %2968 = vmatpush1.msra.mxu0 %v2932
        %2969 = vmatprep.subr.mxu0 0.0
        %2970 = vmatpush1.msra.mxu0 %v2931
        %2971 = vmatprep.subr.mxu0 0.0
        %2972 = vmatpush1.msra.mxu0 %v2930
        %2973 = vmatprep.subr.mxu0 0.0
        %2974 = vmatpush1.msra.mxu0 %v2929
        %2975 = vmatprep.subr.mxu0 0.0
        %2976 = vmatpush1.msra.mxu0 %v2928
        %2977 = vmatprep.subr.mxu0 0.0
        %2978 = vmatpush2.msra.mxu0 0.0
        %2979 = vmatprep.subr.mxu0 0.0
        %2980 = vmatpush2.msra.mxu0 0.0
        %2981 = vmatprep.subr.mxu0 0.0
        %2982 = vmatpush2.msra.mxu0 0.0
        %2983 = vmatprep.subr.mxu0 0.0
        %2984 = vmatpush2.msra.mxu0 0.0
        %2985 = vmatprep.subr.mxu0 0.0
        %2986 = vmatpush2.msra.mxu0 0.0
        %2987 = vmatprep.subr.mxu0 0.0
        %2988 = vmatpush2.msra.mxu0 0.0
        %2989 = vmatprep.subr.mxu0 0.0
        %2990 = vmatpush2.msra.mxu0 0.0
        %2991 = vmatprep.subr.mxu0 0.0
        %2992 = vmatpush2.msra.mxu0 0.0
        %2993 = vmatprep.subr.mxu0 0.0
        %2994 = vmatpush2.msra.mxu0 0.0
        %2995 = vmatprep.subr.mxu0 0.0
        %2996 = vmatpush2.msra.mxu0 0.0
        %2997 = vmatprep.subr.mxu0 0.0
        %2998 = vmatpush2.msra.mxu0 0.0
        %2999 = vmatprep.subr.mxu0 0.0
        %3000 = vmatpush2.msra.mxu0 0.0
        %3001 = vmatprep.subr.mxu0 0.0
        %3002 = vmatpush2.msra.mxu0 0.0
        %3003 = vmatprep.subr.mxu0 0.0
        %3004 = vmatpush2.msra.mxu0 0.0
        %3005 = vmatprep.subr.mxu0 0.0
        %3006 = vmatpush2.msra.mxu0 0.0
        %3007 = vmatprep.subr.mxu0 0.0
        %3008 = vmatpush2.msra.mxu0 0.0
        %3009 = vmatprep.mubr.f32.mxu0 0.0
        %3010 = vmatmul.mubr.f32.gmra.mxu0 %v2927
        %v3011 = vpop.f32.mrf.mxu0
        %v3012 = vadd.f32 %v2944, %v3011
        %v3013 = vpop.f32.mrf.mxu0
        %3014 = vdwg.mxu0
        %v3015 = vmax.f32 %v3012, 0.0
        %v3016 = vld [vmem:[%s10] sm:$0xff]
        %v3017 = vld [vmem:[%s10 + $0x8] sm:$0xff]
        %v3018 = vld [vmem:[%s10 + $0x10] sm:$0xff]
        %v3019 = vld [vmem:[%s10 + $0x18] sm:$0xff]
        %v3020 = vld [vmem:[%s10 + $0x20] sm:$0xff]
        %v3021 = vld [vmem:[%s10 + $0x28] sm:$0xff]
        %v3022 = vld [vmem:[%s10 + $0x30] sm:$0xff]
        %v3023 = vld [vmem:[%s10 + $0x38] sm:$0xff]
        %v3024 = vld [vmem:[%s10 + $0x40] sm:$0xff]
        %v3025 = vld [vmem:[%s10 + $0x48] sm:$0xff]
        %v3026 = vld [vmem:[%s10 + $0x50] sm:$0xff]
        %v3027 = vld [vmem:[%s10 + $0x58] sm:$0xff]
        %v3028 = vld [vmem:[%s10 + $0x60] sm:$0xff]
        %v3029 = vld [vmem:[%s10 + $0x68] sm:$0xff]
        %v3030 = vld [vmem:[%s10 + $0x70] sm:$0xff]
        %v3031 = vld [vmem:[%s10 + $0x78] sm:$0xff]
        %v3032 = vld [vmem:[%s11] sm:$0x1]
        %3033 = vmatprep.subr.mxu0 0.0
        %3034 = vmatpush1.msra.mxu0 %v3031
        %3035 = vmatprep.subr.mxu0 0.0
        %3036 = vmatpush1.msra.mxu0 %v3030
        %3037 = vmatprep.subr.mxu0 0.0
        %3038 = vmatpush1.msra.mxu0 %v3029
        %3039 = vmatprep.subr.mxu0 0.0
        %3040 = vmatpush1.msra.mxu0 %v3028
        %3041 = vmatprep.subr.mxu0 0.0
        %3042 = vmatpush1.msra.mxu0 %v3027
        %3043 = vmatprep.subr.mxu0 0.0
        %3044 = vmatpush1.msra.mxu0 %v3026
        %3045 = vmatprep.subr.mxu0 0.0
        %3046 = vmatpush1.msra.mxu0 %v3025
        %3047 = vmatprep.subr.mxu0 0.0
        %3048 = vmatpush1.msra.mxu0 %v3024
        %3049 = vmatprep.subr.mxu0 0.0
        %3050 = vmatpush1.msra.mxu0 %v3023
        %3051 = vmatprep.subr.mxu0 0.0
        %3052 = vmatpush1.msra.mxu0 %v3022
        %3053 = vmatprep.subr.mxu0 0.0
        %3054 = vmatpush1.msra.mxu0 %v3021
        %3055 = vmatprep.subr.mxu0 0.0
        %3056 = vmatpush1.msra.mxu0 %v3020
        %3057 = vmatprep.subr.mxu0 0.0
        %3058 = vmatpush1.msra.mxu0 %v3019
        %3059 = vmatprep.subr.mxu0 0.0
        %3060 = vmatpush1.msra.mxu0 %v3018
        %3061 = vmatprep.subr.mxu0 0.0
        %3062 = vmatpush1.msra.mxu0 %v3017
        %3063 = vmatprep.subr.mxu0 0.0
        %3064 = vmatpush1.msra.mxu0 %v3016
        %3065 = vmatprep.subr.mxu0 0.0
        %3066 = vmatpush2.msra.mxu0 0.0
        %3067 = vmatprep.subr.mxu0 0.0
        %3068 = vmatpush2.msra.mxu0 0.0
        %3069 = vmatprep.subr.mxu0 0.0
        %3070 = vmatpush2.msra.mxu0 0.0
        %3071 = vmatprep.subr.mxu0 0.0
        %3072 = vmatpush2.msra.mxu0 0.0
        %3073 = vmatprep.subr.mxu0 0.0
        %3074 = vmatpush2.msra.mxu0 0.0
        %3075 = vmatprep.subr.mxu0 0.0
        %3076 = vmatpush2.msra.mxu0 0.0
        %3077 = vmatprep.subr.mxu0 0.0
        %3078 = vmatpush2.msra.mxu0 0.0
        %3079 = vmatprep.subr.mxu0 0.0
        %3080 = vmatpush2.msra.mxu0 0.0
        %3081 = vmatprep.subr.mxu0 0.0
        %3082 = vmatpush2.msra.mxu0 0.0
        %3083 = vmatprep.subr.mxu0 0.0
        %3084 = vmatpush2.msra.mxu0 0.0
        %3085 = vmatprep.subr.mxu0 0.0
        %3086 = vmatpush2.msra.mxu0 0.0
        %3087 = vmatprep.subr.mxu0 0.0
        %3088 = vmatpush2.msra.mxu0 0.0
        %3089 = vmatprep.subr.mxu0 0.0
        %3090 = vmatpush2.msra.mxu0 0.0
        %3091 = vmatprep.subr.mxu0 0.0
        %3092 = vmatpush2.msra.mxu0 0.0
        %3093 = vmatprep.subr.mxu0 0.0
        %3094 = vmatpush2.msra.mxu0 0.0
        %3095 = vmatprep.subr.mxu0 0.0
        %3096 = vmatpush2.msra.mxu0 0.0
        %3097 = vmatprep.mubr.f32.mxu0 0.0
        %3098 = vmatmul.mubr.f32.gmra.mxu0 %v3015
        %v3099 = vpop.f32.mrf.mxu0
        %v3100 = vadd.f32 %v3032, %v3099
        %v3101 = vpop.f32.mrf.mxu0
        %3102 = vdwg.mxu0
        %3103 = vst [vmem:[%s404] sm:$0x1] %v3100
        %s3104 = sand.u32 %s291, 1
        %s3105 = scalar_lea.sflag [#allocation8], %s3104
        %s3106 = sand.u32 %s291, 1
        %s3107 = scalar_lea.vmem [#allocation7], %s3106
        // Predicated region
        $region69: #{net_forward.1} parent=67 // pred_check
          %p3108 = pneg %p301
        $region70: #{net_forward.1} parent=67 // pred_check_branch
          %3110 = sbr.rel (%p3108) target = $region72
        $region71: #{net_forward.1} parent=67 // pred_region
          %s3112 = ssub.s32 16, 16
          %3113 = vsyncadd %s3105, %s3112
          %s3114 = smul.addr %s26, 16
          %s3115 = scalar_lea.hbm %s12, %s3114
          %s3117 = sshll.u32 %s3107, 4
          %s3118 = int_to_ptr.vmem [resolvable:$true] %s3117
          %3120 = dma.vmem_to_hbm [thread:$0]  %s3118, 16, %s3115, %s3105
        $region72: #{net_forward.1} parent=67 // pred_fallthru
          _
      $region68: #{net_forward.1} parent=5 // pred_fallthru
        _
      %p3121 = scmp.le.s32.totalorder 2, %s21
      // Predicated region
      $region73: #{net_forward.1} parent=5 // pred_check
        %p3122 = pneg %p3121
      $region74: #{net_forward.1} parent=5 // pred_check_branch
        %3124 = sbr.rel (%p3122) target = $region76
      $region75: #{net_forward.1} parent=5 // pred_region
        %s3125 = ssub.s32 %s21, 2
        // Predicated region
        $region77: #{net_forward.1} parent=75 // pred_check
          %p3126 = pneg %p307
        $region78: #{net_forward.1} parent=75 // pred_check_branch
          %3128 = sbr.rel (%p3126) target = $region80
        $region79: #{net_forward.1} parent=75 // pred_region
          %s3129 = sand.u32 %s292, 1
          %s3130 = scalar_lea.sflag [#allocation8], %s3129
          %s3131 = sand.u32 %s292, 1
          %s3132 = scalar_lea.vmem [#allocation7], %s3131
          %3133 = dma.done %s3130, 16
        $region80: #{net_forward.1} parent=75 // pred_fallthru
          _
      $region76: #{net_forward.1} parent=5 // pred_fallthru
        _
    $region6: #{net_forward.1} parent=1 // loop_footer
      %s25 = sadd.s32 1, %s21
    $region7: #{net_forward.1} parent=1 // loop_footer_branch
      %20 = sbr.rel target = $region3
    $region8: #{net_forward.1} parent=1 // loop_exit
      _
    %3134 = vsyncpa [#allocation8], 1
    %s3135 = scalar_lea.sflag [#allocation8], 1
    %3136 = vsyncpa %s3135, 1

</llo_original>
